<compile_context>
chip_gen: v7x
topology: tpu7x:2x2x1
jax: 0.10.0
libtpu: 0.0.40
codegen_flags: <defaults>
</compile_context>

<pallas_src>
import jax
import jax.numpy as jnp
from jax.experimental import pallas as pl
from jax.experimental.pallas import tpu as pltpu

LN_EPS = 1e-5  # PyTorch nn.LayerNorm default


# ------------------------------------------------------------------ kernel 1: BiLSTM
def bilstm_kernel(x_ref, wih_f_ref, whh_f_ref, b_f_ref,
                  wih_b_ref, whh_b_ref, b_b_ref, out_ref):
    """Single-layer bidirectional LSTM.  x: (T, B, D) -> out: (T, B, 2H)."""
    x = x_ref[...]                       # (T, B, D) f32
    T, B, _ = x.shape
    H = whh_f_ref.shape[0]               # whh_t is (H, 4H)

    def run_direction(wih_t, whh_t, b, reverse):
        h = jnp.zeros((B, H), jnp.float32)
        c = jnp.zeros((B, H), jnp.float32)
        outs = [None] * T
        order = range(T - 1, -1, -1) if reverse else range(T)
        for t in order:                  # static unroll: short fixed sequence length
            gates = (jnp.dot(x[t], wih_t, preferred_element_type=jnp.float32)
                     + jnp.dot(h, whh_t, preferred_element_type=jnp.float32)
                     + b)                # (B, 4H), PyTorch gate order [i, f, g, o]
            i = jax.nn.sigmoid(gates[:, 0:H])
            f = jax.nn.sigmoid(gates[:, H:2 * H])
            g = jnp.tanh(gates[:, 2 * H:3 * H])
            o = jax.nn.sigmoid(gates[:, 3 * H:4 * H])
            c = f * c + i * g
            h = o * jnp.tanh(c)
            outs[t] = h
        return outs

    outs_f = run_direction(wih_f_ref[...], whh_f_ref[...], b_f_ref[...], False)
    outs_b = run_direction(wih_b_ref[...], whh_b_ref[...], b_b_ref[...], True)
    for t in range(T):
        out_ref[t] = jnp.concatenate([outs_f[t], outs_b[t]], axis=-1)   # (B, 2H)


# ---------------------------------------------- kernel 2: attention + MLP head + softmax
def attn_head_kernel(lstm_ref, wp_ref, bp_ref, wc_ref, bc_ref,
                     wfe_ref, bfe_ref, lnfe_w_ref, lnfe_b_ref,
                     wres_ref, bres_ref,
                     wfc1_ref, bfc1_ref, ln2_w_ref, ln2_b_ref,
                     wfc2_ref, bfc2_ref, out_ref):
    """8-head temporal attention + feature extractor + residual + fc1/fc2 + softmax."""
    lstm = lstm_ref[...]                 # (T, B, D2) f32
    T, B, D2 = lstm.shape
    NH = wp_ref.shape[1]                 # attention heads

    wp = wp_ref[...]                     # (D2, NH)
    bp = bp_ref[...]                     # (1, NH)

    # attention_projection scores per timestep; softmax over time per (batch, head)
    s = [jnp.dot(lstm[t], wp, preferred_element_type=jnp.float32) + bp for t in range(T)]
    m = s[0]
    for t in range(1, T):
        m = jnp.maximum(m, s[t])
    e = [jnp.exp(st - m) for st in s]
    z = e[0]
    for t in range(1, T):
        z = z + e[t]
    inv_z = 1.0 / z                      # (B, NH)
    w = [et * inv_z for et in e]         # one (B, NH) weight tile per timestep

    # Fold the per-head attended contexts straight through attention_combine:
    #   context = b_c + sum_h ctx_h @ Wc_h^T ,   ctx_h = sum_t w_t[:, h] * lstm_t
    context = jnp.zeros((B, D2), jnp.float32)
    for h in range(NH):
        ctx_h = w[0][:, h:h + 1] * lstm[0]
        for t in range(1, T):
            ctx_h = ctx_h + w[t][:, h:h + 1] * lstm[t]
        context = context + jnp.dot(ctx_h, wc_ref[h],
                                    preferred_element_type=jnp.float32)
    context = context + bc_ref[...]

    def layer_norm(v, gamma, beta):
        mu = jnp.mean(v, axis=-1, keepdims=True)
        var = jnp.mean(jnp.square(v - mu), axis=-1, keepdims=True)
        return (v - mu) * jax.lax.rsqrt(var + LN_EPS) * gamma + beta

    # feature_extractor: Linear -> LayerNorm -> ReLU (Dropout = identity in eval mode)
    fe = jnp.dot(context, wfe_ref[...], preferred_element_type=jnp.float32) + bfe_ref[...]
    fe = jnp.maximum(layer_norm(fe, lnfe_w_ref[...], lnfe_b_ref[...]), 0.0)
    res = jnp.dot(context, wres_ref[...], preferred_element_type=jnp.float32) + bres_ref[...]
    feat = fe + res

    h1 = jnp.maximum(
        jnp.dot(feat, wfc1_ref[...], preferred_element_type=jnp.float32) + bfc1_ref[...],
        0.0)
    h1 = layer_norm(h1, ln2_w_ref[...], ln2_b_ref[...])
    # TODO(synk): training-mode / MC-dropout (dropout_inference) masks are not applied;
    # this is the deterministic eval-mode forward.
    logits = jnp.dot(h1, wfc2_ref[...], preferred_element_type=jnp.float32) + bfc2_ref[...]

    mx = jnp.max(logits, axis=-1, keepdims=True)
    ex = jnp.exp(logits - mx)
    out_ref[...] = ex / jnp.sum(ex, axis=-1, keepdims=True)


# --------------------------------------------------------------------------- wrapper
def trading_lstm_forward(x, p):
    """Eval-mode TradingLSTM.forward.  x: (B, T, D) f32, p: PyTorch-layout params."""
    B, T, D = x.shape
    H = p["whh_f"].shape[1]              # whh_f: (4H, H)
    D2 = 2 * H
    NH = p["w_proj"].shape[0]            # (NH, D2)
    H2 = p["w_fc1"].shape[0]             # (H//2, H)
    C = p["w_fc2"].shape[0]              # (C, H//2)

    f32 = jnp.float32
    vmem = pl.BlockSpec(memory_space=pltpu.MemorySpace.VMEM)

    x_tbd = jnp.transpose(x, (1, 0, 2)).astype(f32)          # time-major (T, B, D)

    lstm_out = pl.pallas_call(
        bilstm_kernel,
        out_shape=jax.ShapeDtypeStruct((T, B, D2), f32),
        in_specs=[vmem] * 7,
        out_specs=vmem,
    )(
        x_tbd,
        p["wih_f"].T.astype(f32), p["whh_f"].T.astype(f32),
        (p["bih_f"] + p["bhh_f"]).reshape(1, 4 * H).astype(f32),
        p["wih_b"].T.astype(f32), p["whh_b"].T.astype(f32),
        (p["bih_b"] + p["bhh_b"]).reshape(1, 4 * H).astype(f32),
    )

    # attention_combine weight (D2, NH*D2), head-major columns -> per-head (D2_in, D2_out)
    wc_t = jnp.transpose(p["w_comb"].reshape(D2, NH, D2), (1, 2, 0)).astype(f32)

    out = pl.pallas_call(
        attn_head_kernel,
        out_shape=jax.ShapeDtypeStruct((B, C), f32),
        in_specs=[vmem] * 17,
        out_specs=vmem,
    )(
        lstm_out,
        p["w_proj"].T.astype(f32), p["b_proj"].reshape(1, NH).astype(f32),
        wc_t, p["b_comb"].reshape(1, D2).astype(f32),
        p["w_fe"].T.astype(f32), p["b_fe"].reshape(1, H).astype(f32),
        p["ln_fe_w"].reshape(1, H).astype(f32), p["ln_fe_b"].reshape(1, H).astype(f32),
        p["w_res"].T.astype(f32), p["b_res"].reshape(1, H).astype(f32),
        p["w_fc1"].T.astype(f32), p["b_fc1"].reshape(1, H2).astype(f32),
        p["ln2_w"].reshape(1, H2).astype(f32), p["ln2_b"].reshape(1, H2).astype(f32),
        p["w_fc2"].T.astype(f32), p["b_fc2"].reshape(1, C).astype(f32),
    )
    return out


# ------------------------------------------------------------------ params + reference
def init_params(key, input_size, hidden_size, num_heads=8, output_size=3):
    D, H = input_size, hidden_size
    D2, H2 = 2 * H, H // 2
    ks = jax.random.split(key, 24)

    def w(k, shape, scale=0.1):
        return jax.random.normal(k, shape, jnp.float32) * scale

    return {
        "wih_f": w(ks[0], (4 * H, D)), "whh_f": w(ks[1], (4 * H, H)),
        "bih_f": w(ks[2], (4 * H,)),   "bhh_f": w(ks[3], (4 * H,)),
        "wih_b": w(ks[4], (4 * H, D)), "whh_b": w(ks[5], (4 * H, H)),
        "bih_b": w(ks[6], (4 * H,)),   "bhh_b": w(ks[7], (4 * H,)),
        "w_proj": w(ks[8], (num_heads, D2)), "b_proj": w(ks[9], (num_heads,)),
        "w_comb": w(ks[10], (D2, num_heads * D2)), "b_comb": w(ks[11], (D2,)),
        "w_fe": w(ks[12], (H, D2)), "b_fe": w(ks[13], (H,)),
        "ln_fe_w": 1.0 + 0.05 * jax.random.normal(ks[20], (H,), jnp.float32),
        "ln_fe_b": 0.05 * jax.random.normal(ks[21], (H,), jnp.float32),
        "w_res": w(ks[14], (H, D2)), "b_res": w(ks[15], (H,)),
        "w_fc1": w(ks[16], (H2, H)), "b_fc1": w(ks[17], (H2,)),
        "ln2_w": 1.0 + 0.05 * jax.random.normal(ks[22], (H2,), jnp.float32),
        "ln2_b": 0.05 * jax.random.normal(ks[23], (H2,), jnp.float32),
        "w_fc2": w(ks[18], (output_size, H2)), "b_fc2": w(ks[19], (output_size,)),
    }


def reference_forward(x, p):
    """Pure-JAX mirror of the PyTorch eval-mode forward, for correctness checking."""
    B, T, D = x.shape
    H = p["whh_f"].shape[1]
    D2 = 2 * H
    NH = p["w_proj"].shape[0]

    def lstm_dir(wih, whh, b, reverse):
        h = jnp.zeros((B, H), jnp.float32)
        c = jnp.zeros((B, H), jnp.float32)
        outs = [None] * T
        order = range(T - 1, -1, -1) if reverse else range(T)
        for t in order:
            g = x[:, t, :] @ wih.T + h @ whh.T + b
            i = jax.nn.sigmoid(g[:, :H]); f = jax.nn.sigmoid(g[:, H:2 * H])
            gg = jnp.tanh(g[:, 2 * H:3 * H]); o = jax.nn.sigmoid(g[:, 3 * H:])
            c = f * c + i * gg
            h = o * jnp.tanh(c)
            outs[t] = h
        return jnp.stack(outs, axis=1)                       # (B, T, H)

    lstm_out = jnp.concatenate(
        [lstm_dir(p["wih_f"], p["whh_f"], p["bih_f"] + p["bhh_f"], False),
         lstm_dir(p["wih_b"], p["whh_b"], p["bih_b"] + p["bhh_b"], True)], axis=-1)

    scores = jnp.einsum("btd,hd->bth", lstm_out, p["w_proj"]) + p["b_proj"]
    weights = jax.nn.softmax(scores, axis=1)                 # over time
    ctx_heads = jnp.einsum("bth,btd->bhd", weights, lstm_out)
    context = ctx_heads.reshape(B, NH * D2) @ p["w_comb"].T + p["b_comb"]

    def layer_norm(v, g_, b_):
        mu = v.mean(-1, keepdims=True)
        var = ((v - mu) ** 2).mean(-1, keepdims=True)
        return (v - mu) / jnp.sqrt(var + LN_EPS) * g_ + b_

    fe = jax.nn.relu(layer_norm(context @ p["w_fe"].T + p["b_fe"],
                                p["ln_fe_w"], p["ln_fe_b"]))
    res = context @ p["w_res"].T + p["b_res"]
    feat = fe + res
    h1 = jax.nn.relu(feat @ p["w_fc1"].T + p["b_fc1"])
    h1 = layer_norm(h1, p["ln2_w"], p["ln2_b"])
    logits = h1 @ p["w_fc2"].T + p["b_fc2"]
    return jax.nn.softmax(logits, axis=1)


if __name__ == "__main__":
    B, T, D, H = 2, 8, 16, 32   # batch, seq, input_size, LSTM hidden
    key = jax.random.PRNGKey(0)
    kx, kp = jax.random.split(key)
    x = jax.random.normal(kx, (B, T, D), jnp.float32)
    params = init_params(kp, D, H)

    out = jax.block_until_ready(trading_lstm_forward(x, params))

    with jax.default_matmul_precision("float32"):
        ref = reference_forward(x, params)

    assert out.shape == (B, 3), out.shape
    assert jnp.allclose(jnp.sum(out, axis=1), 1.0, atol=1e-5)
    assert jnp.allclose(out, ref, rtol=1e-3, atol=1e-4), (out, ref)
    print("KERNEL_OK")
</pallas_src>

<mosaic_0001>
module attributes {stable_mosaic.version = 11 : i64} {
  func.func @bilstm_kernel(%arg0: memref<8x2x16xf32, #tpu.memory_space<vmem>>, %arg1: memref<16x128xf32, #tpu.memory_space<vmem>>, %arg2: memref<32x128xf32, #tpu.memory_space<vmem>>, %arg3: memref<1x128xf32, #tpu.memory_space<vmem>>, %arg4: memref<16x128xf32, #tpu.memory_space<vmem>>, %arg5: memref<32x128xf32, #tpu.memory_space<vmem>>, %arg6: memref<1x128xf32, #tpu.memory_space<vmem>>, %arg7: memref<8x2x64xf32, #tpu.memory_space<vmem>>) attributes {dimension_semantics = [], scalar_prefetch = 0 : i64, scratch_operands = 0 : i64, tpu.core_type = #tpu.core_type<tc>} {
    %c0 = arith.constant 0 : index
    %c0_0 = arith.constant 0 : index
    %c0_1 = arith.constant 0 : index
    %0 = vector.load %arg0[%c0, %c0_0, %c0_1] : memref<8x2x16xf32, #tpu.memory_space<vmem>>, vector<8x2x16xf32>
    %c0_2 = arith.constant 0 : index
    %c0_3 = arith.constant 0 : index
    %1 = vector.load %arg1[%c0_2, %c0_3] : memref<16x128xf32, #tpu.memory_space<vmem>>, vector<16x128xf32>
    %c0_4 = arith.constant 0 : index
    %c0_5 = arith.constant 0 : index
    %2 = vector.load %arg2[%c0_4, %c0_5] : memref<32x128xf32, #tpu.memory_space<vmem>>, vector<32x128xf32>
    %c0_6 = arith.constant 0 : index
    %c0_7 = arith.constant 0 : index
    %3 = vector.load %arg3[%c0_6, %c0_7] : memref<1x128xf32, #tpu.memory_space<vmem>>, vector<1x128xf32>
    %cst = arith.constant 0.000000e+00 : f32
    %4 = vector.broadcast %cst : f32 to vector<2x32xf32>
    %cst_8 = arith.constant 0.000000e+00 : f32
    %5 = vector.broadcast %cst_8 : f32 to vector<2x32xf32>
    %6 = vector.extract_strided_slice %0 {offsets = [0, 0, 0], sizes = [1, 2, 16], strides = [1, 1, 1]} : vector<8x2x16xf32> to vector<1x2x16xf32>
    %7 = vector.shape_cast %6 : vector<1x2x16xf32> to vector<2x16xf32>
    %cst_9 = arith.constant dense<0.000000e+00> : vector<2x128xf32>
    %8 = tpu.matmul %7, %1, %cst_9 {dimension_numbers = #tpu.dot_dimension_numbers<[1], [0], [0], [1], [0, 0, 1, 1], [], []>} : vector<2x16xf32>, vector<16x128xf32>, vector<2x128xf32> -> vector<2x128xf32>
    %cst_10 = arith.constant dense<0.000000e+00> : vector<2x128xf32>
    %9 = tpu.matmul %4, %2, %cst_10 {dimension_numbers = #tpu.dot_dimension_numbers<[1], [0], [0], [1], [0, 0, 1, 1], [], []>} : vector<2x32xf32>, vector<32x128xf32>, vector<2x128xf32> -> vector<2x128xf32>
    %10 = arith.addf %8, %9 : vector<2x128xf32>
    %11 = vector.broadcast %3 : vector<1x128xf32> to vector<2x128xf32>
    %12 = arith.addf %10, %11 : vector<2x128xf32>
    %13 = vector.extract_strided_slice %12 {offsets = [0, 0], sizes = [2, 32], strides = [1, 1]} : vector<2x128xf32> to vector<2x32xf32>
    %14 = arith.negf %13 : vector<2x32xf32>
    %15 = math.exp %14 : vector<2x32xf32>
    %cst_11 = arith.constant 1.000000e+00 : f32
    %16 = vector.broadcast %cst_11 : f32 to vector<2x32xf32>
    %17 = arith.addf %16, %15 : vector<2x32xf32>
    %18 = arith.divf %16, %17 : vector<2x32xf32>
    %19 = vector.extract_strided_slice %12 {offsets = [0, 32], sizes = [2, 32], strides = [1, 1]} : vector<2x128xf32> to vector<2x32xf32>
    %20 = arith.negf %19 : vector<2x32xf32>
    %21 = math.exp %20 : vector<2x32xf32>
    %cst_12 = arith.constant 1.000000e+00 : f32
    %22 = vector.broadcast %cst_12 : f32 to vector<2x32xf32>
    %23 = arith.addf %22, %21 : vector<2x32xf32>
    %24 = arith.divf %22, %23 : vector<2x32xf32>
    %25 = vector.extract_strided_slice %12 {offsets = [0, 64], sizes = [2, 32], strides = [1, 1]} : vector<2x128xf32> to vector<2x32xf32>
    %26 = math.tanh %25 : vector<2x32xf32>
    %27 = vector.extract_strided_slice %12 {offsets = [0, 96], sizes = [2, 32], strides = [1, 1]} : vector<2x128xf32> to vector<2x32xf32>
    %28 = arith.negf %27 : vector<2x32xf32>
    %29 = math.exp %28 : vector<2x32xf32>
    %cst_13 = arith.constant 1.000000e+00 : f32
    %30 = vector.broadcast %cst_13 : f32 to vector<2x32xf32>
    %31 = arith.addf %30, %29 : vector<2x32xf32>
    %32 = arith.divf %30, %31 : vector<2x32xf32>
    %33 = arith.mulf %24, %5 : vector<2x32xf32>
    %34 = arith.mulf %18, %26 : vector<2x32xf32>
    %35 = arith.addf %33, %34 : vector<2x32xf32>
    %36 = math.tanh %35 : vector<2x32xf32>
    %37 = arith.mulf %32, %36 : vector<2x32xf32>
    %38 = vector.extract_strided_slice %0 {offsets = [1, 0, 0], sizes = [1, 2, 16], strides = [1, 1, 1]} : vector<8x2x16xf32> to vector<1x2x16xf32>
    %39 = vector.shape_cast %38 : vector<1x2x16xf32> to vector<2x16xf32>
    %cst_14 = arith.constant dense<0.000000e+00> : vector<2x128xf32>
    %40 = tpu.matmul %39, %1, %cst_14 {dimension_numbers = #tpu.dot_dimension_numbers<[1], [0], [0], [1], [0, 0, 1, 1], [], []>} : vector<2x16xf32>, vector<16x128xf32>, vector<2x128xf32> -> vector<2x128xf32>
    %cst_15 = arith.constant dense<0.000000e+00> : vector<2x128xf32>
    %41 = tpu.matmul %37, %2, %cst_15 {dimension_numbers = #tpu.dot_dimension_numbers<[1], [0], [0], [1], [0, 0, 1, 1], [], []>} : vector<2x32xf32>, vector<32x128xf32>, vector<2x128xf32> -> vector<2x128xf32>
    %42 = arith.addf %40, %41 : vector<2x128xf32>
    %43 = vector.broadcast %3 : vector<1x128xf32> to vector<2x128xf32>
    %44 = arith.addf %42, %43 : vector<2x128xf32>
    %45 = vector.extract_strided_slice %44 {offsets = [0, 0], sizes = [2, 32], strides = [1, 1]} : vector<2x128xf32> to vector<2x32xf32>
    %46 = arith.negf %45 : vector<2x32xf32>
    %47 = math.exp %46 : vector<2x32xf32>
    %cst_16 = arith.constant 1.000000e+00 : f32
    %48 = vector.broadcast %cst_16 : f32 to vector<2x32xf32>
    %49 = arith.addf %48, %47 : vector<2x32xf32>
    %50 = arith.divf %48, %49 : vector<2x32xf32>
    %51 = vector.extract_strided_slice %44 {offsets = [0, 32], sizes = [2, 32], strides = [1, 1]} : vector<2x128xf32> to vector<2x32xf32>
    %52 = arith.negf %51 : vector<2x32xf32>
    %53 = math.exp %52 : vector<2x32xf32>
    %cst_17 = arith.constant 1.000000e+00 : f32
    %54 = vector.broadcast %cst_17 : f32 to vector<2x32xf32>
    %55 = arith.addf %54, %53 : vector<2x32xf32>
    %56 = arith.divf %54, %55 : vector<2x32xf32>
    %57 = vector.extract_strided_slice %44 {offsets = [0, 64], sizes = [2, 32], strides = [1, 1]} : vector<2x128xf32> to vector<2x32xf32>
    %58 = math.tanh %57 : vector<2x32xf32>
    %59 = vector.extract_strided_slice %44 {offsets = [0, 96], sizes = [2, 32], strides = [1, 1]} : vector<2x128xf32> to vector<2x32xf32>
    %60 = arith.negf %59 : vector<2x32xf32>
    %61 = math.exp %60 : vector<2x32xf32>
    %cst_18 = arith.constant 1.000000e+00 : f32
    %62 = vector.broadcast %cst_18 : f32 to vector<2x32xf32>
    %63 = arith.addf %62, %61 : vector<2x32xf32>
    %64 = arith.divf %62, %63 : vector<2x32xf32>
    %65 = arith.mulf %56, %35 : vector<2x32xf32>
    %66 = arith.mulf %50, %58 : vector<2x32xf32>
    %67 = arith.addf %65, %66 : vector<2x32xf32>
    %68 = math.tanh %67 : vector<2x32xf32>
    %69 = arith.mulf %64, %68 : vector<2x32xf32>
    %70 = vector.extract_strided_slice %0 {offsets = [2, 0, 0], sizes = [1, 2, 16], strides = [1, 1, 1]} : vector<8x2x16xf32> to vector<1x2x16xf32>
    %71 = vector.shape_cast %70 : vector<1x2x16xf32> to vector<2x16xf32>
    %cst_19 = arith.constant dense<0.000000e+00> : vector<2x128xf32>
    %72 = tpu.matmul %71, %1, %cst_19 {dimension_numbers = #tpu.dot_dimension_numbers<[1], [0], [0], [1], [0, 0, 1, 1], [], []>} : vector<2x16xf32>, vector<16x128xf32>, vector<2x128xf32> -> vector<2x128xf32>
    %cst_20 = arith.constant dense<0.000000e+00> : vector<2x128xf32>
    %73 = tpu.matmul %69, %2, %cst_20 {dimension_numbers = #tpu.dot_dimension_numbers<[1], [0], [0], [1], [0, 0, 1, 1], [], []>} : vector<2x32xf32>, vector<32x128xf32>, vector<2x128xf32> -> vector<2x128xf32>
    %74 = arith.addf %72, %73 : vector<2x128xf32>
    %75 = vector.broadcast %3 : vector<1x128xf32> to vector<2x128xf32>
    %76 = arith.addf %74, %75 : vector<2x128xf32>
    %77 = vector.extract_strided_slice %76 {offsets = [0, 0], sizes = [2, 32], strides = [1, 1]} : vector<2x128xf32> to vector<2x32xf32>
    %78 = arith.negf %77 : vector<2x32xf32>
    %79 = math.exp %78 : vector<2x32xf32>
    %cst_21 = arith.constant 1.000000e+00 : f32
    %80 = vector.broadcast %cst_21 : f32 to vector<2x32xf32>
    %81 = arith.addf %80, %79 : vector<2x32xf32>
    %82 = arith.divf %80, %81 : vector<2x32xf32>
    %83 = vector.extract_strided_slice %76 {offsets = [0, 32], sizes = [2, 32], strides = [1, 1]} : vector<2x128xf32> to vector<2x32xf32>
    %84 = arith.negf %83 : vector<2x32xf32>
    %85 = math.exp %84 : vector<2x32xf32>
    %cst_22 = arith.constant 1.000000e+00 : f32
    %86 = vector.broadcast %cst_22 : f32 to vector<2x32xf32>
    %87 = arith.addf %86, %85 : vector<2x32xf32>
    %88 = arith.divf %86, %87 : vector<2x32xf32>
    %89 = vector.extract_strided_slice %76 {offsets = [0, 64], sizes = [2, 32], strides = [1, 1]} : vector<2x128xf32> to vector<2x32xf32>
    %90 = math.tanh %89 : vector<2x32xf32>
    %91 = vector.extract_strided_slice %76 {offsets = [0, 96], sizes = [2, 32], strides = [1, 1]} : vector<2x128xf32> to vector<2x32xf32>
    %92 = arith.negf %91 : vector<2x32xf32>
    %93 = math.exp %92 : vector<2x32xf32>
    %cst_23 = arith.constant 1.000000e+00 : f32
    %94 = vector.broadcast %cst_23 : f32 to vector<2x32xf32>
    %95 = arith.addf %94, %93 : vector<2x32xf32>
    %96 = arith.divf %94, %95 : vector<2x32xf32>
    %97 = arith.mulf %88, %67 : vector<2x32xf32>
    %98 = arith.mulf %82, %90 : vector<2x32xf32>
    %99 = arith.addf %97, %98 : vector<2x32xf32>
    %100 = math.tanh %99 : vector<2x32xf32>
    %101 = arith.mulf %96, %100 : vector<2x32xf32>
    %102 = vector.extract_strided_slice %0 {offsets = [3, 0, 0], sizes = [1, 2, 16], strides = [1, 1, 1]} : vector<8x2x16xf32> to vector<1x2x16xf32>
    %103 = vector.shape_cast %102 : vector<1x2x16xf32> to vector<2x16xf32>
    %cst_24 = arith.constant dense<0.000000e+00> : vector<2x128xf32>
    %104 = tpu.matmul %103, %1, %cst_24 {dimension_numbers = #tpu.dot_dimension_numbers<[1], [0], [0], [1], [0, 0, 1, 1], [], []>} : vector<2x16xf32>, vector<16x128xf32>, vector<2x128xf32> -> vector<2x128xf32>
    %cst_25 = arith.constant dense<0.000000e+00> : vector<2x128xf32>
    %105 = tpu.matmul %101, %2, %cst_25 {dimension_numbers = #tpu.dot_dimension_numbers<[1], [0], [0], [1], [0, 0, 1, 1], [], []>} : vector<2x32xf32>, vector<32x128xf32>, vector<2x128xf32> -> vector<2x128xf32>
    %106 = arith.addf %104, %105 : vector<2x128xf32>
    %107 = vector.broadcast %3 : vector<1x128xf32> to vector<2x128xf32>
    %108 = arith.addf %106, %107 : vector<2x128xf32>
    %109 = vector.extract_strided_slice %108 {offsets = [0, 0], sizes = [2, 32], strides = [1, 1]} : vector<2x128xf32> to vector<2x32xf32>
    %110 = arith.negf %109 : vector<2x32xf32>
    %111 = math.exp %110 : vector<2x32xf32>
    %cst_26 = arith.constant 1.000000e+00 : f32
    %112 = vector.broadcast %cst_26 : f32 to vector<2x32xf32>
    %113 = arith.addf %112, %111 : vector<2x32xf32>
    %114 = arith.divf %112, %113 : vector<2x32xf32>
    %115 = vector.extract_strided_slice %108 {offsets = [0, 32], sizes = [2, 32], strides = [1, 1]} : vector<2x128xf32> to vector<2x32xf32>
    %116 = arith.negf %115 : vector<2x32xf32>
    %117 = math.exp %116 : vector<2x32xf32>
    %cst_27 = arith.constant 1.000000e+00 : f32
    %118 = vector.broadcast %cst_27 : f32 to vector<2x32xf32>
    %119 = arith.addf %118, %117 : vector<2x32xf32>
    %120 = arith.divf %118, %119 : vector<2x32xf32>
    %121 = vector.extract_strided_slice %108 {offsets = [0, 64], sizes = [2, 32], strides = [1, 1]} : vector<2x128xf32> to vector<2x32xf32>
    %122 = math.tanh %121 : vector<2x32xf32>
    %123 = vector.extract_strided_slice %108 {offsets = [0, 96], sizes = [2, 32], strides = [1, 1]} : vector<2x128xf32> to vector<2x32xf32>
    %124 = arith.negf %123 : vector<2x32xf32>
    %125 = math.exp %124 : vector<2x32xf32>
    %cst_28 = arith.constant 1.000000e+00 : f32
    %126 = vector.broadcast %cst_28 : f32 to vector<2x32xf32>
    %127 = arith.addf %126, %125 : vector<2x32xf32>
    %128 = arith.divf %126, %127 : vector<2x32xf32>
    %129 = arith.mulf %120, %99 : vector<2x32xf32>
    %130 = arith.mulf %114, %122 : vector<2x32xf32>
    %131 = arith.addf %129, %130 : vector<2x32xf32>
    %132 = math.tanh %131 : vector<2x32xf32>
    %133 = arith.mulf %128, %132 : vector<2x32xf32>
    %134 = vector.extract_strided_slice %0 {offsets = [4, 0, 0], sizes = [1, 2, 16], strides = [1, 1, 1]} : vector<8x2x16xf32> to vector<1x2x16xf32>
    %135 = vector.shape_cast %134 : vector<1x2x16xf32> to vector<2x16xf32>
    %cst_29 = arith.constant dense<0.000000e+00> : vector<2x128xf32>
    %136 = tpu.matmul %135, %1, %cst_29 {dimension_numbers = #tpu.dot_dimension_numbers<[1], [0], [0], [1], [0, 0, 1, 1], [], []>} : vector<2x16xf32>, vector<16x128xf32>, vector<2x128xf32> -> vector<2x128xf32>
    %cst_30 = arith.constant dense<0.000000e+00> : vector<2x128xf32>
    %137 = tpu.matmul %133, %2, %cst_30 {dimension_numbers = #tpu.dot_dimension_numbers<[1], [0], [0], [1], [0, 0, 1, 1], [], []>} : vector<2x32xf32>, vector<32x128xf32>, vector<2x128xf32> -> vector<2x128xf32>
    %138 = arith.addf %136, %137 : vector<2x128xf32>
    %139 = vector.broadcast %3 : vector<1x128xf32> to vector<2x128xf32>
    %140 = arith.addf %138, %139 : vector<2x128xf32>
    %141 = vector.extract_strided_slice %140 {offsets = [0, 0], sizes = [2, 32], strides = [1, 1]} : vector<2x128xf32> to vector<2x32xf32>
    %142 = arith.negf %141 : vector<2x32xf32>
    %143 = math.exp %142 : vector<2x32xf32>
    %cst_31 = arith.constant 1.000000e+00 : f32
    %144 = vector.broadcast %cst_31 : f32 to vector<2x32xf32>
    %145 = arith.addf %144, %143 : vector<2x32xf32>
    %146 = arith.divf %144, %145 : vector<2x32xf32>
    %147 = vector.extract_strided_slice %140 {offsets = [0, 32], sizes = [2, 32], strides = [1, 1]} : vector<2x128xf32> to vector<2x32xf32>
    %148 = arith.negf %147 : vector<2x32xf32>
    %149 = math.exp %148 : vector<2x32xf32>
    %cst_32 = arith.constant 1.000000e+00 : f32
    %150 = vector.broadcast %cst_32 : f32 to vector<2x32xf32>
    %151 = arith.addf %150, %149 : vector<2x32xf32>
    %152 = arith.divf %150, %151 : vector<2x32xf32>
    %153 = vector.extract_strided_slice %140 {offsets = [0, 64], sizes = [2, 32], strides = [1, 1]} : vector<2x128xf32> to vector<2x32xf32>
    %154 = math.tanh %153 : vector<2x32xf32>
    %155 = vector.extract_strided_slice %140 {offsets = [0, 96], sizes = [2, 32], strides = [1, 1]} : vector<2x128xf32> to vector<2x32xf32>
    %156 = arith.negf %155 : vector<2x32xf32>
    %157 = math.exp %156 : vector<2x32xf32>
    %cst_33 = arith.constant 1.000000e+00 : f32
    %158 = vector.broadcast %cst_33 : f32 to vector<2x32xf32>
    %159 = arith.addf %158, %157 : vector<2x32xf32>
    %160 = arith.divf %158, %159 : vector<2x32xf32>
    %161 = arith.mulf %152, %131 : vector<2x32xf32>
    %162 = arith.mulf %146, %154 : vector<2x32xf32>
    %163 = arith.addf %161, %162 : vector<2x32xf32>
    %164 = math.tanh %163 : vector<2x32xf32>
    %165 = arith.mulf %160, %164 : vector<2x32xf32>
    %166 = vector.extract_strided_slice %0 {offsets = [5, 0, 0], sizes = [1, 2, 16], strides = [1, 1, 1]} : vector<8x2x16xf32> to vector<1x2x16xf32>
    %167 = vector.shape_cast %166 : vector<1x2x16xf32> to vector<2x16xf32>
    %cst_34 = arith.constant dense<0.000000e+00> : vector<2x128xf32>
    %168 = tpu.matmul %167, %1, %cst_34 {dimension_numbers = #tpu.dot_dimension_numbers<[1], [0], [0], [1], [0, 0, 1, 1], [], []>} : vector<2x16xf32>, vector<16x128xf32>, vector<2x128xf32> -> vector<2x128xf32>
    %cst_35 = arith.constant dense<0.000000e+00> : vector<2x128xf32>
    %169 = tpu.matmul %165, %2, %cst_35 {dimension_numbers = #tpu.dot_dimension_numbers<[1], [0], [0], [1], [0, 0, 1, 1], [], []>} : vector<2x32xf32>, vector<32x128xf32>, vector<2x128xf32> -> vector<2x128xf32>
    %170 = arith.addf %168, %169 : vector<2x128xf32>
    %171 = vector.broadcast %3 : vector<1x128xf32> to vector<2x128xf32>
    %172 = arith.addf %170, %171 : vector<2x128xf32>
    %173 = vector.extract_strided_slice %172 {offsets = [0, 0], sizes = [2, 32], strides = [1, 1]} : vector<2x128xf32> to vector<2x32xf32>
    %174 = arith.negf %173 : vector<2x32xf32>
    %175 = math.exp %174 : vector<2x32xf32>
    %cst_36 = arith.constant 1.000000e+00 : f32
    %176 = vector.broadcast %cst_36 : f32 to vector<2x32xf32>
    %177 = arith.addf %176, %175 : vector<2x32xf32>
    %178 = arith.divf %176, %177 : vector<2x32xf32>
    %179 = vector.extract_strided_slice %172 {offsets = [0, 32], sizes = [2, 32], strides = [1, 1]} : vector<2x128xf32> to vector<2x32xf32>
    %180 = arith.negf %179 : vector<2x32xf32>
    %181 = math.exp %180 : vector<2x32xf32>
    %cst_37 = arith.constant 1.000000e+00 : f32
    %182 = vector.broadcast %cst_37 : f32 to vector<2x32xf32>
    %183 = arith.addf %182, %181 : vector<2x32xf32>
    %184 = arith.divf %182, %183 : vector<2x32xf32>
    %185 = vector.extract_strided_slice %172 {offsets = [0, 64], sizes = [2, 32], strides = [1, 1]} : vector<2x128xf32> to vector<2x32xf32>
    %186 = math.tanh %185 : vector<2x32xf32>
    %187 = vector.extract_strided_slice %172 {offsets = [0, 96], sizes = [2, 32], strides = [1, 1]} : vector<2x128xf32> to vector<2x32xf32>
    %188 = arith.negf %187 : vector<2x32xf32>
    %189 = math.exp %188 : vector<2x32xf32>
    %cst_38 = arith.constant 1.000000e+00 : f32
    %190 = vector.broadcast %cst_38 : f32 to vector<2x32xf32>
    %191 = arith.addf %190, %189 : vector<2x32xf32>
    %192 = arith.divf %190, %191 : vector<2x32xf32>
    %193 = arith.mulf %184, %163 : vector<2x32xf32>
    %194 = arith.mulf %178, %186 : vector<2x32xf32>
    %195 = arith.addf %193, %194 : vector<2x32xf32>
    %196 = math.tanh %195 : vector<2x32xf32>
    %197 = arith.mulf %192, %196 : vector<2x32xf32>
    %198 = vector.extract_strided_slice %0 {offsets = [6, 0, 0], sizes = [1, 2, 16], strides = [1, 1, 1]} : vector<8x2x16xf32> to vector<1x2x16xf32>
    %199 = vector.shape_cast %198 : vector<1x2x16xf32> to vector<2x16xf32>
    %cst_39 = arith.constant dense<0.000000e+00> : vector<2x128xf32>
    %200 = tpu.matmul %199, %1, %cst_39 {dimension_numbers = #tpu.dot_dimension_numbers<[1], [0], [0], [1], [0, 0, 1, 1], [], []>} : vector<2x16xf32>, vector<16x128xf32>, vector<2x128xf32> -> vector<2x128xf32>
    %cst_40 = arith.constant dense<0.000000e+00> : vector<2x128xf32>
    %201 = tpu.matmul %197, %2, %cst_40 {dimension_numbers = #tpu.dot_dimension_numbers<[1], [0], [0], [1], [0, 0, 1, 1], [], []>} : vector<2x32xf32>, vector<32x128xf32>, vector<2x128xf32> -> vector<2x128xf32>
    %202 = arith.addf %200, %201 : vector<2x128xf32>
    %203 = vector.broadcast %3 : vector<1x128xf32> to vector<2x128xf32>
    %204 = arith.addf %202, %203 : vector<2x128xf32>
    %205 = vector.extract_strided_slice %204 {offsets = [0, 0], sizes = [2, 32], strides = [1, 1]} : vector<2x128xf32> to vector<2x32xf32>
    %206 = arith.negf %205 : vector<2x32xf32>
    %207 = math.exp %206 : vector<2x32xf32>
    %cst_41 = arith.constant 1.000000e+00 : f32
    %208 = vector.broadcast %cst_41 : f32 to vector<2x32xf32>
    %209 = arith.addf %208, %207 : vector<2x32xf32>
    %210 = arith.divf %208, %209 : vector<2x32xf32>
    %211 = vector.extract_strided_slice %204 {offsets = [0, 32], sizes = [2, 32], strides = [1, 1]} : vector<2x128xf32> to vector<2x32xf32>
    %212 = arith.negf %211 : vector<2x32xf32>
    %213 = math.exp %212 : vector<2x32xf32>
    %cst_42 = arith.constant 1.000000e+00 : f32
    %214 = vector.broadcast %cst_42 : f32 to vector<2x32xf32>
    %215 = arith.addf %214, %213 : vector<2x32xf32>
    %216 = arith.divf %214, %215 : vector<2x32xf32>
    %217 = vector.extract_strided_slice %204 {offsets = [0, 64], sizes = [2, 32], strides = [1, 1]} : vector<2x128xf32> to vector<2x32xf32>
    %218 = math.tanh %217 : vector<2x32xf32>
    %219 = vector.extract_strided_slice %204 {offsets = [0, 96], sizes = [2, 32], strides = [1, 1]} : vector<2x128xf32> to vector<2x32xf32>
    %220 = arith.negf %219 : vector<2x32xf32>
    %221 = math.exp %220 : vector<2x32xf32>
    %cst_43 = arith.constant 1.000000e+00 : f32
    %222 = vector.broadcast %cst_43 : f32 to vector<2x32xf32>
    %223 = arith.addf %222, %221 : vector<2x32xf32>
    %224 = arith.divf %222, %223 : vector<2x32xf32>
    %225 = arith.mulf %216, %195 : vector<2x32xf32>
    %226 = arith.mulf %210, %218 : vector<2x32xf32>
    %227 = arith.addf %225, %226 : vector<2x32xf32>
    %228 = math.tanh %227 : vector<2x32xf32>
    %229 = arith.mulf %224, %228 : vector<2x32xf32>
    %230 = vector.extract_strided_slice %0 {offsets = [7, 0, 0], sizes = [1, 2, 16], strides = [1, 1, 1]} : vector<8x2x16xf32> to vector<1x2x16xf32>
    %231 = vector.shape_cast %230 : vector<1x2x16xf32> to vector<2x16xf32>
    %cst_44 = arith.constant dense<0.000000e+00> : vector<2x128xf32>
    %232 = tpu.matmul %231, %1, %cst_44 {dimension_numbers = #tpu.dot_dimension_numbers<[1], [0], [0], [1], [0, 0, 1, 1], [], []>} : vector<2x16xf32>, vector<16x128xf32>, vector<2x128xf32> -> vector<2x128xf32>
    %cst_45 = arith.constant dense<0.000000e+00> : vector<2x128xf32>
    %233 = tpu.matmul %229, %2, %cst_45 {dimension_numbers = #tpu.dot_dimension_numbers<[1], [0], [0], [1], [0, 0, 1, 1], [], []>} : vector<2x32xf32>, vector<32x128xf32>, vector<2x128xf32> -> vector<2x128xf32>
    %234 = arith.addf %232, %233 : vector<2x128xf32>
    %235 = vector.broadcast %3 : vector<1x128xf32> to vector<2x128xf32>
    %236 = arith.addf %234, %235 : vector<2x128xf32>
    %237 = vector.extract_strided_slice %236 {offsets = [0, 0], sizes = [2, 32], strides = [1, 1]} : vector<2x128xf32> to vector<2x32xf32>
    %238 = arith.negf %237 : vector<2x32xf32>
    %239 = math.exp %238 : vector<2x32xf32>
    %cst_46 = arith.constant 1.000000e+00 : f32
    %240 = vector.broadcast %cst_46 : f32 to vector<2x32xf32>
    %241 = arith.addf %240, %239 : vector<2x32xf32>
    %242 = arith.divf %240, %241 : vector<2x32xf32>
    %243 = vector.extract_strided_slice %236 {offsets = [0, 32], sizes = [2, 32], strides = [1, 1]} : vector<2x128xf32> to vector<2x32xf32>
    %244 = arith.negf %243 : vector<2x32xf32>
    %245 = math.exp %244 : vector<2x32xf32>
    %cst_47 = arith.constant 1.000000e+00 : f32
    %246 = vector.broadcast %cst_47 : f32 to vector<2x32xf32>
    %247 = arith.addf %246, %245 : vector<2x32xf32>
    %248 = arith.divf %246, %247 : vector<2x32xf32>
    %249 = vector.extract_strided_slice %236 {offsets = [0, 64], sizes = [2, 32], strides = [1, 1]} : vector<2x128xf32> to vector<2x32xf32>
    %250 = math.tanh %249 : vector<2x32xf32>
    %251 = vector.extract_strided_slice %236 {offsets = [0, 96], sizes = [2, 32], strides = [1, 1]} : vector<2x128xf32> to vector<2x32xf32>
    %252 = arith.negf %251 : vector<2x32xf32>
    %253 = math.exp %252 : vector<2x32xf32>
    %cst_48 = arith.constant 1.000000e+00 : f32
    %254 = vector.broadcast %cst_48 : f32 to vector<2x32xf32>
    %255 = arith.addf %254, %253 : vector<2x32xf32>
    %256 = arith.divf %254, %255 : vector<2x32xf32>
    %257 = arith.mulf %248, %227 : vector<2x32xf32>
    %258 = arith.mulf %242, %250 : vector<2x32xf32>
    %259 = arith.addf %257, %258 : vector<2x32xf32>
    %260 = math.tanh %259 : vector<2x32xf32>
    %261 = arith.mulf %256, %260 : vector<2x32xf32>
    %c0_49 = arith.constant 0 : index
    %c0_50 = arith.constant 0 : index
    %262 = vector.load %arg4[%c0_49, %c0_50] : memref<16x128xf32, #tpu.memory_space<vmem>>, vector<16x128xf32>
    %c0_51 = arith.constant 0 : index
    %c0_52 = arith.constant 0 : index
    %263 = vector.load %arg5[%c0_51, %c0_52] : memref<32x128xf32, #tpu.memory_space<vmem>>, vector<32x128xf32>
    %c0_53 = arith.constant 0 : index
    %c0_54 = arith.constant 0 : index
    %264 = vector.load %arg6[%c0_53, %c0_54] : memref<1x128xf32, #tpu.memory_space<vmem>>, vector<1x128xf32>
    %cst_55 = arith.constant 0.000000e+00 : f32
    %265 = vector.broadcast %cst_55 : f32 to vector<2x32xf32>
    %cst_56 = arith.constant 0.000000e+00 : f32
    %266 = vector.broadcast %cst_56 : f32 to vector<2x32xf32>
    %267 = vector.extract_strided_slice %0 {offsets = [7, 0, 0], sizes = [1, 2, 16], strides = [1, 1, 1]} : vector<8x2x16xf32> to vector<1x2x16xf32>
    %268 = vector.shape_cast %267 : vector<1x2x16xf32> to vector<2x16xf32>
    %cst_57 = arith.constant dense<0.000000e+00> : vector<2x128xf32>
    %269 = tpu.matmul %268, %262, %cst_57 {dimension_numbers = #tpu.dot_dimension_numbers<[1], [0], [0], [1], [0, 0, 1, 1], [], []>} : vector<2x16xf32>, vector<16x128xf32>, vector<2x128xf32> -> vector<2x128xf32>
    %cst_58 = arith.constant dense<0.000000e+00> : vector<2x128xf32>
    %270 = tpu.matmul %265, %263, %cst_58 {dimension_numbers = #tpu.dot_dimension_numbers<[1], [0], [0], [1], [0, 0, 1, 1], [], []>} : vector<2x32xf32>, vector<32x128xf32>, vector<2x128xf32> -> vector<2x128xf32>
    %271 = arith.addf %269, %270 : vector<2x128xf32>
    %272 = vector.broadcast %264 : vector<1x128xf32> to vector<2x128xf32>
    %273 = arith.addf %271, %272 : vector<2x128xf32>
    %274 = vector.extract_strided_slice %273 {offsets = [0, 0], sizes = [2, 32], strides = [1, 1]} : vector<2x128xf32> to vector<2x32xf32>
    %275 = arith.negf %274 : vector<2x32xf32>
    %276 = math.exp %275 : vector<2x32xf32>
    %cst_59 = arith.constant 1.000000e+00 : f32
    %277 = vector.broadcast %cst_59 : f32 to vector<2x32xf32>
    %278 = arith.addf %277, %276 : vector<2x32xf32>
    %279 = arith.divf %277, %278 : vector<2x32xf32>
    %280 = vector.extract_strided_slice %273 {offsets = [0, 32], sizes = [2, 32], strides = [1, 1]} : vector<2x128xf32> to vector<2x32xf32>
    %281 = arith.negf %280 : vector<2x32xf32>
    %282 = math.exp %281 : vector<2x32xf32>
    %cst_60 = arith.constant 1.000000e+00 : f32
    %283 = vector.broadcast %cst_60 : f32 to vector<2x32xf32>
    %284 = arith.addf %283, %282 : vector<2x32xf32>
    %285 = arith.divf %283, %284 : vector<2x32xf32>
    %286 = vector.extract_strided_slice %273 {offsets = [0, 64], sizes = [2, 32], strides = [1, 1]} : vector<2x128xf32> to vector<2x32xf32>
    %287 = math.tanh %286 : vector<2x32xf32>
    %288 = vector.extract_strided_slice %273 {offsets = [0, 96], sizes = [2, 32], strides = [1, 1]} : vector<2x128xf32> to vector<2x32xf32>
    %289 = arith.negf %288 : vector<2x32xf32>
    %290 = math.exp %289 : vector<2x32xf32>
    %cst_61 = arith.constant 1.000000e+00 : f32
    %291 = vector.broadcast %cst_61 : f32 to vector<2x32xf32>
    %292 = arith.addf %291, %290 : vector<2x32xf32>
    %293 = arith.divf %291, %292 : vector<2x32xf32>
    %294 = arith.mulf %285, %266 : vector<2x32xf32>
    %295 = arith.mulf %279, %287 : vector<2x32xf32>
    %296 = arith.addf %294, %295 : vector<2x32xf32>
    %297 = math.tanh %296 : vector<2x32xf32>
    %298 = arith.mulf %293, %297 : vector<2x32xf32>
    %299 = vector.extract_strided_slice %0 {offsets = [6, 0, 0], sizes = [1, 2, 16], strides = [1, 1, 1]} : vector<8x2x16xf32> to vector<1x2x16xf32>
    %300 = vector.shape_cast %299 : vector<1x2x16xf32> to vector<2x16xf32>
    %cst_62 = arith.constant dense<0.000000e+00> : vector<2x128xf32>
    %301 = tpu.matmul %300, %262, %cst_62 {dimension_numbers = #tpu.dot_dimension_numbers<[1], [0], [0], [1], [0, 0, 1, 1], [], []>} : vector<2x16xf32>, vector<16x128xf32>, vector<2x128xf32> -> vector<2x128xf32>
    %cst_63 = arith.constant dense<0.000000e+00> : vector<2x128xf32>
    %302 = tpu.matmul %298, %263, %cst_63 {dimension_numbers = #tpu.dot_dimension_numbers<[1], [0], [0], [1], [0, 0, 1, 1], [], []>} : vector<2x32xf32>, vector<32x128xf32>, vector<2x128xf32> -> vector<2x128xf32>
    %303 = arith.addf %301, %302 : vector<2x128xf32>
    %304 = vector.broadcast %264 : vector<1x128xf32> to vector<2x128xf32>
    %305 = arith.addf %303, %304 : vector<2x128xf32>
    %306 = vector.extract_strided_slice %305 {offsets = [0, 0], sizes = [2, 32], strides = [1, 1]} : vector<2x128xf32> to vector<2x32xf32>
    %307 = arith.negf %306 : vector<2x32xf32>
    %308 = math.exp %307 : vector<2x32xf32>
    %cst_64 = arith.constant 1.000000e+00 : f32
    %309 = vector.broadcast %cst_64 : f32 to vector<2x32xf32>
    %310 = arith.addf %309, %308 : vector<2x32xf32>
    %311 = arith.divf %309, %310 : vector<2x32xf32>
    %312 = vector.extract_strided_slice %305 {offsets = [0, 32], sizes = [2, 32], strides = [1, 1]} : vector<2x128xf32> to vector<2x32xf32>
    %313 = arith.negf %312 : vector<2x32xf32>
    %314 = math.exp %313 : vector<2x32xf32>
    %cst_65 = arith.constant 1.000000e+00 : f32
    %315 = vector.broadcast %cst_65 : f32 to vector<2x32xf32>
    %316 = arith.addf %315, %314 : vector<2x32xf32>
    %317 = arith.divf %315, %316 : vector<2x32xf32>
    %318 = vector.extract_strided_slice %305 {offsets = [0, 64], sizes = [2, 32], strides = [1, 1]} : vector<2x128xf32> to vector<2x32xf32>
    %319 = math.tanh %318 : vector<2x32xf32>
    %320 = vector.extract_strided_slice %305 {offsets = [0, 96], sizes = [2, 32], strides = [1, 1]} : vector<2x128xf32> to vector<2x32xf32>
    %321 = arith.negf %320 : vector<2x32xf32>
    %322 = math.exp %321 : vector<2x32xf32>
    %cst_66 = arith.constant 1.000000e+00 : f32
    %323 = vector.broadcast %cst_66 : f32 to vector<2x32xf32>
    %324 = arith.addf %323, %322 : vector<2x32xf32>
    %325 = arith.divf %323, %324 : vector<2x32xf32>
    %326 = arith.mulf %317, %296 : vector<2x32xf32>
    %327 = arith.mulf %311, %319 : vector<2x32xf32>
    %328 = arith.addf %326, %327 : vector<2x32xf32>
    %329 = math.tanh %328 : vector<2x32xf32>
    %330 = arith.mulf %325, %329 : vector<2x32xf32>
    %331 = vector.extract_strided_slice %0 {offsets = [5, 0, 0], sizes = [1, 2, 16], strides = [1, 1, 1]} : vector<8x2x16xf32> to vector<1x2x16xf32>
    %332 = vector.shape_cast %331 : vector<1x2x16xf32> to vector<2x16xf32>
    %cst_67 = arith.constant dense<0.000000e+00> : vector<2x128xf32>
    %333 = tpu.matmul %332, %262, %cst_67 {dimension_numbers = #tpu.dot_dimension_numbers<[1], [0], [0], [1], [0, 0, 1, 1], [], []>} : vector<2x16xf32>, vector<16x128xf32>, vector<2x128xf32> -> vector<2x128xf32>
    %cst_68 = arith.constant dense<0.000000e+00> : vector<2x128xf32>
    %334 = tpu.matmul %330, %263, %cst_68 {dimension_numbers = #tpu.dot_dimension_numbers<[1], [0], [0], [1], [0, 0, 1, 1], [], []>} : vector<2x32xf32>, vector<32x128xf32>, vector<2x128xf32> -> vector<2x128xf32>
    %335 = arith.addf %333, %334 : vector<2x128xf32>
    %336 = vector.broadcast %264 : vector<1x128xf32> to vector<2x128xf32>
    %337 = arith.addf %335, %336 : vector<2x128xf32>
    %338 = vector.extract_strided_slice %337 {offsets = [0, 0], sizes = [2, 32], strides = [1, 1]} : vector<2x128xf32> to vector<2x32xf32>
    %339 = arith.negf %338 : vector<2x32xf32>
    %340 = math.exp %339 : vector<2x32xf32>
    %cst_69 = arith.constant 1.000000e+00 : f32
    %341 = vector.broadcast %cst_69 : f32 to vector<2x32xf32>
    %342 = arith.addf %341, %340 : vector<2x32xf32>
    %343 = arith.divf %341, %342 : vector<2x32xf32>
    %344 = vector.extract_strided_slice %337 {offsets = [0, 32], sizes = [2, 32], strides = [1, 1]} : vector<2x128xf32> to vector<2x32xf32>
    %345 = arith.negf %344 : vector<2x32xf32>
    %346 = math.exp %345 : vector<2x32xf32>
    %cst_70 = arith.constant 1.000000e+00 : f32
    %347 = vector.broadcast %cst_70 : f32 to vector<2x32xf32>
    %348 = arith.addf %347, %346 : vector<2x32xf32>
    %349 = arith.divf %347, %348 : vector<2x32xf32>
    %350 = vector.extract_strided_slice %337 {offsets = [0, 64], sizes = [2, 32], strides = [1, 1]} : vector<2x128xf32> to vector<2x32xf32>
    %351 = math.tanh %350 : vector<2x32xf32>
    %352 = vector.extract_strided_slice %337 {offsets = [0, 96], sizes = [2, 32], strides = [1, 1]} : vector<2x128xf32> to vector<2x32xf32>
    %353 = arith.negf %352 : vector<2x32xf32>
    %354 = math.exp %353 : vector<2x32xf32>
    %cst_71 = arith.constant 1.000000e+00 : f32
    %355 = vector.broadcast %cst_71 : f32 to vector<2x32xf32>
    %356 = arith.addf %355, %354 : vector<2x32xf32>
    %357 = arith.divf %355, %356 : vector<2x32xf32>
    %358 = arith.mulf %349, %328 : vector<2x32xf32>
    %359 = arith.mulf %343, %351 : vector<2x32xf32>
    %360 = arith.addf %358, %359 : vector<2x32xf32>
    %361 = math.tanh %360 : vector<2x32xf32>
    %362 = arith.mulf %357, %361 : vector<2x32xf32>
    %363 = vector.extract_strided_slice %0 {offsets = [4, 0, 0], sizes = [1, 2, 16], strides = [1, 1, 1]} : vector<8x2x16xf32> to vector<1x2x16xf32>
    %364 = vector.shape_cast %363 : vector<1x2x16xf32> to vector<2x16xf32>
    %cst_72 = arith.constant dense<0.000000e+00> : vector<2x128xf32>
    %365 = tpu.matmul %364, %262, %cst_72 {dimension_numbers = #tpu.dot_dimension_numbers<[1], [0], [0], [1], [0, 0, 1, 1], [], []>} : vector<2x16xf32>, vector<16x128xf32>, vector<2x128xf32> -> vector<2x128xf32>
    %cst_73 = arith.constant dense<0.000000e+00> : vector<2x128xf32>
    %366 = tpu.matmul %362, %263, %cst_73 {dimension_numbers = #tpu.dot_dimension_numbers<[1], [0], [0], [1], [0, 0, 1, 1], [], []>} : vector<2x32xf32>, vector<32x128xf32>, vector<2x128xf32> -> vector<2x128xf32>
    %367 = arith.addf %365, %366 : vector<2x128xf32>
    %368 = vector.broadcast %264 : vector<1x128xf32> to vector<2x128xf32>
    %369 = arith.addf %367, %368 : vector<2x128xf32>
    %370 = vector.extract_strided_slice %369 {offsets = [0, 0], sizes = [2, 32], strides = [1, 1]} : vector<2x128xf32> to vector<2x32xf32>
    %371 = arith.negf %370 : vector<2x32xf32>
    %372 = math.exp %371 : vector<2x32xf32>
    %cst_74 = arith.constant 1.000000e+00 : f32
    %373 = vector.broadcast %cst_74 : f32 to vector<2x32xf32>
    %374 = arith.addf %373, %372 : vector<2x32xf32>
    %375 = arith.divf %373, %374 : vector<2x32xf32>
    %376 = vector.extract_strided_slice %369 {offsets = [0, 32], sizes = [2, 32], strides = [1, 1]} : vector<2x128xf32> to vector<2x32xf32>
    %377 = arith.negf %376 : vector<2x32xf32>
    %378 = math.exp %377 : vector<2x32xf32>
    %cst_75 = arith.constant 1.000000e+00 : f32
    %379 = vector.broadcast %cst_75 : f32 to vector<2x32xf32>
    %380 = arith.addf %379, %378 : vector<2x32xf32>
    %381 = arith.divf %379, %380 : vector<2x32xf32>
    %382 = vector.extract_strided_slice %369 {offsets = [0, 64], sizes = [2, 32], strides = [1, 1]} : vector<2x128xf32> to vector<2x32xf32>
    %383 = math.tanh %382 : vector<2x32xf32>
    %384 = vector.extract_strided_slice %369 {offsets = [0, 96], sizes = [2, 32], strides = [1, 1]} : vector<2x128xf32> to vector<2x32xf32>
    %385 = arith.negf %384 : vector<2x32xf32>
    %386 = math.exp %385 : vector<2x32xf32>
    %cst_76 = arith.constant 1.000000e+00 : f32
    %387 = vector.broadcast %cst_76 : f32 to vector<2x32xf32>
    %388 = arith.addf %387, %386 : vector<2x32xf32>
    %389 = arith.divf %387, %388 : vector<2x32xf32>
    %390 = arith.mulf %381, %360 : vector<2x32xf32>
    %391 = arith.mulf %375, %383 : vector<2x32xf32>
    %392 = arith.addf %390, %391 : vector<2x32xf32>
    %393 = math.tanh %392 : vector<2x32xf32>
    %394 = arith.mulf %389, %393 : vector<2x32xf32>
    %395 = vector.extract_strided_slice %0 {offsets = [3, 0, 0], sizes = [1, 2, 16], strides = [1, 1, 1]} : vector<8x2x16xf32> to vector<1x2x16xf32>
    %396 = vector.shape_cast %395 : vector<1x2x16xf32> to vector<2x16xf32>
    %cst_77 = arith.constant dense<0.000000e+00> : vector<2x128xf32>
    %397 = tpu.matmul %396, %262, %cst_77 {dimension_numbers = #tpu.dot_dimension_numbers<[1], [0], [0], [1], [0, 0, 1, 1], [], []>} : vector<2x16xf32>, vector<16x128xf32>, vector<2x128xf32> -> vector<2x128xf32>
    %cst_78 = arith.constant dense<0.000000e+00> : vector<2x128xf32>
    %398 = tpu.matmul %394, %263, %cst_78 {dimension_numbers = #tpu.dot_dimension_numbers<[1], [0], [0], [1], [0, 0, 1, 1], [], []>} : vector<2x32xf32>, vector<32x128xf32>, vector<2x128xf32> -> vector<2x128xf32>
    %399 = arith.addf %397, %398 : vector<2x128xf32>
    %400 = vector.broadcast %264 : vector<1x128xf32> to vector<2x128xf32>
    %401 = arith.addf %399, %400 : vector<2x128xf32>
    %402 = vector.extract_strided_slice %401 {offsets = [0, 0], sizes = [2, 32], strides = [1, 1]} : vector<2x128xf32> to vector<2x32xf32>
    %403 = arith.negf %402 : vector<2x32xf32>
    %404 = math.exp %403 : vector<2x32xf32>
    %cst_79 = arith.constant 1.000000e+00 : f32
    %405 = vector.broadcast %cst_79 : f32 to vector<2x32xf32>
    %406 = arith.addf %405, %404 : vector<2x32xf32>
    %407 = arith.divf %405, %406 : vector<2x32xf32>
    %408 = vector.extract_strided_slice %401 {offsets = [0, 32], sizes = [2, 32], strides = [1, 1]} : vector<2x128xf32> to vector<2x32xf32>
    %409 = arith.negf %408 : vector<2x32xf32>
    %410 = math.exp %409 : vector<2x32xf32>
    %cst_80 = arith.constant 1.000000e+00 : f32
    %411 = vector.broadcast %cst_80 : f32 to vector<2x32xf32>
    %412 = arith.addf %411, %410 : vector<2x32xf32>
    %413 = arith.divf %411, %412 : vector<2x32xf32>
    %414 = vector.extract_strided_slice %401 {offsets = [0, 64], sizes = [2, 32], strides = [1, 1]} : vector<2x128xf32> to vector<2x32xf32>
    %415 = math.tanh %414 : vector<2x32xf32>
    %416 = vector.extract_strided_slice %401 {offsets = [0, 96], sizes = [2, 32], strides = [1, 1]} : vector<2x128xf32> to vector<2x32xf32>
    %417 = arith.negf %416 : vector<2x32xf32>
    %418 = math.exp %417 : vector<2x32xf32>
    %cst_81 = arith.constant 1.000000e+00 : f32
    %419 = vector.broadcast %cst_81 : f32 to vector<2x32xf32>
    %420 = arith.addf %419, %418 : vector<2x32xf32>
    %421 = arith.divf %419, %420 : vector<2x32xf32>
    %422 = arith.mulf %413, %392 : vector<2x32xf32>
    %423 = arith.mulf %407, %415 : vector<2x32xf32>
    %424 = arith.addf %422, %423 : vector<2x32xf32>
    %425 = math.tanh %424 : vector<2x32xf32>
    %426 = arith.mulf %421, %425 : vector<2x32xf32>
    %427 = vector.extract_strided_slice %0 {offsets = [2, 0, 0], sizes = [1, 2, 16], strides = [1, 1, 1]} : vector<8x2x16xf32> to vector<1x2x16xf32>
    %428 = vector.shape_cast %427 : vector<1x2x16xf32> to vector<2x16xf32>
    %cst_82 = arith.constant dense<0.000000e+00> : vector<2x128xf32>
    %429 = tpu.matmul %428, %262, %cst_82 {dimension_numbers = #tpu.dot_dimension_numbers<[1], [0], [0], [1], [0, 0, 1, 1], [], []>} : vector<2x16xf32>, vector<16x128xf32>, vector<2x128xf32> -> vector<2x128xf32>
    %cst_83 = arith.constant dense<0.000000e+00> : vector<2x128xf32>
    %430 = tpu.matmul %426, %263, %cst_83 {dimension_numbers = #tpu.dot_dimension_numbers<[1], [0], [0], [1], [0, 0, 1, 1], [], []>} : vector<2x32xf32>, vector<32x128xf32>, vector<2x128xf32> -> vector<2x128xf32>
    %431 = arith.addf %429, %430 : vector<2x128xf32>
    %432 = vector.broadcast %264 : vector<1x128xf32> to vector<2x128xf32>
    %433 = arith.addf %431, %432 : vector<2x128xf32>
    %434 = vector.extract_strided_slice %433 {offsets = [0, 0], sizes = [2, 32], strides = [1, 1]} : vector<2x128xf32> to vector<2x32xf32>
    %435 = arith.negf %434 : vector<2x32xf32>
    %436 = math.exp %435 : vector<2x32xf32>
    %cst_84 = arith.constant 1.000000e+00 : f32
    %437 = vector.broadcast %cst_84 : f32 to vector<2x32xf32>
    %438 = arith.addf %437, %436 : vector<2x32xf32>
    %439 = arith.divf %437, %438 : vector<2x32xf32>
    %440 = vector.extract_strided_slice %433 {offsets = [0, 32], sizes = [2, 32], strides = [1, 1]} : vector<2x128xf32> to vector<2x32xf32>
    %441 = arith.negf %440 : vector<2x32xf32>
    %442 = math.exp %441 : vector<2x32xf32>
    %cst_85 = arith.constant 1.000000e+00 : f32
    %443 = vector.broadcast %cst_85 : f32 to vector<2x32xf32>
    %444 = arith.addf %443, %442 : vector<2x32xf32>
    %445 = arith.divf %443, %444 : vector<2x32xf32>
    %446 = vector.extract_strided_slice %433 {offsets = [0, 64], sizes = [2, 32], strides = [1, 1]} : vector<2x128xf32> to vector<2x32xf32>
    %447 = math.tanh %446 : vector<2x32xf32>
    %448 = vector.extract_strided_slice %433 {offsets = [0, 96], sizes = [2, 32], strides = [1, 1]} : vector<2x128xf32> to vector<2x32xf32>
    %449 = arith.negf %448 : vector<2x32xf32>
    %450 = math.exp %449 : vector<2x32xf32>
    %cst_86 = arith.constant 1.000000e+00 : f32
    %451 = vector.broadcast %cst_86 : f32 to vector<2x32xf32>
    %452 = arith.addf %451, %450 : vector<2x32xf32>
    %453 = arith.divf %451, %452 : vector<2x32xf32>
    %454 = arith.mulf %445, %424 : vector<2x32xf32>
    %455 = arith.mulf %439, %447 : vector<2x32xf32>
    %456 = arith.addf %454, %455 : vector<2x32xf32>
    %457 = math.tanh %456 : vector<2x32xf32>
    %458 = arith.mulf %453, %457 : vector<2x32xf32>
    %459 = vector.extract_strided_slice %0 {offsets = [1, 0, 0], sizes = [1, 2, 16], strides = [1, 1, 1]} : vector<8x2x16xf32> to vector<1x2x16xf32>
    %460 = vector.shape_cast %459 : vector<1x2x16xf32> to vector<2x16xf32>
    %cst_87 = arith.constant dense<0.000000e+00> : vector<2x128xf32>
    %461 = tpu.matmul %460, %262, %cst_87 {dimension_numbers = #tpu.dot_dimension_numbers<[1], [0], [0], [1], [0, 0, 1, 1], [], []>} : vector<2x16xf32>, vector<16x128xf32>, vector<2x128xf32> -> vector<2x128xf32>
    %cst_88 = arith.constant dense<0.000000e+00> : vector<2x128xf32>
    %462 = tpu.matmul %458, %263, %cst_88 {dimension_numbers = #tpu.dot_dimension_numbers<[1], [0], [0], [1], [0, 0, 1, 1], [], []>} : vector<2x32xf32>, vector<32x128xf32>, vector<2x128xf32> -> vector<2x128xf32>
    %463 = arith.addf %461, %462 : vector<2x128xf32>
    %464 = vector.broadcast %264 : vector<1x128xf32> to vector<2x128xf32>
    %465 = arith.addf %463, %464 : vector<2x128xf32>
    %466 = vector.extract_strided_slice %465 {offsets = [0, 0], sizes = [2, 32], strides = [1, 1]} : vector<2x128xf32> to vector<2x32xf32>
    %467 = arith.negf %466 : vector<2x32xf32>
    %468 = math.exp %467 : vector<2x32xf32>
    %cst_89 = arith.constant 1.000000e+00 : f32
    %469 = vector.broadcast %cst_89 : f32 to vector<2x32xf32>
    %470 = arith.addf %469, %468 : vector<2x32xf32>
    %471 = arith.divf %469, %470 : vector<2x32xf32>
    %472 = vector.extract_strided_slice %465 {offsets = [0, 32], sizes = [2, 32], strides = [1, 1]} : vector<2x128xf32> to vector<2x32xf32>
    %473 = arith.negf %472 : vector<2x32xf32>
    %474 = math.exp %473 : vector<2x32xf32>
    %cst_90 = arith.constant 1.000000e+00 : f32
    %475 = vector.broadcast %cst_90 : f32 to vector<2x32xf32>
    %476 = arith.addf %475, %474 : vector<2x32xf32>
    %477 = arith.divf %475, %476 : vector<2x32xf32>
    %478 = vector.extract_strided_slice %465 {offsets = [0, 64], sizes = [2, 32], strides = [1, 1]} : vector<2x128xf32> to vector<2x32xf32>
    %479 = math.tanh %478 : vector<2x32xf32>
    %480 = vector.extract_strided_slice %465 {offsets = [0, 96], sizes = [2, 32], strides = [1, 1]} : vector<2x128xf32> to vector<2x32xf32>
    %481 = arith.negf %480 : vector<2x32xf32>
    %482 = math.exp %481 : vector<2x32xf32>
    %cst_91 = arith.constant 1.000000e+00 : f32
    %483 = vector.broadcast %cst_91 : f32 to vector<2x32xf32>
    %484 = arith.addf %483, %482 : vector<2x32xf32>
    %485 = arith.divf %483, %484 : vector<2x32xf32>
    %486 = arith.mulf %477, %456 : vector<2x32xf32>
    %487 = arith.mulf %471, %479 : vector<2x32xf32>
    %488 = arith.addf %486, %487 : vector<2x32xf32>
    %489 = math.tanh %488 : vector<2x32xf32>
    %490 = arith.mulf %485, %489 : vector<2x32xf32>
    %491 = vector.extract_strided_slice %0 {offsets = [0, 0, 0], sizes = [1, 2, 16], strides = [1, 1, 1]} : vector<8x2x16xf32> to vector<1x2x16xf32>
    %492 = vector.shape_cast %491 : vector<1x2x16xf32> to vector<2x16xf32>
    %cst_92 = arith.constant dense<0.000000e+00> : vector<2x128xf32>
    %493 = tpu.matmul %492, %262, %cst_92 {dimension_numbers = #tpu.dot_dimension_numbers<[1], [0], [0], [1], [0, 0, 1, 1], [], []>} : vector<2x16xf32>, vector<16x128xf32>, vector<2x128xf32> -> vector<2x128xf32>
    %cst_93 = arith.constant dense<0.000000e+00> : vector<2x128xf32>
    %494 = tpu.matmul %490, %263, %cst_93 {dimension_numbers = #tpu.dot_dimension_numbers<[1], [0], [0], [1], [0, 0, 1, 1], [], []>} : vector<2x32xf32>, vector<32x128xf32>, vector<2x128xf32> -> vector<2x128xf32>
    %495 = arith.addf %493, %494 : vector<2x128xf32>
    %496 = vector.broadcast %264 : vector<1x128xf32> to vector<2x128xf32>
    %497 = arith.addf %495, %496 : vector<2x128xf32>
    %498 = vector.extract_strided_slice %497 {offsets = [0, 0], sizes = [2, 32], strides = [1, 1]} : vector<2x128xf32> to vector<2x32xf32>
    %499 = arith.negf %498 : vector<2x32xf32>
    %500 = math.exp %499 : vector<2x32xf32>
    %cst_94 = arith.constant 1.000000e+00 : f32
    %501 = vector.broadcast %cst_94 : f32 to vector<2x32xf32>
    %502 = arith.addf %501, %500 : vector<2x32xf32>
    %503 = arith.divf %501, %502 : vector<2x32xf32>
    %504 = vector.extract_strided_slice %497 {offsets = [0, 32], sizes = [2, 32], strides = [1, 1]} : vector<2x128xf32> to vector<2x32xf32>
    %505 = arith.negf %504 : vector<2x32xf32>
    %506 = math.exp %505 : vector<2x32xf32>
    %cst_95 = arith.constant 1.000000e+00 : f32
    %507 = vector.broadcast %cst_95 : f32 to vector<2x32xf32>
    %508 = arith.addf %507, %506 : vector<2x32xf32>
    %509 = arith.divf %507, %508 : vector<2x32xf32>
    %510 = vector.extract_strided_slice %497 {offsets = [0, 64], sizes = [2, 32], strides = [1, 1]} : vector<2x128xf32> to vector<2x32xf32>
    %511 = math.tanh %510 : vector<2x32xf32>
    %512 = vector.extract_strided_slice %497 {offsets = [0, 96], sizes = [2, 32], strides = [1, 1]} : vector<2x128xf32> to vector<2x32xf32>
    %513 = arith.negf %512 : vector<2x32xf32>
    %514 = math.exp %513 : vector<2x32xf32>
    %cst_96 = arith.constant 1.000000e+00 : f32
    %515 = vector.broadcast %cst_96 : f32 to vector<2x32xf32>
    %516 = arith.addf %515, %514 : vector<2x32xf32>
    %517 = arith.divf %515, %516 : vector<2x32xf32>
    %518 = arith.mulf %509, %488 : vector<2x32xf32>
    %519 = arith.mulf %503, %511 : vector<2x32xf32>
    %520 = arith.addf %518, %519 : vector<2x32xf32>
    %521 = math.tanh %520 : vector<2x32xf32>
    %522 = arith.mulf %517, %521 : vector<2x32xf32>
    %523 = tpu.concatenate %37, %522 in 1 : vector<2x32xf32>, vector<2x32xf32> -> vector<2x64xf32>
    %c0_97 = arith.constant 0 : index
    %c0_98 = arith.constant 0 : index
    %c0_99 = arith.constant 0 : index
    %524 = vector.load %arg7[%c0_97, %c0_98, %c0_99] : memref<8x2x64xf32, #tpu.memory_space<vmem>>, vector<1x2x64xf32>
    %525 = vector.shape_cast %524 : vector<1x2x64xf32> to vector<2x64xf32>
    %526 = vector.shape_cast %523 : vector<2x64xf32> to vector<1x2x64xf32>
    tpu.vector_store %arg7[%c0_97, %c0_98, %c0_99], %526 {strides = array<i32>} : memref<8x2x64xf32, #tpu.memory_space<vmem>>, vector<1x2x64xf32>,
    %527 = tpu.concatenate %69, %490 in 1 : vector<2x32xf32>, vector<2x32xf32> -> vector<2x64xf32>
    %c1 = arith.constant 1 : index
    %c0_100 = arith.constant 0 : index
    %c0_101 = arith.constant 0 : index
    %528 = vector.load %arg7[%c1, %c0_100, %c0_101] : memref<8x2x64xf32, #tpu.memory_space<vmem>>, vector<1x2x64xf32>
    %529 = vector.shape_cast %528 : vector<1x2x64xf32> to vector<2x64xf32>
    %530 = vector.shape_cast %527 : vector<2x64xf32> to vector<1x2x64xf32>
    tpu.vector_store %arg7[%c1, %c0_100, %c0_101], %530 {strides = array<i32>} : memref<8x2x64xf32, #tpu.memory_space<vmem>>, vector<1x2x64xf32>,
    %531 = tpu.concatenate %101, %458 in 1 : vector<2x32xf32>, vector<2x32xf32> -> vector<2x64xf32>
    %c2 = arith.constant 2 : index
    %c0_102 = arith.constant 0 : index
    %c0_103 = arith.constant 0 : index
    %532 = vector.load %arg7[%c2, %c0_102, %c0_103] : memref<8x2x64xf32, #tpu.memory_space<vmem>>, vector<1x2x64xf32>
    %533 = vector.shape_cast %532 : vector<1x2x64xf32> to vector<2x64xf32>
    %534 = vector.shape_cast %531 : vector<2x64xf32> to vector<1x2x64xf32>
    tpu.vector_store %arg7[%c2, %c0_102, %c0_103], %534 {strides = array<i32>} : memref<8x2x64xf32, #tpu.memory_space<vmem>>, vector<1x2x64xf32>,
    %535 = tpu.concatenate %133, %426 in 1 : vector<2x32xf32>, vector<2x32xf32> -> vector<2x64xf32>
    %c3 = arith.constant 3 : index
    %c0_104 = arith.constant 0 : index
    %c0_105 = arith.constant 0 : index
    %536 = vector.load %arg7[%c3, %c0_104, %c0_105] : memref<8x2x64xf32, #tpu.memory_space<vmem>>, vector<1x2x64xf32>
    %537 = vector.shape_cast %536 : vector<1x2x64xf32> to vector<2x64xf32>
    %538 = vector.shape_cast %535 : vector<2x64xf32> to vector<1x2x64xf32>
    tpu.vector_store %arg7[%c3, %c0_104, %c0_105], %538 {strides = array<i32>} : memref<8x2x64xf32, #tpu.memory_space<vmem>>, vector<1x2x64xf32>,
    %539 = tpu.concatenate %165, %394 in 1 : vector<2x32xf32>, vector<2x32xf32> -> vector<2x64xf32>
    %c4 = arith.constant 4 : index
    %c0_106 = arith.constant 0 : index
    %c0_107 = arith.constant 0 : index
    %540 = vector.load %arg7[%c4, %c0_106, %c0_107] : memref<8x2x64xf32, #tpu.memory_space<vmem>>, vector<1x2x64xf32>
    %541 = vector.shape_cast %540 : vector<1x2x64xf32> to vector<2x64xf32>
    %542 = vector.shape_cast %539 : vector<2x64xf32> to vector<1x2x64xf32>
    tpu.vector_store %arg7[%c4, %c0_106, %c0_107], %542 {strides = array<i32>} : memref<8x2x64xf32, #tpu.memory_space<vmem>>, vector<1x2x64xf32>,
    %543 = tpu.concatenate %197, %362 in 1 : vector<2x32xf32>, vector<2x32xf32> -> vector<2x64xf32>
    %c5 = arith.constant 5 : index
    %c0_108 = arith.constant 0 : index
    %c0_109 = arith.constant 0 : index
    %544 = vector.load %arg7[%c5, %c0_108, %c0_109] : memref<8x2x64xf32, #tpu.memory_space<vmem>>, vector<1x2x64xf32>
    %545 = vector.shape_cast %544 : vector<1x2x64xf32> to vector<2x64xf32>
    %546 = vector.shape_cast %543 : vector<2x64xf32> to vector<1x2x64xf32>
    tpu.vector_store %arg7[%c5, %c0_108, %c0_109], %546 {strides = array<i32>} : memref<8x2x64xf32, #tpu.memory_space<vmem>>, vector<1x2x64xf32>,
    %547 = tpu.concatenate %229, %330 in 1 : vector<2x32xf32>, vector<2x32xf32> -> vector<2x64xf32>
    %c6 = arith.constant 6 : index
    %c0_110 = arith.constant 0 : index
    %c0_111 = arith.constant 0 : index
    %548 = vector.load %arg7[%c6, %c0_110, %c0_111] : memref<8x2x64xf32, #tpu.memory_space<vmem>>, vector<1x2x64xf32>
    %549 = vector.shape_cast %548 : vector<1x2x64xf32> to vector<2x64xf32>
    %550 = vector.shape_cast %547 : vector<2x64xf32> to vector<1x2x64xf32>
    tpu.vector_store %arg7[%c6, %c0_110, %c0_111], %550 {strides = array<i32>} : memref<8x2x64xf32, #tpu.memory_space<vmem>>, vector<1x2x64xf32>,
    %551 = tpu.concatenate %261, %298 in 1 : vector<2x32xf32>, vector<2x32xf32> -> vector<2x64xf32>
    %c7 = arith.constant 7 : index
    %c0_112 = arith.constant 0 : index
    %c0_113 = arith.constant 0 : index
    %552 = vector.load %arg7[%c7, %c0_112, %c0_113] : memref<8x2x64xf32, #tpu.memory_space<vmem>>, vector<1x2x64xf32>
    %553 = vector.shape_cast %552 : vector<1x2x64xf32> to vector<2x64xf32>
    %554 = vector.shape_cast %551 : vector<2x64xf32> to vector<1x2x64xf32>
    tpu.vector_store %arg7[%c7, %c0_112, %c0_113], %554 {strides = array<i32>} : memref<8x2x64xf32, #tpu.memory_space<vmem>>, vector<1x2x64xf32>,
    return
  }
}

</mosaic_0001>

<llo_original>
// kernel: tpu_custom_call.1
$region0: #{tpu_custom_call.1}
  #allocation0 [shape = 'u32[]', space=smem, size = 0x4, offset = 0x4, fixed_abs, tag = 'smem constant byte address 0x4 - core index']
  #allocation1 [shape = 'u32[144,128]{1,0:T(1,128)}', space=vmem, size = 0x12000, scoped, tag = 'internal scratch']
  %s0 = inlined_call_operand.hbm [shape: f32[8,2,16], index: 0, kind: input, shape index: {}]
  %s1 = inlined_call_operand.hbm [shape: f32[16,128], index: 1, kind: input, shape index: {}]
  %s2 = inlined_call_operand.hbm [shape: f32[32,128], index: 2, kind: input, shape index: {}]
  %s3 = inlined_call_operand.vmem [shape: f32[1,128], index: 3, kind: input, shape index: {}]
  %s4 = inlined_call_operand.hbm [shape: f32[16,128], index: 4, kind: input, shape index: {}]
  %s5 = inlined_call_operand.hbm [shape: f32[32,128], index: 5, kind: input, shape index: {}]
  %s6 = inlined_call_operand.vmem [shape: f32[1,128], index: 6, kind: input, shape index: {}]
  %s7 = inlined_call_operand.hbm [shape: f32[8,2,64], index: 7, kind: output, shape index: {}]
  %s8 = sld [smem:[#allocation0]]
  $region58: #{tpu_custom_call.1} parent=0
    _
  %s10 = ssub.s32 1, %s8
  %s11 = scalar_select 0, %s10, %s8
  $region1: #{tpu_custom_call.1} parent=0
    #allocation2 [shape = 'u8[8192]{0}', space=vmem, size = 0x2000, scoped, tag = 'input window, operand 0, single buffered']
    #allocation3 [shape = 's32[1]{0}', space=sflag, size = 0x4, scoped, tag = 'scoped memory for tpu_custom_call.1']
    #allocation4 [shape = 's32[1]{0}', space=sflag, size = 0x4, scoped, tag = 'scoped memory for tpu_custom_call.1']
    #allocation5 [shape = 'u8[8192]{0}', space=vmem, size = 0x2000, scoped, tag = 'input window, operand 1, single buffered']
    #allocation6 [shape = 's32[1]{0}', space=sflag, size = 0x4, scoped, tag = 'scoped memory for tpu_custom_call.1']
    #allocation7 [shape = 'u8[16384]{0}', space=vmem, size = 0x4000, scoped, tag = 'input window, operand 2, single buffered']
    #allocation8 [shape = 'u8[8192]{0}', space=vmem, size = 0x2000, scoped, tag = 'input window, operand 4, single buffered']
    #allocation9 [shape = 's32[1]{0}', space=sflag, size = 0x4, scoped, tag = 'scoped memory for tpu_custom_call.1']
    #allocation10 [shape = 'u8[16384]{0}', space=vmem, size = 0x4000, scoped, tag = 'input window, operand 5, single buffered']
    #allocation11 [shape = 'u8[8192]{0}', space=vmem, size = 0x2000, scoped, tag = 'output window, operand 0, single buffered']
    %12 = vsyncpa [#allocation3], 0
    %13 = vsyncpa [#allocation6], 0
    %14 = vsyncpa [#allocation9], 0
    %15 = vsyncpa [#allocation4], 0
    // Predicated region
    $region2: #{tpu_custom_call.1} parent=1 // pred_check
      _
    $region3: #{tpu_custom_call.1} parent=1 // pred_check_branch
      %17 = sbr.rel (0) target = $region5
    $region4: #{tpu_custom_call.1} parent=1 // pred_region
      %s19 = ssub.s32 256, 256
      %20 = vsyncadd [#allocation3], %s19
      %s21 = sshll.u32 [#allocation2], 4
      %s22 = int_to_ptr.vmem [resolvable:$true] %s21
      %27 = dma.hbm_to_vmem [thread:$0]  %s0, 256, %s22, [#allocation3], 32, 32, 2
    $region5: #{tpu_custom_call.1} parent=1 // pred_fallthru
      _
    // Predicated region
    $region6: #{tpu_custom_call.1} parent=1 // pred_check
      _
    $region7: #{tpu_custom_call.1} parent=1 // pred_check_branch
      %29 = sbr.rel (0) target = $region9
    $region8: #{tpu_custom_call.1} parent=1 // pred_region
      %s31 = ssub.s32 256, 256
      %32 = vsyncadd [#allocation6], %s31
      %s33 = sshll.u32 [#allocation5], 4
      %s34 = int_to_ptr.vmem [resolvable:$true] %s33
      %39 = dma.hbm_to_vmem [thread:$0]  %s1, 256, %s34, [#allocation6], 128, 128, 8
    $region9: #{tpu_custom_call.1} parent=1 // pred_fallthru
      _
    // Predicated region
    $region10: #{tpu_custom_call.1} parent=1 // pred_check
      _
    $region11: #{tpu_custom_call.1} parent=1 // pred_check_branch
      %41 = sbr.rel (0) target = $region13
    $region12: #{tpu_custom_call.1} parent=1 // pred_region
      %s43 = ssub.s32 512, 512
      %44 = vsyncadd [#allocation6], %s43
      %s45 = sshll.u32 [#allocation7], 4
      %s46 = int_to_ptr.vmem [resolvable:$true] %s45
      %51 = dma.hbm_to_vmem [thread:$0]  %s2, 512, %s46, [#allocation6], 128, 128, 8
    $region13: #{tpu_custom_call.1} parent=1 // pred_fallthru
      _
    // Predicated region
    $region14: #{tpu_custom_call.1} parent=1 // pred_check
      _
    $region15: #{tpu_custom_call.1} parent=1 // pred_check_branch
      %53 = sbr.rel (0) target = $region17
    $region16: #{tpu_custom_call.1} parent=1 // pred_region
      _
    $region17: #{tpu_custom_call.1} parent=1 // pred_fallthru
      _
    // Predicated region
    $region18: #{tpu_custom_call.1} parent=1 // pred_check
      _
    $region19: #{tpu_custom_call.1} parent=1 // pred_check_branch
      %55 = sbr.rel (0) target = $region21
    $region20: #{tpu_custom_call.1} parent=1 // pred_region
      %s57 = ssub.s32 256, 256
      %58 = vsyncadd [#allocation9], %s57
      %s59 = sshll.u32 [#allocation8], 4
      %s60 = int_to_ptr.vmem [resolvable:$true] %s59
      %65 = dma.hbm_to_vmem [thread:$0]  %s4, 256, %s60, [#allocation9], 128, 128, 8
    $region21: #{tpu_custom_call.1} parent=1 // pred_fallthru
      _
    // Predicated region
    $region22: #{tpu_custom_call.1} parent=1 // pred_check
      _
    $region23: #{tpu_custom_call.1} parent=1 // pred_check_branch
      %67 = sbr.rel (0) target = $region25
    $region24: #{tpu_custom_call.1} parent=1 // pred_region
      %s69 = ssub.s32 512, 512
      %70 = vsyncadd [#allocation9], %s69
      %s71 = sshll.u32 [#allocation10], 4
      %s72 = int_to_ptr.vmem [resolvable:$true] %s71
      %77 = dma.hbm_to_vmem [thread:$0]  %s5, 512, %s72, [#allocation9], 128, 128, 8
    $region25: #{tpu_custom_call.1} parent=1 // pred_fallthru
      _
    // Predicated region
    $region26: #{tpu_custom_call.1} parent=1 // pred_check
      _
    $region27: #{tpu_custom_call.1} parent=1 // pred_check_branch
      %79 = sbr.rel (0) target = $region29
    $region28: #{tpu_custom_call.1} parent=1 // pred_region
      _
    $region29: #{tpu_custom_call.1} parent=1 // pred_fallthru
      _
    // Predicated region
    $region30: #{tpu_custom_call.1} parent=1 // pred_check
      _
    $region31: #{tpu_custom_call.1} parent=1 // pred_check_branch
      %81 = sbr.rel (0) target = $region33
    $region32: #{tpu_custom_call.1} parent=1 // pred_region
      %82 = dma.done [#allocation3], 256
    $region33: #{tpu_custom_call.1} parent=1 // pred_fallthru
      _
    // Predicated region
    $region34: #{tpu_custom_call.1} parent=1 // pred_check
      _
    $region35: #{tpu_custom_call.1} parent=1 // pred_check_branch
      %84 = sbr.rel (0) target = $region37
    $region36: #{tpu_custom_call.1} parent=1 // pred_region
      %85 = dma.done [#allocation6], 256
    $region37: #{tpu_custom_call.1} parent=1 // pred_fallthru
      _
    // Predicated region
    $region38: #{tpu_custom_call.1} parent=1 // pred_check
      _
    $region39: #{tpu_custom_call.1} parent=1 // pred_check_branch
      %87 = sbr.rel (0) target = $region41
    $region40: #{tpu_custom_call.1} parent=1 // pred_region
      %88 = dma.done [#allocation6], 512
    $region41: #{tpu_custom_call.1} parent=1 // pred_fallthru
      _
    // Predicated region
    $region42: #{tpu_custom_call.1} parent=1 // pred_check
      _
    $region43: #{tpu_custom_call.1} parent=1 // pred_check_branch
      %90 = sbr.rel (0) target = $region45
    $region44: #{tpu_custom_call.1} parent=1 // pred_region
      %91 = dma.done [#allocation9], 256
    $region45: #{tpu_custom_call.1} parent=1 // pred_fallthru
      _
    // Predicated region
    $region46: #{tpu_custom_call.1} parent=1 // pred_check
      _
    $region47: #{tpu_custom_call.1} parent=1 // pred_check_branch
      %93 = sbr.rel (0) target = $region49
    $region48: #{tpu_custom_call.1} parent=1 // pred_region
      %94 = dma.done [#allocation9], 512
    $region49: #{tpu_custom_call.1} parent=1 // pred_fallthru
      _
    %v95 = vld [vmem:[#allocation2] sm:$0x3]
    %v96 = vld [vmem:[#allocation2 + $0x2] sm:$0x3]
    %v97 = vld [vmem:[#allocation2 + $0x4] sm:$0x3]
    %v98 = vld [vmem:[#allocation2 + $0x6] sm:$0x3]
    %v99 = vld [vmem:[#allocation2 + $0x8] sm:$0x3]
    %v100 = vld [vmem:[#allocation2 + $0xa] sm:$0x3]
    %v101 = vld [vmem:[#allocation2 + $0xc] sm:$0x3]
    %v102 = vld [vmem:[#allocation2 + $0xe] sm:$0x3]
    %v103 = vld [vmem:[#allocation5] sm:$0xff]
    %v104 = vld [vmem:[#allocation5 + $0x8] sm:$0xff]
    %v105 = vld [vmem:[#allocation7] sm:$0xff]
    %v106 = vld [vmem:[#allocation7 + $0x8] sm:$0xff]
    %v107 = vld [vmem:[#allocation7 + $0x10] sm:$0xff]
    %v108 = vld [vmem:[#allocation7 + $0x18] sm:$0xff]
    %v109 = vld [vmem:[%s3] sm:$0x1]
    %vm110 = vcmask 261120
    %v112 = vsel %vm110, 0.0, 0
    %114 = vmatprep.subr.mxu0 0.0
    %115 = vmatpush1.msra.mxu0 %v105
    %116 = vmatprep.subr.mxu0 0.0
    %117 = vmatpush1.msra.mxu0 %v106
    %118 = vmatprep.subr.mxu0 0.0
    %119 = vmatpush1.msra.mxu0 %v107
    %120 = vmatprep.subr.mxu0 0.0
    %121 = vmatpush1.msra.mxu0 %v108
    %122 = vmatprep.subr.mxu0 0.0
    %123 = vmatpush1.msra.mxu0 0.0
    %124 = vmatprep.subr.mxu0 0.0
    %125 = vmatpush1.msra.mxu0 0.0
    %126 = vmatprep.subr.mxu0 0.0
    %127 = vmatpush1.msra.mxu0 0.0
    %128 = vmatprep.subr.mxu0 0.0
    %129 = vmatpush1.msra.mxu0 0.0
    %130 = vmatprep.subr.mxu0 0.0
    %131 = vmatpush1.msra.mxu0 0.0
    %132 = vmatprep.subr.mxu0 0.0
    %133 = vmatpush1.msra.mxu0 0.0
    %134 = vmatprep.subr.mxu0 0.0
    %135 = vmatpush1.msra.mxu0 0.0
    %136 = vmatprep.subr.mxu0 0.0
    %137 = vmatpush1.msra.mxu0 0.0
    %138 = vmatprep.subr.mxu0 0.0
    %139 = vmatpush1.msra.mxu0 0.0
    %140 = vmatprep.subr.mxu0 0.0
    %141 = vmatpush1.msra.mxu0 0.0
    %142 = vmatprep.subr.mxu0 0.0
    %143 = vmatpush1.msra.mxu0 0.0
    %144 = vmatprep.subr.mxu0 0.0
    %145 = vmatpush1.msra.mxu0 0.0
    %146 = vmatprep.subr.mxu0 0.0
    %147 = vmatpush1.msra.mxu0 0.0
    %148 = vmatprep.subr.mxu0 0.0
    %149 = vmatpush1.msra.mxu0 0.0
    %150 = vmatprep.subr.mxu0 0.0
    %151 = vmatpush1.msra.mxu0 0.0
    %152 = vmatprep.subr.mxu0 0.0
    %153 = vmatpush1.msra.mxu0 0.0
    %154 = vmatprep.subr.mxu0 0.0
    %155 = vmatpush1.msra.mxu0 0.0
    %156 = vmatprep.subr.mxu0 0.0
    %157 = vmatpush1.msra.mxu0 0.0
    %158 = vmatprep.subr.mxu0 0.0
    %159 = vmatpush1.msra.mxu0 0.0
    %160 = vmatprep.subr.mxu0 0.0
    %161 = vmatpush1.msra.mxu0 0.0
    %162 = vmatprep.subr.mxu0 0.0
    %163 = vmatpush1.msra.mxu0 0.0
    %164 = vmatprep.subr.mxu0 0.0
    %165 = vmatpush1.msra.mxu0 0.0
    %166 = vmatprep.subr.mxu0 0.0
    %167 = vmatpush1.msra.mxu0 0.0
    %168 = vmatprep.subr.mxu0 0.0
    %169 = vmatpush1.msra.mxu0 0.0
    %170 = vmatprep.subr.mxu0 0.0
    %171 = vmatpush1.msra.mxu0 0.0
    %172 = vmatprep.subr.mxu0 0.0
    %173 = vmatpush1.msra.mxu0 0.0
    %174 = vmatprep.subr.mxu0 0.0
    %175 = vmatpush1.msra.mxu0 0.0
    %176 = vmatprep.subr.mxu0 0.0
    %177 = vmatpush1.msra.mxu0 0.0
    %178 = vmatprep.mubr.f32.mxu0 0.0
    %179 = vmatmul.mubr.f32.gmra.mrb[0].mxu0 %v112
    %v180 = vpop.f32.mrb[0].mxu0
    %v181 = vadd.f32 0.0, %v180
    %v182 = vpop.f32.mrb[0].mxu0
    %183 = vdwg.mxu0
    %vm184 = vcmask 130048
    %v186 = vsel %vm184, %v95, 0
    %188 = vmatprep.subr.mxu0 0.0
    %189 = vmatpush1.msra.mxu0 %v103
    %190 = vmatprep.subr.mxu0 0.0
    %191 = vmatpush1.msra.mxu0 %v104
    %192 = vmatprep.subr.mxu0 0.0
    %193 = vmatpush1.msra.mxu0 0.0
    %194 = vmatprep.subr.mxu0 0.0
    %195 = vmatpush1.msra.mxu0 0.0
    %196 = vmatprep.subr.mxu0 0.0
    %197 = vmatpush1.msra.mxu0 0.0
    %198 = vmatprep.subr.mxu0 0.0
    %199 = vmatpush1.msra.mxu0 0.0
    %200 = vmatprep.subr.mxu0 0.0
    %201 = vmatpush1.msra.mxu0 0.0
    %202 = vmatprep.subr.mxu0 0.0
    %203 = vmatpush1.msra.mxu0 0.0
    %204 = vmatprep.subr.mxu0 0.0
    %205 = vmatpush1.msra.mxu0 0.0
    %206 = vmatprep.subr.mxu0 0.0
    %207 = vmatpush1.msra.mxu0 0.0
    %208 = vmatprep.subr.mxu0 0.0
    %209 = vmatpush1.msra.mxu0 0.0
    %210 = vmatprep.subr.mxu0 0.0
    %211 = vmatpush1.msra.mxu0 0.0
    %212 = vmatprep.subr.mxu0 0.0
    %213 = vmatpush1.msra.mxu0 0.0
    %214 = vmatprep.subr.mxu0 0.0
    %215 = vmatpush1.msra.mxu0 0.0
    %216 = vmatprep.subr.mxu0 0.0
    %217 = vmatpush1.msra.mxu0 0.0
    %218 = vmatprep.subr.mxu0 0.0
    %219 = vmatpush1.msra.mxu0 0.0
    %220 = vmatprep.subr.mxu0 0.0
    %221 = vmatpush1.msra.mxu0 0.0
    %222 = vmatprep.subr.mxu0 0.0
    %223 = vmatpush1.msra.mxu0 0.0
    %224 = vmatprep.subr.mxu0 0.0
    %225 = vmatpush1.msra.mxu0 0.0
    %226 = vmatprep.subr.mxu0 0.0
    %227 = vmatpush1.msra.mxu0 0.0
    %228 = vmatprep.subr.mxu0 0.0
    %229 = vmatpush1.msra.mxu0 0.0
    %230 = vmatprep.subr.mxu0 0.0
    %231 = vmatpush1.msra.mxu0 0.0
    %232 = vmatprep.subr.mxu0 0.0
    %233 = vmatpush1.msra.mxu0 0.0
    %234 = vmatprep.subr.mxu0 0.0
    %235 = vmatpush1.msra.mxu0 0.0
    %236 = vmatprep.subr.mxu0 0.0
    %237 = vmatpush1.msra.mxu0 0.0
    %238 = vmatprep.subr.mxu0 0.0
    %239 = vmatpush1.msra.mxu0 0.0
    %240 = vmatprep.subr.mxu0 0.0
    %241 = vmatpush1.msra.mxu0 0.0
    %242 = vmatprep.subr.mxu0 0.0
    %243 = vmatpush1.msra.mxu0 0.0
    %244 = vmatprep.subr.mxu0 0.0
    %245 = vmatpush1.msra.mxu0 0.0
    %246 = vmatprep.subr.mxu0 0.0
    %247 = vmatpush1.msra.mxu0 0.0
    %248 = vmatprep.subr.mxu0 0.0
    %249 = vmatpush1.msra.mxu0 0.0
    %250 = vmatprep.subr.mxu0 0.0
    %251 = vmatpush1.msra.mxu0 0.0
    %252 = vmatprep.mubr.f32.mxu0 0.0
    %253 = vmatmul.mubr.f32.gmra.mrb[0].mxu0 %v186
    %v254 = vpop.f32.mrb[0].mxu0
    %v255 = vadd.f32 %v181, %v254
    %v256 = vpop.f32.mrb[0].mxu0
    %257 = vdwg.mxu0
    %v259 = vlaneseq
    %v260 = vshrl.u32 %v259, 7
    %v261 = vsub.s32 0, %v260
    %v262 = vrot.slane %v109, %v261
    %v264 = vadd.f32 %v255, %v262
    %v265 = vxor.u32 %v264, 2147483648
    %v266 = vmul.f32 %v265, 1.442695
    %v267 = vpow.pop %v266
    %v268 = vadd.f32 %v267, 1.0
    %v269 = vrcp.pop %v268
    %v270 = vmul.f32 1.0, %v269
    %v271 = vtanh.pop %v264
    %v272 = vmul.f32 %v270, 0.0
    %274 = vrot.lane.b32.xlu0 %v271, 64
    %v275 = vpop.permute.xlu0 %274
    %v277 = vmul.f32 %v270, %v275
    %279 = vrot.lane.b32.xlu0 %v277, 32
    %v280 = vpop.permute.xlu0 %279
    %v282 = vadd.f32 %v272, %v280
    %v283 = vtanh.pop %v282
    %285 = vrot.lane.b32.xlu0 %v283, 64
    %v286 = vpop.permute.xlu0 %285
    %v288 = vmul.f32 %v270, %v286
    %290 = vrot.lane.b32.xlu0 %v288, 32
    %v291 = vpop.permute.xlu0 %290
    %v292 = vsel %vm110, %v291, 0
    %294 = vmatprep.subr.mxu0 0.0
    %295 = vmatpush1.msra.mxu0 %v105
    %296 = vmatprep.subr.mxu0 0.0
    %297 = vmatpush1.msra.mxu0 %v106
    %298 = vmatprep.subr.mxu0 0.0
    %299 = vmatpush1.msra.mxu0 %v107
    %300 = vmatprep.subr.mxu0 0.0
    %301 = vmatpush1.msra.mxu0 %v108
    %302 = vmatprep.subr.mxu0 0.0
    %303 = vmatpush1.msra.mxu0 0.0
    %304 = vmatprep.subr.mxu0 0.0
    %305 = vmatpush1.msra.mxu0 0.0
    %306 = vmatprep.subr.mxu0 0.0
    %307 = vmatpush1.msra.mxu0 0.0
    %308 = vmatprep.subr.mxu0 0.0
    %309 = vmatpush1.msra.mxu0 0.0
    %310 = vmatprep.subr.mxu0 0.0
    %311 = vmatpush1.msra.mxu0 0.0
    %312 = vmatprep.subr.mxu0 0.0
    %313 = vmatpush1.msra.mxu0 0.0
    %314 = vmatprep.subr.mxu0 0.0
    %315 = vmatpush1.msra.mxu0 0.0
    %316 = vmatprep.subr.mxu0 0.0
    %317 = vmatpush1.msra.mxu0 0.0
    %318 = vmatprep.subr.mxu0 0.0
    %319 = vmatpush1.msra.mxu0 0.0
    %320 = vmatprep.subr.mxu0 0.0
    %321 = vmatpush1.msra.mxu0 0.0
    %322 = vmatprep.subr.mxu0 0.0
    %323 = vmatpush1.msra.mxu0 0.0
    %324 = vmatprep.subr.mxu0 0.0
    %325 = vmatpush1.msra.mxu0 0.0
    %326 = vmatprep.subr.mxu0 0.0
    %327 = vmatpush1.msra.mxu0 0.0
    %328 = vmatprep.subr.mxu0 0.0
    %329 = vmatpush1.msra.mxu0 0.0
    %330 = vmatprep.subr.mxu0 0.0
    %331 = vmatpush1.msra.mxu0 0.0
    %332 = vmatprep.subr.mxu0 0.0
    %333 = vmatpush1.msra.mxu0 0.0
    %334 = vmatprep.subr.mxu0 0.0
    %335 = vmatpush1.msra.mxu0 0.0
    %336 = vmatprep.subr.mxu0 0.0
    %337 = vmatpush1.msra.mxu0 0.0
    %338 = vmatprep.subr.mxu0 0.0
    %339 = vmatpush1.msra.mxu0 0.0
    %340 = vmatprep.subr.mxu0 0.0
    %341 = vmatpush1.msra.mxu0 0.0
    %342 = vmatprep.subr.mxu0 0.0
    %343 = vmatpush1.msra.mxu0 0.0
    %344 = vmatprep.subr.mxu0 0.0
    %345 = vmatpush1.msra.mxu0 0.0
    %346 = vmatprep.subr.mxu0 0.0
    %347 = vmatpush1.msra.mxu0 0.0
    %348 = vmatprep.subr.mxu0 0.0
    %349 = vmatpush1.msra.mxu0 0.0
    %350 = vmatprep.subr.mxu0 0.0
    %351 = vmatpush1.msra.mxu0 0.0
    %352 = vmatprep.subr.mxu0 0.0
    %353 = vmatpush1.msra.mxu0 0.0
    %354 = vmatprep.subr.mxu0 0.0
    %355 = vmatpush1.msra.mxu0 0.0
    %356 = vmatprep.subr.mxu0 0.0
    %357 = vmatpush1.msra.mxu0 0.0
    %358 = vmatprep.mubr.f32.mxu0 0.0
    %359 = vmatmul.mubr.f32.gmra.mrb[0].mxu0 %v292
    %v360 = vpop.f32.mrb[0].mxu0
    %v361 = vadd.f32 0.0, %v360
    %v362 = vpop.f32.mrb[0].mxu0
    %363 = vdwg.mxu0
    %v365 = vsel %vm184, %v96, 0
    %367 = vmatprep.subr.mxu0 0.0
    %368 = vmatpush1.msra.mxu0 %v103
    %369 = vmatprep.subr.mxu0 0.0
    %370 = vmatpush1.msra.mxu0 %v104
    %371 = vmatprep.subr.mxu0 0.0
    %372 = vmatpush1.msra.mxu0 0.0
    %373 = vmatprep.subr.mxu0 0.0
    %374 = vmatpush1.msra.mxu0 0.0
    %375 = vmatprep.subr.mxu0 0.0
    %376 = vmatpush1.msra.mxu0 0.0
    %377 = vmatprep.subr.mxu0 0.0
    %378 = vmatpush1.msra.mxu0 0.0
    %379 = vmatprep.subr.mxu0 0.0
    %380 = vmatpush1.msra.mxu0 0.0
    %381 = vmatprep.subr.mxu0 0.0
    %382 = vmatpush1.msra.mxu0 0.0
    %383 = vmatprep.subr.mxu0 0.0
    %384 = vmatpush1.msra.mxu0 0.0
    %385 = vmatprep.subr.mxu0 0.0
    %386 = vmatpush1.msra.mxu0 0.0
    %387 = vmatprep.subr.mxu0 0.0
    %388 = vmatpush1.msra.mxu0 0.0
    %389 = vmatprep.subr.mxu0 0.0
    %390 = vmatpush1.msra.mxu0 0.0
    %391 = vmatprep.subr.mxu0 0.0
    %392 = vmatpush1.msra.mxu0 0.0
    %393 = vmatprep.subr.mxu0 0.0
    %394 = vmatpush1.msra.mxu0 0.0
    %395 = vmatprep.subr.mxu0 0.0
    %396 = vmatpush1.msra.mxu0 0.0
    %397 = vmatprep.subr.mxu0 0.0
    %398 = vmatpush1.msra.mxu0 0.0
    %399 = vmatprep.subr.mxu0 0.0
    %400 = vmatpush1.msra.mxu0 0.0
    %401 = vmatprep.subr.mxu0 0.0
    %402 = vmatpush1.msra.mxu0 0.0
    %403 = vmatprep.subr.mxu0 0.0
    %404 = vmatpush1.msra.mxu0 0.0
    %405 = vmatprep.subr.mxu0 0.0
    %406 = vmatpush1.msra.mxu0 0.0
    %407 = vmatprep.subr.mxu0 0.0
    %408 = vmatpush1.msra.mxu0 0.0
    %409 = vmatprep.subr.mxu0 0.0
    %410 = vmatpush1.msra.mxu0 0.0
    %411 = vmatprep.subr.mxu0 0.0
    %412 = vmatpush1.msra.mxu0 0.0
    %413 = vmatprep.subr.mxu0 0.0
    %414 = vmatpush1.msra.mxu0 0.0
    %415 = vmatprep.subr.mxu0 0.0
    %416 = vmatpush1.msra.mxu0 0.0
    %417 = vmatprep.subr.mxu0 0.0
    %418 = vmatpush1.msra.mxu0 0.0
    %419 = vmatprep.subr.mxu0 0.0
    %420 = vmatpush1.msra.mxu0 0.0
    %421 = vmatprep.subr.mxu0 0.0
    %422 = vmatpush1.msra.mxu0 0.0
    %423 = vmatprep.subr.mxu0 0.0
    %424 = vmatpush1.msra.mxu0 0.0
    %425 = vmatprep.subr.mxu0 0.0
    %426 = vmatpush1.msra.mxu0 0.0
    %427 = vmatprep.subr.mxu0 0.0
    %428 = vmatpush1.msra.mxu0 0.0
    %429 = vmatprep.subr.mxu0 0.0
    %430 = vmatpush1.msra.mxu0 0.0
    %431 = vmatprep.mubr.f32.mxu0 0.0
    %432 = vmatmul.mubr.f32.gmra.mrb[0].mxu0 %v365
    %v433 = vpop.f32.mrb[0].mxu0
    %v434 = vadd.f32 %v361, %v433
    %v435 = vpop.f32.mrb[0].mxu0
    %436 = vdwg.mxu0
    %v437 = vadd.f32 %v434, %v262
    %v438 = vxor.u32 %v437, 2147483648
    %v439 = vmul.f32 %v438, 1.442695
    %v440 = vpow.pop %v439
    %v441 = vadd.f32 %v440, 1.0
    %v442 = vrcp.pop %v441
    %v443 = vmul.f32 1.0, %v442
    %v444 = vtanh.pop %v437
    %v445 = vmul.f32 %v443, %v282
    %447 = vrot.lane.b32.xlu0 %v444, 64
    %v448 = vpop.permute.xlu0 %447
    %v450 = vmul.f32 %v443, %v448
    %452 = vrot.lane.b32.xlu0 %v450, 32
    %v453 = vpop.permute.xlu0 %452
    %v455 = vadd.f32 %v445, %v453
    %v456 = vtanh.pop %v455
    %458 = vrot.lane.b32.xlu0 %v456, 64
    %v459 = vpop.permute.xlu0 %458
    %v461 = vmul.f32 %v443, %v459
    %463 = vrot.lane.b32.xlu0 %v461, 32
    %v464 = vpop.permute.xlu0 %463
    %v465 = vsel %vm110, %v464, 0
    %467 = vmatprep.subr.mxu0 0.0
    %468 = vmatpush1.msra.mxu0 %v105
    %469 = vmatprep.subr.mxu0 0.0
    %470 = vmatpush1.msra.mxu0 %v106
    %471 = vmatprep.subr.mxu0 0.0
    %472 = vmatpush1.msra.mxu0 %v107
    %473 = vmatprep.subr.mxu0 0.0
    %474 = vmatpush1.msra.mxu0 %v108
    %475 = vmatprep.subr.mxu0 0.0
    %476 = vmatpush1.msra.mxu0 0.0
    %477 = vmatprep.subr.mxu0 0.0
    %478 = vmatpush1.msra.mxu0 0.0
    %479 = vmatprep.subr.mxu0 0.0
    %480 = vmatpush1.msra.mxu0 0.0
    %481 = vmatprep.subr.mxu0 0.0
    %482 = vmatpush1.msra.mxu0 0.0
    %483 = vmatprep.subr.mxu0 0.0
    %484 = vmatpush1.msra.mxu0 0.0
    %485 = vmatprep.subr.mxu0 0.0
    %486 = vmatpush1.msra.mxu0 0.0
    %487 = vmatprep.subr.mxu0 0.0
    %488 = vmatpush1.msra.mxu0 0.0
    %489 = vmatprep.subr.mxu0 0.0
    %490 = vmatpush1.msra.mxu0 0.0
    %491 = vmatprep.subr.mxu0 0.0
    %492 = vmatpush1.msra.mxu0 0.0
    %493 = vmatprep.subr.mxu0 0.0
    %494 = vmatpush1.msra.mxu0 0.0
    %495 = vmatprep.subr.mxu0 0.0
    %496 = vmatpush1.msra.mxu0 0.0
    %497 = vmatprep.subr.mxu0 0.0
    %498 = vmatpush1.msra.mxu0 0.0
    %499 = vmatprep.subr.mxu0 0.0
    %500 = vmatpush1.msra.mxu0 0.0
    %501 = vmatprep.subr.mxu0 0.0
    %502 = vmatpush1.msra.mxu0 0.0
    %503 = vmatprep.subr.mxu0 0.0
    %504 = vmatpush1.msra.mxu0 0.0
    %505 = vmatprep.subr.mxu0 0.0
    %506 = vmatpush1.msra.mxu0 0.0
    %507 = vmatprep.subr.mxu0 0.0
    %508 = vmatpush1.msra.mxu0 0.0
    %509 = vmatprep.subr.mxu0 0.0
    %510 = vmatpush1.msra.mxu0 0.0
    %511 = vmatprep.subr.mxu0 0.0
    %512 = vmatpush1.msra.mxu0 0.0
    %513 = vmatprep.subr.mxu0 0.0
    %514 = vmatpush1.msra.mxu0 0.0
    %515 = vmatprep.subr.mxu0 0.0
    %516 = vmatpush1.msra.mxu0 0.0
    %517 = vmatprep.subr.mxu0 0.0
    %518 = vmatpush1.msra.mxu0 0.0
    %519 = vmatprep.subr.mxu0 0.0
    %520 = vmatpush1.msra.mxu0 0.0
    %521 = vmatprep.subr.mxu0 0.0
    %522 = vmatpush1.msra.mxu0 0.0
    %523 = vmatprep.subr.mxu0 0.0
    %524 = vmatpush1.msra.mxu0 0.0
    %525 = vmatprep.subr.mxu0 0.0
    %526 = vmatpush1.msra.mxu0 0.0
    %527 = vmatprep.subr.mxu0 0.0
    %528 = vmatpush1.msra.mxu0 0.0
    %529 = vmatprep.subr.mxu0 0.0
    %530 = vmatpush1.msra.mxu0 0.0
    %531 = vmatprep.mubr.f32.mxu0 0.0
    %532 = vmatmul.mubr.f32.gmra.mrb[0].mxu0 %v465
    %v533 = vpop.f32.mrb[0].mxu0
    %v534 = vadd.f32 0.0, %v533
    %v535 = vpop.f32.mrb[0].mxu0
    %536 = vdwg.mxu0
    %v538 = vsel %vm184, %v97, 0
    %540 = vmatprep.subr.mxu0 0.0
    %541 = vmatpush1.msra.mxu0 %v103
    %542 = vmatprep.subr.mxu0 0.0
    %543 = vmatpush1.msra.mxu0 %v104
    %544 = vmatprep.subr.mxu0 0.0
    %545 = vmatpush1.msra.mxu0 0.0
    %546 = vmatprep.subr.mxu0 0.0
    %547 = vmatpush1.msra.mxu0 0.0
    %548 = vmatprep.subr.mxu0 0.0
    %549 = vmatpush1.msra.mxu0 0.0
    %550 = vmatprep.subr.mxu0 0.0
    %551 = vmatpush1.msra.mxu0 0.0
    %552 = vmatprep.subr.mxu0 0.0
    %553 = vmatpush1.msra.mxu0 0.0
    %554 = vmatprep.subr.mxu0 0.0
    %555 = vmatpush1.msra.mxu0 0.0
    %556 = vmatprep.subr.mxu0 0.0
    %557 = vmatpush1.msra.mxu0 0.0
    %558 = vmatprep.subr.mxu0 0.0
    %559 = vmatpush1.msra.mxu0 0.0
    %560 = vmatprep.subr.mxu0 0.0
    %561 = vmatpush1.msra.mxu0 0.0
    %562 = vmatprep.subr.mxu0 0.0
    %563 = vmatpush1.msra.mxu0 0.0
    %564 = vmatprep.subr.mxu0 0.0
    %565 = vmatpush1.msra.mxu0 0.0
    %566 = vmatprep.subr.mxu0 0.0
    %567 = vmatpush1.msra.mxu0 0.0
    %568 = vmatprep.subr.mxu0 0.0
    %569 = vmatpush1.msra.mxu0 0.0
    %570 = vmatprep.subr.mxu0 0.0
    %571 = vmatpush1.msra.mxu0 0.0
    %572 = vmatprep.subr.mxu0 0.0
    %573 = vmatpush1.msra.mxu0 0.0
    %574 = vmatprep.subr.mxu0 0.0
    %575 = vmatpush1.msra.mxu0 0.0
    %576 = vmatprep.subr.mxu0 0.0
    %577 = vmatpush1.msra.mxu0 0.0
    %578 = vmatprep.subr.mxu0 0.0
    %579 = vmatpush1.msra.mxu0 0.0
    %580 = vmatprep.subr.mxu0 0.0
    %581 = vmatpush1.msra.mxu0 0.0
    %582 = vmatprep.subr.mxu0 0.0
    %583 = vmatpush1.msra.mxu0 0.0
    %584 = vmatprep.subr.mxu0 0.0
    %585 = vmatpush1.msra.mxu0 0.0
    %586 = vmatprep.subr.mxu0 0.0
    %587 = vmatpush1.msra.mxu0 0.0
    %588 = vmatprep.subr.mxu0 0.0
    %589 = vmatpush1.msra.mxu0 0.0
    %590 = vmatprep.subr.mxu0 0.0
    %591 = vmatpush1.msra.mxu0 0.0
    %592 = vmatprep.subr.mxu0 0.0
    %593 = vmatpush1.msra.mxu0 0.0
    %594 = vmatprep.subr.mxu0 0.0
    %595 = vmatpush1.msra.mxu0 0.0
    %596 = vmatprep.subr.mxu0 0.0
    %597 = vmatpush1.msra.mxu0 0.0
    %598 = vmatprep.subr.mxu0 0.0
    %599 = vmatpush1.msra.mxu0 0.0
    %600 = vmatprep.subr.mxu0 0.0
    %601 = vmatpush1.msra.mxu0 0.0
    %602 = vmatprep.subr.mxu0 0.0
    %603 = vmatpush1.msra.mxu0 0.0
    %604 = vmatprep.mubr.f32.mxu0 0.0
    %605 = vmatmul.mubr.f32.gmra.mrb[0].mxu0 %v538
    %v606 = vpop.f32.mrb[0].mxu0
    %v607 = vadd.f32 %v534, %v606
    %v608 = vpop.f32.mrb[0].mxu0
    %609 = vdwg.mxu0
    %v610 = vadd.f32 %v607, %v262
    %v611 = vxor.u32 %v610, 2147483648
    %v612 = vmul.f32 %v611, 1.442695
    %v613 = vpow.pop %v612
    %v614 = vadd.f32 %v613, 1.0
    %v615 = vrcp.pop %v614
    %v616 = vmul.f32 1.0, %v615
    %v617 = vtanh.pop %v610
    %v618 = vmul.f32 %v616, %v455
    %620 = vrot.lane.b32.xlu0 %v617, 64
    %v621 = vpop.permute.xlu0 %620
    %v623 = vmul.f32 %v616, %v621
    %625 = vrot.lane.b32.xlu0 %v623, 32
    %v626 = vpop.permute.xlu0 %625
    %v628 = vadd.f32 %v618, %v626
    %v629 = vtanh.pop %v628
    %631 = vrot.lane.b32.xlu0 %v629, 64
    %v632 = vpop.permute.xlu0 %631
    %v634 = vmul.f32 %v616, %v632
    %636 = vrot.lane.b32.xlu0 %v634, 32
    %v637 = vpop.permute.xlu0 %636
    %v638 = vsel %vm110, %v637, 0
    %640 = vmatprep.subr.mxu0 0.0
    %641 = vmatpush1.msra.mxu0 %v105
    %642 = vmatprep.subr.mxu0 0.0
    %643 = vmatpush1.msra.mxu0 %v106
    %644 = vmatprep.subr.mxu0 0.0
    %645 = vmatpush1.msra.mxu0 %v107
    %646 = vmatprep.subr.mxu0 0.0
    %647 = vmatpush1.msra.mxu0 %v108
    %648 = vmatprep.subr.mxu0 0.0
    %649 = vmatpush1.msra.mxu0 0.0
    %650 = vmatprep.subr.mxu0 0.0
    %651 = vmatpush1.msra.mxu0 0.0
    %652 = vmatprep.subr.mxu0 0.0
    %653 = vmatpush1.msra.mxu0 0.0
    %654 = vmatprep.subr.mxu0 0.0
    %655 = vmatpush1.msra.mxu0 0.0
    %656 = vmatprep.subr.mxu0 0.0
    %657 = vmatpush1.msra.mxu0 0.0
    %658 = vmatprep.subr.mxu0 0.0
    %659 = vmatpush1.msra.mxu0 0.0
    %660 = vmatprep.subr.mxu0 0.0
    %661 = vmatpush1.msra.mxu0 0.0
    %662 = vmatprep.subr.mxu0 0.0
    %663 = vmatpush1.msra.mxu0 0.0
    %664 = vmatprep.subr.mxu0 0.0
    %665 = vmatpush1.msra.mxu0 0.0
    %666 = vmatprep.subr.mxu0 0.0
    %667 = vmatpush1.msra.mxu0 0.0
    %668 = vmatprep.subr.mxu0 0.0
    %669 = vmatpush1.msra.mxu0 0.0
    %670 = vmatprep.subr.mxu0 0.0
    %671 = vmatpush1.msra.mxu0 0.0
    %672 = vmatprep.subr.mxu0 0.0
    %673 = vmatpush1.msra.mxu0 0.0
    %674 = vmatprep.subr.mxu0 0.0
    %675 = vmatpush1.msra.mxu0 0.0
    %676 = vmatprep.subr.mxu0 0.0
    %677 = vmatpush1.msra.mxu0 0.0
    %678 = vmatprep.subr.mxu0 0.0
    %679 = vmatpush1.msra.mxu0 0.0
    %680 = vmatprep.subr.mxu0 0.0
    %681 = vmatpush1.msra.mxu0 0.0
    %682 = vmatprep.subr.mxu0 0.0
    %683 = vmatpush1.msra.mxu0 0.0
    %684 = vmatprep.subr.mxu0 0.0
    %685 = vmatpush1.msra.mxu0 0.0
    %686 = vmatprep.subr.mxu0 0.0
    %687 = vmatpush1.msra.mxu0 0.0
    %688 = vmatprep.subr.mxu0 0.0
    %689 = vmatpush1.msra.mxu0 0.0
    %690 = vmatprep.subr.mxu0 0.0
    %691 = vmatpush1.msra.mxu0 0.0
    %692 = vmatprep.subr.mxu0 0.0
    %693 = vmatpush1.msra.mxu0 0.0
    %694 = vmatprep.subr.mxu0 0.0
    %695 = vmatpush1.msra.mxu0 0.0
    %696 = vmatprep.subr.mxu0 0.0
    %697 = vmatpush1.msra.mxu0 0.0
    %698 = vmatprep.subr.mxu0 0.0
    %699 = vmatpush1.msra.mxu0 0.0
    %700 = vmatprep.subr.mxu0 0.0
    %701 = vmatpush1.msra.mxu0 0.0
    %702 = vmatprep.subr.mxu0 0.0
    %703 = vmatpush1.msra.mxu0 0.0
    %704 = vmatprep.mubr.f32.mxu0 0.0
    %705 = vmatmul.mubr.f32.gmra.mrb[0].mxu0 %v638
    %v706 = vpop.f32.mrb[0].mxu0
    %v707 = vadd.f32 0.0, %v706
    %v708 = vpop.f32.mrb[0].mxu0
    %709 = vdwg.mxu0
    %v711 = vsel %vm184, %v98, 0
    %713 = vmatprep.subr.mxu0 0.0
    %714 = vmatpush1.msra.mxu0 %v103
    %715 = vmatprep.subr.mxu0 0.0
    %716 = vmatpush1.msra.mxu0 %v104
    %717 = vmatprep.subr.mxu0 0.0
    %718 = vmatpush1.msra.mxu0 0.0
    %719 = vmatprep.subr.mxu0 0.0
    %720 = vmatpush1.msra.mxu0 0.0
    %721 = vmatprep.subr.mxu0 0.0
    %722 = vmatpush1.msra.mxu0 0.0
    %723 = vmatprep.subr.mxu0 0.0
    %724 = vmatpush1.msra.mxu0 0.0
    %725 = vmatprep.subr.mxu0 0.0
    %726 = vmatpush1.msra.mxu0 0.0
    %727 = vmatprep.subr.mxu0 0.0
    %728 = vmatpush1.msra.mxu0 0.0
    %729 = vmatprep.subr.mxu0 0.0
    %730 = vmatpush1.msra.mxu0 0.0
    %731 = vmatprep.subr.mxu0 0.0
    %732 = vmatpush1.msra.mxu0 0.0
    %733 = vmatprep.subr.mxu0 0.0
    %734 = vmatpush1.msra.mxu0 0.0
    %735 = vmatprep.subr.mxu0 0.0
    %736 = vmatpush1.msra.mxu0 0.0
    %737 = vmatprep.subr.mxu0 0.0
    %738 = vmatpush1.msra.mxu0 0.0
    %739 = vmatprep.subr.mxu0 0.0
    %740 = vmatpush1.msra.mxu0 0.0
    %741 = vmatprep.subr.mxu0 0.0
    %742 = vmatpush1.msra.mxu0 0.0
    %743 = vmatprep.subr.mxu0 0.0
    %744 = vmatpush1.msra.mxu0 0.0
    %745 = vmatprep.subr.mxu0 0.0
    %746 = vmatpush1.msra.mxu0 0.0
    %747 = vmatprep.subr.mxu0 0.0
    %748 = vmatpush1.msra.mxu0 0.0
    %749 = vmatprep.subr.mxu0 0.0
    %750 = vmatpush1.msra.mxu0 0.0
    %751 = vmatprep.subr.mxu0 0.0
    %752 = vmatpush1.msra.mxu0 0.0
    %753 = vmatprep.subr.mxu0 0.0
    %754 = vmatpush1.msra.mxu0 0.0
    %755 = vmatprep.subr.mxu0 0.0
    %756 = vmatpush1.msra.mxu0 0.0
    %757 = vmatprep.subr.mxu0 0.0
    %758 = vmatpush1.msra.mxu0 0.0
    %759 = vmatprep.subr.mxu0 0.0
    %760 = vmatpush1.msra.mxu0 0.0
    %761 = vmatprep.subr.mxu0 0.0
    %762 = vmatpush1.msra.mxu0 0.0
    %763 = vmatprep.subr.mxu0 0.0
    %764 = vmatpush1.msra.mxu0 0.0
    %765 = vmatprep.subr.mxu0 0.0
    %766 = vmatpush1.msra.mxu0 0.0
    %767 = vmatprep.subr.mxu0 0.0
    %768 = vmatpush1.msra.mxu0 0.0
    %769 = vmatprep.subr.mxu0 0.0
    %770 = vmatpush1.msra.mxu0 0.0
    %771 = vmatprep.subr.mxu0 0.0
    %772 = vmatpush1.msra.mxu0 0.0
    %773 = vmatprep.subr.mxu0 0.0
    %774 = vmatpush1.msra.mxu0 0.0
    %775 = vmatprep.subr.mxu0 0.0
    %776 = vmatpush1.msra.mxu0 0.0
    %777 = vmatprep.mubr.f32.mxu0 0.0
    %778 = vmatmul.mubr.f32.gmra.mrb[0].mxu0 %v711
    %v779 = vpop.f32.mrb[0].mxu0
    %v780 = vadd.f32 %v707, %v779
    %v781 = vpop.f32.mrb[0].mxu0
    %782 = vdwg.mxu0
    %v783 = vadd.f32 %v780, %v262
    %v784 = vxor.u32 %v783, 2147483648
    %v785 = vmul.f32 %v784, 1.442695
    %v786 = vpow.pop %v785
    %v787 = vadd.f32 %v786, 1.0
    %v788 = vrcp.pop %v787
    %v789 = vmul.f32 1.0, %v788
    %v790 = vtanh.pop %v783
    %v791 = vmul.f32 %v789, %v628
    %793 = vrot.lane.b32.xlu0 %v790, 64
    %v794 = vpop.permute.xlu0 %793
    %v796 = vmul.f32 %v789, %v794
    %798 = vrot.lane.b32.xlu0 %v796, 32
    %v799 = vpop.permute.xlu0 %798
    %v801 = vadd.f32 %v791, %v799
    %v802 = vtanh.pop %v801
    %804 = vrot.lane.b32.xlu0 %v802, 64
    %v805 = vpop.permute.xlu0 %804
    %v807 = vmul.f32 %v789, %v805
    %809 = vrot.lane.b32.xlu0 %v807, 32
    %v810 = vpop.permute.xlu0 %809
    %v811 = vsel %vm110, %v810, 0
    %813 = vmatprep.subr.mxu0 0.0
    %814 = vmatpush1.msra.mxu0 %v105
    %815 = vmatprep.subr.mxu0 0.0
    %816 = vmatpush1.msra.mxu0 %v106
    %817 = vmatprep.subr.mxu0 0.0
    %818 = vmatpush1.msra.mxu0 %v107
    %819 = vmatprep.subr.mxu0 0.0
    %820 = vmatpush1.msra.mxu0 %v108
    %821 = vmatprep.subr.mxu0 0.0
    %822 = vmatpush1.msra.mxu0 0.0
    %823 = vmatprep.subr.mxu0 0.0
    %824 = vmatpush1.msra.mxu0 0.0
    %825 = vmatprep.subr.mxu0 0.0
    %826 = vmatpush1.msra.mxu0 0.0
    %827 = vmatprep.subr.mxu0 0.0
    %828 = vmatpush1.msra.mxu0 0.0
    %829 = vmatprep.subr.mxu0 0.0
    %830 = vmatpush1.msra.mxu0 0.0
    %831 = vmatprep.subr.mxu0 0.0
    %832 = vmatpush1.msra.mxu0 0.0
    %833 = vmatprep.subr.mxu0 0.0
    %834 = vmatpush1.msra.mxu0 0.0
    %835 = vmatprep.subr.mxu0 0.0
    %836 = vmatpush1.msra.mxu0 0.0
    %837 = vmatprep.subr.mxu0 0.0
    %838 = vmatpush1.msra.mxu0 0.0
    %839 = vmatprep.subr.mxu0 0.0
    %840 = vmatpush1.msra.mxu0 0.0
    %841 = vmatprep.subr.mxu0 0.0
    %842 = vmatpush1.msra.mxu0 0.0
    %843 = vmatprep.subr.mxu0 0.0
    %844 = vmatpush1.msra.mxu0 0.0
    %845 = vmatprep.subr.mxu0 0.0
    %846 = vmatpush1.msra.mxu0 0.0
    %847 = vmatprep.subr.mxu0 0.0
    %848 = vmatpush1.msra.mxu0 0.0
    %849 = vmatprep.subr.mxu0 0.0
    %850 = vmatpush1.msra.mxu0 0.0
    %851 = vmatprep.subr.mxu0 0.0
    %852 = vmatpush1.msra.mxu0 0.0
    %853 = vmatprep.subr.mxu0 0.0
    %854 = vmatpush1.msra.mxu0 0.0
    %855 = vmatprep.subr.mxu0 0.0
    %856 = vmatpush1.msra.mxu0 0.0
    %857 = vmatprep.subr.mxu0 0.0
    %858 = vmatpush1.msra.mxu0 0.0
    %859 = vmatprep.subr.mxu0 0.0
    %860 = vmatpush1.msra.mxu0 0.0
    %861 = vmatprep.subr.mxu0 0.0
    %862 = vmatpush1.msra.mxu0 0.0
    %863 = vmatprep.subr.mxu0 0.0
    %864 = vmatpush1.msra.mxu0 0.0
    %865 = vmatprep.subr.mxu0 0.0
    %866 = vmatpush1.msra.mxu0 0.0
    %867 = vmatprep.subr.mxu0 0.0
    %868 = vmatpush1.msra.mxu0 0.0
    %869 = vmatprep.subr.mxu0 0.0
    %870 = vmatpush1.msra.mxu0 0.0
    %871 = vmatprep.subr.mxu0 0.0
    %872 = vmatpush1.msra.mxu0 0.0
    %873 = vmatprep.subr.mxu0 0.0
    %874 = vmatpush1.msra.mxu0 0.0
    %875 = vmatprep.subr.mxu0 0.0
    %876 = vmatpush1.msra.mxu0 0.0
    %877 = vmatprep.mubr.f32.mxu0 0.0
    %878 = vmatmul.mubr.f32.gmra.mrb[0].mxu0 %v811
    %v879 = vpop.f32.mrb[0].mxu0
    %v880 = vadd.f32 0.0, %v879
    %v881 = vpop.f32.mrb[0].mxu0
    %882 = vdwg.mxu0
    %v884 = vsel %vm184, %v99, 0
    %886 = vmatprep.subr.mxu0 0.0
    %887 = vmatpush1.msra.mxu0 %v103
    %888 = vmatprep.subr.mxu0 0.0
    %889 = vmatpush1.msra.mxu0 %v104
    %890 = vmatprep.subr.mxu0 0.0
    %891 = vmatpush1.msra.mxu0 0.0
    %892 = vmatprep.subr.mxu0 0.0
    %893 = vmatpush1.msra.mxu0 0.0
    %894 = vmatprep.subr.mxu0 0.0
    %895 = vmatpush1.msra.mxu0 0.0
    %896 = vmatprep.subr.mxu0 0.0
    %897 = vmatpush1.msra.mxu0 0.0
    %898 = vmatprep.subr.mxu0 0.0
    %899 = vmatpush1.msra.mxu0 0.0
    %900 = vmatprep.subr.mxu0 0.0
    %901 = vmatpush1.msra.mxu0 0.0
    %902 = vmatprep.subr.mxu0 0.0
    %903 = vmatpush1.msra.mxu0 0.0
    %904 = vmatprep.subr.mxu0 0.0
    %905 = vmatpush1.msra.mxu0 0.0
    %906 = vmatprep.subr.mxu0 0.0
    %907 = vmatpush1.msra.mxu0 0.0
    %908 = vmatprep.subr.mxu0 0.0
    %909 = vmatpush1.msra.mxu0 0.0
    %910 = vmatprep.subr.mxu0 0.0
    %911 = vmatpush1.msra.mxu0 0.0
    %912 = vmatprep.subr.mxu0 0.0
    %913 = vmatpush1.msra.mxu0 0.0
    %914 = vmatprep.subr.mxu0 0.0
    %915 = vmatpush1.msra.mxu0 0.0
    %916 = vmatprep.subr.mxu0 0.0
    %917 = vmatpush1.msra.mxu0 0.0
    %918 = vmatprep.subr.mxu0 0.0
    %919 = vmatpush1.msra.mxu0 0.0
    %920 = vmatprep.subr.mxu0 0.0
    %921 = vmatpush1.msra.mxu0 0.0
    %922 = vmatprep.subr.mxu0 0.0
    %923 = vmatpush1.msra.mxu0 0.0
    %924 = vmatprep.subr.mxu0 0.0
    %925 = vmatpush1.msra.mxu0 0.0
    %926 = vmatprep.subr.mxu0 0.0
    %927 = vmatpush1.msra.mxu0 0.0
    %928 = vmatprep.subr.mxu0 0.0
    %929 = vmatpush1.msra.mxu0 0.0
    %930 = vmatprep.subr.mxu0 0.0
    %931 = vmatpush1.msra.mxu0 0.0
    %932 = vmatprep.subr.mxu0 0.0
    %933 = vmatpush1.msra.mxu0 0.0
    %934 = vmatprep.subr.mxu0 0.0
    %935 = vmatpush1.msra.mxu0 0.0
    %936 = vmatprep.subr.mxu0 0.0
    %937 = vmatpush1.msra.mxu0 0.0
    %938 = vmatprep.subr.mxu0 0.0
    %939 = vmatpush1.msra.mxu0 0.0
    %940 = vmatprep.subr.mxu0 0.0
    %941 = vmatpush1.msra.mxu0 0.0
    %942 = vmatprep.subr.mxu0 0.0
    %943 = vmatpush1.msra.mxu0 0.0
    %944 = vmatprep.subr.mxu0 0.0
    %945 = vmatpush1.msra.mxu0 0.0
    %946 = vmatprep.subr.mxu0 0.0
    %947 = vmatpush1.msra.mxu0 0.0
    %948 = vmatprep.subr.mxu0 0.0
    %949 = vmatpush1.msra.mxu0 0.0
    %950 = vmatprep.mubr.f32.mxu0 0.0
    %951 = vmatmul.mubr.f32.gmra.mrb[0].mxu0 %v884
    %v952 = vpop.f32.mrb[0].mxu0
    %v953 = vadd.f32 %v880, %v952
    %v954 = vpop.f32.mrb[0].mxu0
    %955 = vdwg.mxu0
    %v956 = vadd.f32 %v953, %v262
    %v957 = vxor.u32 %v956, 2147483648
    %v958 = vmul.f32 %v957, 1.442695
    %v959 = vpow.pop %v958
    %v960 = vadd.f32 %v959, 1.0
    %v961 = vrcp.pop %v960
    %v962 = vmul.f32 1.0, %v961
    %v963 = vtanh.pop %v956
    %v964 = vmul.f32 %v962, %v801
    %966 = vrot.lane.b32.xlu0 %v963, 64
    %v967 = vpop.permute.xlu0 %966
    %v969 = vmul.f32 %v962, %v967
    %971 = vrot.lane.b32.xlu0 %v969, 32
    %v972 = vpop.permute.xlu0 %971
    %v974 = vadd.f32 %v964, %v972
    %v975 = vtanh.pop %v974
    %977 = vrot.lane.b32.xlu0 %v975, 64
    %v978 = vpop.permute.xlu0 %977
    %v980 = vmul.f32 %v962, %v978
    %982 = vrot.lane.b32.xlu0 %v980, 32
    %v983 = vpop.permute.xlu0 %982
    %v984 = vsel %vm110, %v983, 0
    %986 = vmatprep.subr.mxu0 0.0
    %987 = vmatpush1.msra.mxu0 %v105
    %988 = vmatprep.subr.mxu0 0.0
    %989 = vmatpush1.msra.mxu0 %v106
    %990 = vmatprep.subr.mxu0 0.0
    %991 = vmatpush1.msra.mxu0 %v107
    %992 = vmatprep.subr.mxu0 0.0
    %993 = vmatpush1.msra.mxu0 %v108
    %994 = vmatprep.subr.mxu0 0.0
    %995 = vmatpush1.msra.mxu0 0.0
    %996 = vmatprep.subr.mxu0 0.0
    %997 = vmatpush1.msra.mxu0 0.0
    %998 = vmatprep.subr.mxu0 0.0
    %999 = vmatpush1.msra.mxu0 0.0
    %1000 = vmatprep.subr.mxu0 0.0
    %1001 = vmatpush1.msra.mxu0 0.0
    %1002 = vmatprep.subr.mxu0 0.0
    %1003 = vmatpush1.msra.mxu0 0.0
    %1004 = vmatprep.subr.mxu0 0.0
    %1005 = vmatpush1.msra.mxu0 0.0
    %1006 = vmatprep.subr.mxu0 0.0
    %1007 = vmatpush1.msra.mxu0 0.0
    %1008 = vmatprep.subr.mxu0 0.0
    %1009 = vmatpush1.msra.mxu0 0.0
    %1010 = vmatprep.subr.mxu0 0.0
    %1011 = vmatpush1.msra.mxu0 0.0
    %1012 = vmatprep.subr.mxu0 0.0
    %1013 = vmatpush1.msra.mxu0 0.0
    %1014 = vmatprep.subr.mxu0 0.0
    %1015 = vmatpush1.msra.mxu0 0.0
    %1016 = vmatprep.subr.mxu0 0.0
    %1017 = vmatpush1.msra.mxu0 0.0
    %1018 = vmatprep.subr.mxu0 0.0
    %1019 = vmatpush1.msra.mxu0 0.0
    %1020 = vmatprep.subr.mxu0 0.0
    %1021 = vmatpush1.msra.mxu0 0.0
    %1022 = vmatprep.subr.mxu0 0.0
    %1023 = vmatpush1.msra.mxu0 0.0
    %1024 = vmatprep.subr.mxu0 0.0
    %1025 = vmatpush1.msra.mxu0 0.0
    %1026 = vmatprep.subr.mxu0 0.0
    %1027 = vmatpush1.msra.mxu0 0.0
    %1028 = vmatprep.subr.mxu0 0.0
    %1029 = vmatpush1.msra.mxu0 0.0
    %1030 = vmatprep.subr.mxu0 0.0
    %1031 = vmatpush1.msra.mxu0 0.0
    %1032 = vmatprep.subr.mxu0 0.0
    %1033 = vmatpush1.msra.mxu0 0.0
    %1034 = vmatprep.subr.mxu0 0.0
    %1035 = vmatpush1.msra.mxu0 0.0
    %1036 = vmatprep.subr.mxu0 0.0
    %1037 = vmatpush1.msra.mxu0 0.0
    %1038 = vmatprep.subr.mxu0 0.0
    %1039 = vmatpush1.msra.mxu0 0.0
    %1040 = vmatprep.subr.mxu0 0.0
    %1041 = vmatpush1.msra.mxu0 0.0
    %1042 = vmatprep.subr.mxu0 0.0
    %1043 = vmatpush1.msra.mxu0 0.0
    %1044 = vmatprep.subr.mxu0 0.0
    %1045 = vmatpush1.msra.mxu0 0.0
    %1046 = vmatprep.subr.mxu0 0.0
    %1047 = vmatpush1.msra.mxu0 0.0
    %1048 = vmatprep.subr.mxu0 0.0
    %1049 = vmatpush1.msra.mxu0 0.0
    %1050 = vmatprep.mubr.f32.mxu0 0.0
    %1051 = vmatmul.mubr.f32.gmra.mrb[0].mxu0 %v984
    %v1052 = vpop.f32.mrb[0].mxu0
    %v1053 = vadd.f32 0.0, %v1052
    %v1054 = vpop.f32.mrb[0].mxu0
    %1055 = vdwg.mxu0
    %v1057 = vsel %vm184, %v100, 0
    %1059 = vmatprep.subr.mxu0 0.0
    %1060 = vmatpush1.msra.mxu0 %v103
    %1061 = vmatprep.subr.mxu0 0.0
    %1062 = vmatpush1.msra.mxu0 %v104
    %1063 = vmatprep.subr.mxu0 0.0
    %1064 = vmatpush1.msra.mxu0 0.0
    %1065 = vmatprep.subr.mxu0 0.0
    %1066 = vmatpush1.msra.mxu0 0.0
    %1067 = vmatprep.subr.mxu0 0.0
    %1068 = vmatpush1.msra.mxu0 0.0
    %1069 = vmatprep.subr.mxu0 0.0
    %1070 = vmatpush1.msra.mxu0 0.0
    %1071 = vmatprep.subr.mxu0 0.0
    %1072 = vmatpush1.msra.mxu0 0.0
    %1073 = vmatprep.subr.mxu0 0.0
    %1074 = vmatpush1.msra.mxu0 0.0
    %1075 = vmatprep.subr.mxu0 0.0
    %1076 = vmatpush1.msra.mxu0 0.0
    %1077 = vmatprep.subr.mxu0 0.0
    %1078 = vmatpush1.msra.mxu0 0.0
    %1079 = vmatprep.subr.mxu0 0.0
    %1080 = vmatpush1.msra.mxu0 0.0
    %1081 = vmatprep.subr.mxu0 0.0
    %1082 = vmatpush1.msra.mxu0 0.0
    %1083 = vmatprep.subr.mxu0 0.0
    %1084 = vmatpush1.msra.mxu0 0.0
    %1085 = vmatprep.subr.mxu0 0.0
    %1086 = vmatpush1.msra.mxu0 0.0
    %1087 = vmatprep.subr.mxu0 0.0
    %1088 = vmatpush1.msra.mxu0 0.0
    %1089 = vmatprep.subr.mxu0 0.0
    %1090 = vmatpush1.msra.mxu0 0.0
    %1091 = vmatprep.subr.mxu0 0.0
    %1092 = vmatpush1.msra.mxu0 0.0
    %1093 = vmatprep.subr.mxu0 0.0
    %1094 = vmatpush1.msra.mxu0 0.0
    %1095 = vmatprep.subr.mxu0 0.0
    %1096 = vmatpush1.msra.mxu0 0.0
    %1097 = vmatprep.subr.mxu0 0.0
    %1098 = vmatpush1.msra.mxu0 0.0
    %1099 = vmatprep.subr.mxu0 0.0
    %1100 = vmatpush1.msra.mxu0 0.0
    %1101 = vmatprep.subr.mxu0 0.0
    %1102 = vmatpush1.msra.mxu0 0.0
    %1103 = vmatprep.subr.mxu0 0.0
    %1104 = vmatpush1.msra.mxu0 0.0
    %1105 = vmatprep.subr.mxu0 0.0
    %1106 = vmatpush1.msra.mxu0 0.0
    %1107 = vmatprep.subr.mxu0 0.0
    %1108 = vmatpush1.msra.mxu0 0.0
    %1109 = vmatprep.subr.mxu0 0.0
    %1110 = vmatpush1.msra.mxu0 0.0
    %1111 = vmatprep.subr.mxu0 0.0
    %1112 = vmatpush1.msra.mxu0 0.0
    %1113 = vmatprep.subr.mxu0 0.0
    %1114 = vmatpush1.msra.mxu0 0.0
    %1115 = vmatprep.subr.mxu0 0.0
    %1116 = vmatpush1.msra.mxu0 0.0
    %1117 = vmatprep.subr.mxu0 0.0
    %1118 = vmatpush1.msra.mxu0 0.0
    %1119 = vmatprep.subr.mxu0 0.0
    %1120 = vmatpush1.msra.mxu0 0.0
    %1121 = vmatprep.subr.mxu0 0.0
    %1122 = vmatpush1.msra.mxu0 0.0
    %1123 = vmatprep.mubr.f32.mxu0 0.0
    %1124 = vmatmul.mubr.f32.gmra.mrb[0].mxu0 %v1057
    %v1125 = vpop.f32.mrb[0].mxu0
    %v1126 = vadd.f32 %v1053, %v1125
    %v1127 = vpop.f32.mrb[0].mxu0
    %1128 = vdwg.mxu0
    %v1129 = vadd.f32 %v1126, %v262
    %v1130 = vxor.u32 %v1129, 2147483648
    %v1131 = vmul.f32 %v1130, 1.442695
    %v1132 = vpow.pop %v1131
    %v1133 = vadd.f32 %v1132, 1.0
    %v1134 = vrcp.pop %v1133
    %v1135 = vmul.f32 1.0, %v1134
    %v1136 = vtanh.pop %v1129
    %v1137 = vmul.f32 %v1135, %v974
    %1139 = vrot.lane.b32.xlu0 %v1136, 64
    %v1140 = vpop.permute.xlu0 %1139
    %v1142 = vmul.f32 %v1135, %v1140
    %1144 = vrot.lane.b32.xlu0 %v1142, 32
    %v1145 = vpop.permute.xlu0 %1144
    %v1147 = vadd.f32 %v1137, %v1145
    %v1148 = vtanh.pop %v1147
    %1150 = vrot.lane.b32.xlu0 %v1148, 64
    %v1151 = vpop.permute.xlu0 %1150
    %v1153 = vmul.f32 %v1135, %v1151
    %1155 = vrot.lane.b32.xlu0 %v1153, 32
    %v1156 = vpop.permute.xlu0 %1155
    %v1157 = vsel %vm110, %v1156, 0
    %1159 = vmatprep.subr.mxu0 0.0
    %1160 = vmatpush1.msra.mxu0 %v105
    %1161 = vmatprep.subr.mxu0 0.0
    %1162 = vmatpush1.msra.mxu0 %v106
    %1163 = vmatprep.subr.mxu0 0.0
    %1164 = vmatpush1.msra.mxu0 %v107
    %1165 = vmatprep.subr.mxu0 0.0
    %1166 = vmatpush1.msra.mxu0 %v108
    %1167 = vmatprep.subr.mxu0 0.0
    %1168 = vmatpush1.msra.mxu0 0.0
    %1169 = vmatprep.subr.mxu0 0.0
    %1170 = vmatpush1.msra.mxu0 0.0
    %1171 = vmatprep.subr.mxu0 0.0
    %1172 = vmatpush1.msra.mxu0 0.0
    %1173 = vmatprep.subr.mxu0 0.0
    %1174 = vmatpush1.msra.mxu0 0.0
    %1175 = vmatprep.subr.mxu0 0.0
    %1176 = vmatpush1.msra.mxu0 0.0
    %1177 = vmatprep.subr.mxu0 0.0
    %1178 = vmatpush1.msra.mxu0 0.0
    %1179 = vmatprep.subr.mxu0 0.0
    %1180 = vmatpush1.msra.mxu0 0.0
    %1181 = vmatprep.subr.mxu0 0.0
    %1182 = vmatpush1.msra.mxu0 0.0
    %1183 = vmatprep.subr.mxu0 0.0
    %1184 = vmatpush1.msra.mxu0 0.0
    %1185 = vmatprep.subr.mxu0 0.0
    %1186 = vmatpush1.msra.mxu0 0.0
    %1187 = vmatprep.subr.mxu0 0.0
    %1188 = vmatpush1.msra.mxu0 0.0
    %1189 = vmatprep.subr.mxu0 0.0
    %1190 = vmatpush1.msra.mxu0 0.0
    %1191 = vmatprep.subr.mxu0 0.0
    %1192 = vmatpush1.msra.mxu0 0.0
    %1193 = vmatprep.subr.mxu0 0.0
    %1194 = vmatpush1.msra.mxu0 0.0
    %1195 = vmatprep.subr.mxu0 0.0
    %1196 = vmatpush1.msra.mxu0 0.0
    %1197 = vmatprep.subr.mxu0 0.0
    %1198 = vmatpush1.msra.mxu0 0.0
    %1199 = vmatprep.subr.mxu0 0.0
    %1200 = vmatpush1.msra.mxu0 0.0
    %1201 = vmatprep.subr.mxu0 0.0
    %1202 = vmatpush1.msra.mxu0 0.0
    %1203 = vmatprep.subr.mxu0 0.0
    %1204 = vmatpush1.msra.mxu0 0.0
    %1205 = vmatprep.subr.mxu0 0.0
    %1206 = vmatpush1.msra.mxu0 0.0
    %1207 = vmatprep.subr.mxu0 0.0
    %1208 = vmatpush1.msra.mxu0 0.0
    %1209 = vmatprep.subr.mxu0 0.0
    %1210 = vmatpush1.msra.mxu0 0.0
    %1211 = vmatprep.subr.mxu0 0.0
    %1212 = vmatpush1.msra.mxu0 0.0
    %1213 = vmatprep.subr.mxu0 0.0
    %1214 = vmatpush1.msra.mxu0 0.0
    %1215 = vmatprep.subr.mxu0 0.0
    %1216 = vmatpush1.msra.mxu0 0.0
    %1217 = vmatprep.subr.mxu0 0.0
    %1218 = vmatpush1.msra.mxu0 0.0
    %1219 = vmatprep.subr.mxu0 0.0
    %1220 = vmatpush1.msra.mxu0 0.0
    %1221 = vmatprep.subr.mxu0 0.0
    %1222 = vmatpush1.msra.mxu0 0.0
    %1223 = vmatprep.mubr.f32.mxu0 0.0
    %1224 = vmatmul.mubr.f32.gmra.mrb[0].mxu0 %v1157
    %v1225 = vpop.f32.mrb[0].mxu0
    %v1226 = vadd.f32 0.0, %v1225
    %v1227 = vpop.f32.mrb[0].mxu0
    %1228 = vdwg.mxu0
    %v1230 = vsel %vm184, %v101, 0
    %1232 = vmatprep.subr.mxu0 0.0
    %1233 = vmatpush1.msra.mxu0 %v103
    %1234 = vmatprep.subr.mxu0 0.0
    %1235 = vmatpush1.msra.mxu0 %v104
    %1236 = vmatprep.subr.mxu0 0.0
    %1237 = vmatpush1.msra.mxu0 0.0
    %1238 = vmatprep.subr.mxu0 0.0
    %1239 = vmatpush1.msra.mxu0 0.0
    %1240 = vmatprep.subr.mxu0 0.0
    %1241 = vmatpush1.msra.mxu0 0.0
    %1242 = vmatprep.subr.mxu0 0.0
    %1243 = vmatpush1.msra.mxu0 0.0
    %1244 = vmatprep.subr.mxu0 0.0
    %1245 = vmatpush1.msra.mxu0 0.0
    %1246 = vmatprep.subr.mxu0 0.0
    %1247 = vmatpush1.msra.mxu0 0.0
    %1248 = vmatprep.subr.mxu0 0.0
    %1249 = vmatpush1.msra.mxu0 0.0
    %1250 = vmatprep.subr.mxu0 0.0
    %1251 = vmatpush1.msra.mxu0 0.0
    %1252 = vmatprep.subr.mxu0 0.0
    %1253 = vmatpush1.msra.mxu0 0.0
    %1254 = vmatprep.subr.mxu0 0.0
    %1255 = vmatpush1.msra.mxu0 0.0
    %1256 = vmatprep.subr.mxu0 0.0
    %1257 = vmatpush1.msra.mxu0 0.0
    %1258 = vmatprep.subr.mxu0 0.0
    %1259 = vmatpush1.msra.mxu0 0.0
    %1260 = vmatprep.subr.mxu0 0.0
    %1261 = vmatpush1.msra.mxu0 0.0
    %1262 = vmatprep.subr.mxu0 0.0
    %1263 = vmatpush1.msra.mxu0 0.0
    %1264 = vmatprep.subr.mxu0 0.0
    %1265 = vmatpush1.msra.mxu0 0.0
    %1266 = vmatprep.subr.mxu0 0.0
    %1267 = vmatpush1.msra.mxu0 0.0
    %1268 = vmatprep.subr.mxu0 0.0
    %1269 = vmatpush1.msra.mxu0 0.0
    %1270 = vmatprep.subr.mxu0 0.0
    %1271 = vmatpush1.msra.mxu0 0.0
    %1272 = vmatprep.subr.mxu0 0.0
    %1273 = vmatpush1.msra.mxu0 0.0
    %1274 = vmatprep.subr.mxu0 0.0
    %1275 = vmatpush1.msra.mxu0 0.0
    %1276 = vmatprep.subr.mxu0 0.0
    %1277 = vmatpush1.msra.mxu0 0.0
    %1278 = vmatprep.subr.mxu0 0.0
    %1279 = vmatpush1.msra.mxu0 0.0
    %1280 = vmatprep.subr.mxu0 0.0
    %1281 = vmatpush1.msra.mxu0 0.0
    %1282 = vmatprep.subr.mxu0 0.0
    %1283 = vmatpush1.msra.mxu0 0.0
    %1284 = vmatprep.subr.mxu0 0.0
    %1285 = vmatpush1.msra.mxu0 0.0
    %1286 = vmatprep.subr.mxu0 0.0
    %1287 = vmatpush1.msra.mxu0 0.0
    %1288 = vmatprep.subr.mxu0 0.0
    %1289 = vmatpush1.msra.mxu0 0.0
    %1290 = vmatprep.subr.mxu0 0.0
    %1291 = vmatpush1.msra.mxu0 0.0
    %1292 = vmatprep.subr.mxu0 0.0
    %1293 = vmatpush1.msra.mxu0 0.0
    %1294 = vmatprep.subr.mxu0 0.0
    %1295 = vmatpush1.msra.mxu0 0.0
    %1296 = vmatprep.mubr.f32.mxu0 0.0
    %1297 = vmatmul.mubr.f32.gmra.mrb[0].mxu0 %v1230
    %v1298 = vpop.f32.mrb[0].mxu0
    %v1299 = vadd.f32 %v1226, %v1298
    %v1300 = vpop.f32.mrb[0].mxu0
    %1301 = vdwg.mxu0
    %v1302 = vadd.f32 %v1299, %v262
    %v1303 = vxor.u32 %v1302, 2147483648
    %v1304 = vmul.f32 %v1303, 1.442695
    %v1305 = vpow.pop %v1304
    %v1306 = vadd.f32 %v1305, 1.0
    %v1307 = vrcp.pop %v1306
    %v1308 = vmul.f32 1.0, %v1307
    %v1309 = vtanh.pop %v1302
    %v1310 = vmul.f32 %v1308, %v1147
    %1312 = vrot.lane.b32.xlu0 %v1309, 64
    %v1313 = vpop.permute.xlu0 %1312
    %v1315 = vmul.f32 %v1308, %v1313
    %1317 = vrot.lane.b32.xlu0 %v1315, 32
    %v1318 = vpop.permute.xlu0 %1317
    %v1320 = vadd.f32 %v1310, %v1318
    %v1321 = vtanh.pop %v1320
    %1323 = vrot.lane.b32.xlu0 %v1321, 64
    %v1324 = vpop.permute.xlu0 %1323
    %v1326 = vmul.f32 %v1308, %v1324
    %1328 = vrot.lane.b32.xlu0 %v1326, 32
    %v1329 = vpop.permute.xlu0 %1328
    %v1330 = vsel %vm110, %v1329, 0
    %1332 = vmatprep.subr.mxu0 0.0
    %1333 = vmatpush1.msra.mxu0 %v105
    %1334 = vmatprep.subr.mxu0 0.0
    %1335 = vmatpush1.msra.mxu0 %v106
    %1336 = vmatprep.subr.mxu0 0.0
    %1337 = vmatpush1.msra.mxu0 %v107
    %1338 = vmatprep.subr.mxu0 0.0
    %1339 = vmatpush1.msra.mxu0 %v108
    %1340 = vmatprep.subr.mxu0 0.0
    %1341 = vmatpush1.msra.mxu0 0.0
    %1342 = vmatprep.subr.mxu0 0.0
    %1343 = vmatpush1.msra.mxu0 0.0
    %1344 = vmatprep.subr.mxu0 0.0
    %1345 = vmatpush1.msra.mxu0 0.0
    %1346 = vmatprep.subr.mxu0 0.0
    %1347 = vmatpush1.msra.mxu0 0.0
    %1348 = vmatprep.subr.mxu0 0.0
    %1349 = vmatpush1.msra.mxu0 0.0
    %1350 = vmatprep.subr.mxu0 0.0
    %1351 = vmatpush1.msra.mxu0 0.0
    %1352 = vmatprep.subr.mxu0 0.0
    %1353 = vmatpush1.msra.mxu0 0.0
    %1354 = vmatprep.subr.mxu0 0.0
    %1355 = vmatpush1.msra.mxu0 0.0
    %1356 = vmatprep.subr.mxu0 0.0
    %1357 = vmatpush1.msra.mxu0 0.0
    %1358 = vmatprep.subr.mxu0 0.0
    %1359 = vmatpush1.msra.mxu0 0.0
    %1360 = vmatprep.subr.mxu0 0.0
    %1361 = vmatpush1.msra.mxu0 0.0
    %1362 = vmatprep.subr.mxu0 0.0
    %1363 = vmatpush1.msra.mxu0 0.0
    %1364 = vmatprep.subr.mxu0 0.0
    %1365 = vmatpush1.msra.mxu0 0.0
    %1366 = vmatprep.subr.mxu0 0.0
    %1367 = vmatpush1.msra.mxu0 0.0
    %1368 = vmatprep.subr.mxu0 0.0
    %1369 = vmatpush1.msra.mxu0 0.0
    %1370 = vmatprep.subr.mxu0 0.0
    %1371 = vmatpush1.msra.mxu0 0.0
    %1372 = vmatprep.subr.mxu0 0.0
    %1373 = vmatpush1.msra.mxu0 0.0
    %1374 = vmatprep.subr.mxu0 0.0
    %1375 = vmatpush1.msra.mxu0 0.0
    %1376 = vmatprep.subr.mxu0 0.0
    %1377 = vmatpush1.msra.mxu0 0.0
    %1378 = vmatprep.subr.mxu0 0.0
    %1379 = vmatpush1.msra.mxu0 0.0
    %1380 = vmatprep.subr.mxu0 0.0
    %1381 = vmatpush1.msra.mxu0 0.0
    %1382 = vmatprep.subr.mxu0 0.0
    %1383 = vmatpush1.msra.mxu0 0.0
    %1384 = vmatprep.subr.mxu0 0.0
    %1385 = vmatpush1.msra.mxu0 0.0
    %1386 = vmatprep.subr.mxu0 0.0
    %1387 = vmatpush1.msra.mxu0 0.0
    %1388 = vmatprep.subr.mxu0 0.0
    %1389 = vmatpush1.msra.mxu0 0.0
    %1390 = vmatprep.subr.mxu0 0.0
    %1391 = vmatpush1.msra.mxu0 0.0
    %1392 = vmatprep.subr.mxu0 0.0
    %1393 = vmatpush1.msra.mxu0 0.0
    %1394 = vmatprep.subr.mxu0 0.0
    %1395 = vmatpush1.msra.mxu0 0.0
    %1396 = vmatprep.mubr.f32.mxu0 0.0
    %1397 = vmatmul.mubr.f32.gmra.mrb[0].mxu0 %v1330
    %v1398 = vpop.f32.mrb[0].mxu0
    %v1399 = vadd.f32 0.0, %v1398
    %v1400 = vpop.f32.mrb[0].mxu0
    %1401 = vdwg.mxu0
    %v1403 = vsel %vm184, %v102, 0
    %1405 = vmatprep.subr.mxu0 0.0
    %1406 = vmatpush1.msra.mxu0 %v103
    %1407 = vmatprep.subr.mxu0 0.0
    %1408 = vmatpush1.msra.mxu0 %v104
    %1409 = vmatprep.subr.mxu0 0.0
    %1410 = vmatpush1.msra.mxu0 0.0
    %1411 = vmatprep.subr.mxu0 0.0
    %1412 = vmatpush1.msra.mxu0 0.0
    %1413 = vmatprep.subr.mxu0 0.0
    %1414 = vmatpush1.msra.mxu0 0.0
    %1415 = vmatprep.subr.mxu0 0.0
    %1416 = vmatpush1.msra.mxu0 0.0
    %1417 = vmatprep.subr.mxu0 0.0
    %1418 = vmatpush1.msra.mxu0 0.0
    %1419 = vmatprep.subr.mxu0 0.0
    %1420 = vmatpush1.msra.mxu0 0.0
    %1421 = vmatprep.subr.mxu0 0.0
    %1422 = vmatpush1.msra.mxu0 0.0
    %1423 = vmatprep.subr.mxu0 0.0
    %1424 = vmatpush1.msra.mxu0 0.0
    %1425 = vmatprep.subr.mxu0 0.0
    %1426 = vmatpush1.msra.mxu0 0.0
    %1427 = vmatprep.subr.mxu0 0.0
    %1428 = vmatpush1.msra.mxu0 0.0
    %1429 = vmatprep.subr.mxu0 0.0
    %1430 = vmatpush1.msra.mxu0 0.0
    %1431 = vmatprep.subr.mxu0 0.0
    %1432 = vmatpush1.msra.mxu0 0.0
    %1433 = vmatprep.subr.mxu0 0.0
    %1434 = vmatpush1.msra.mxu0 0.0
    %1435 = vmatprep.subr.mxu0 0.0
    %1436 = vmatpush1.msra.mxu0 0.0
    %1437 = vmatprep.subr.mxu0 0.0
    %1438 = vmatpush1.msra.mxu0 0.0
    %1439 = vmatprep.subr.mxu0 0.0
    %1440 = vmatpush1.msra.mxu0 0.0
    %1441 = vmatprep.subr.mxu0 0.0
    %1442 = vmatpush1.msra.mxu0 0.0
    %1443 = vmatprep.subr.mxu0 0.0
    %1444 = vmatpush1.msra.mxu0 0.0
    %1445 = vmatprep.subr.mxu0 0.0
    %1446 = vmatpush1.msra.mxu0 0.0
    %1447 = vmatprep.subr.mxu0 0.0
    %1448 = vmatpush1.msra.mxu0 0.0
    %1449 = vmatprep.subr.mxu0 0.0
    %1450 = vmatpush1.msra.mxu0 0.0
    %1451 = vmatprep.subr.mxu0 0.0
    %1452 = vmatpush1.msra.mxu0 0.0
    %1453 = vmatprep.subr.mxu0 0.0
    %1454 = vmatpush1.msra.mxu0 0.0
    %1455 = vmatprep.subr.mxu0 0.0
    %1456 = vmatpush1.msra.mxu0 0.0
    %1457 = vmatprep.subr.mxu0 0.0
    %1458 = vmatpush1.msra.mxu0 0.0
    %1459 = vmatprep.subr.mxu0 0.0
    %1460 = vmatpush1.msra.mxu0 0.0
    %1461 = vmatprep.subr.mxu0 0.0
    %1462 = vmatpush1.msra.mxu0 0.0
    %1463 = vmatprep.subr.mxu0 0.0
    %1464 = vmatpush1.msra.mxu0 0.0
    %1465 = vmatprep.subr.mxu0 0.0
    %1466 = vmatpush1.msra.mxu0 0.0
    %1467 = vmatprep.subr.mxu0 0.0
    %1468 = vmatpush1.msra.mxu0 0.0
    %1469 = vmatprep.mubr.f32.mxu0 0.0
    %1470 = vmatmul.mubr.f32.gmra.mrb[0].mxu0 %v1403
    %v1471 = vpop.f32.mrb[0].mxu0
    %v1472 = vadd.f32 %v1399, %v1471
    %v1473 = vpop.f32.mrb[0].mxu0
    %1474 = vdwg.mxu0
    %v1475 = vadd.f32 %v1472, %v262
    %v1476 = vxor.u32 %v1475, 2147483648
    %v1477 = vmul.f32 %v1476, 1.442695
    %v1478 = vpow.pop %v1477
    %v1479 = vadd.f32 %v1478, 1.0
    %v1480 = vrcp.pop %v1479
    %v1481 = vmul.f32 1.0, %v1480
    %v1482 = vtanh.pop %v1475
    %v1483 = vmul.f32 %v1481, %v1320
    %1485 = vrot.lane.b32.xlu0 %v1482, 64
    %v1486 = vpop.permute.xlu0 %1485
    %v1488 = vmul.f32 %v1481, %v1486
    %1490 = vrot.lane.b32.xlu0 %v1488, 32
    %v1491 = vpop.permute.xlu0 %1490
    %v1493 = vadd.f32 %v1483, %v1491
    %v1494 = vtanh.pop %v1493
    %1496 = vrot.lane.b32.xlu0 %v1494, 64
    %v1497 = vpop.permute.xlu0 %1496
    %v1499 = vmul.f32 %v1481, %v1497
    %v1500 = vld [vmem:[#allocation8] sm:$0xff]
    %v1501 = vld [vmem:[#allocation8 + $0x8] sm:$0xff]
    %v1502 = vld [vmem:[#allocation10] sm:$0xff]
    %v1503 = vld [vmem:[#allocation10 + $0x8] sm:$0xff]
    %v1504 = vld [vmem:[#allocation10 + $0x10] sm:$0xff]
    %v1505 = vld [vmem:[#allocation10 + $0x18] sm:$0xff]
    %v1506 = vld [vmem:[%s6] sm:$0x1]
    %1507 = vmatprep.subr.mxu0 0.0
    %1508 = vmatpush1.msra.mxu0 %v1502
    %1509 = vmatprep.subr.mxu0 0.0
    %1510 = vmatpush1.msra.mxu0 %v1503
    %1511 = vmatprep.subr.mxu0 0.0
    %1512 = vmatpush1.msra.mxu0 %v1504
    %1513 = vmatprep.subr.mxu0 0.0
    %1514 = vmatpush1.msra.mxu0 %v1505
    %1515 = vmatprep.subr.mxu0 0.0
    %1516 = vmatpush1.msra.mxu0 0.0
    %1517 = vmatprep.subr.mxu0 0.0
    %1518 = vmatpush1.msra.mxu0 0.0
    %1519 = vmatprep.subr.mxu0 0.0
    %1520 = vmatpush1.msra.mxu0 0.0
    %1521 = vmatprep.subr.mxu0 0.0
    %1522 = vmatpush1.msra.mxu0 0.0
    %1523 = vmatprep.subr.mxu0 0.0
    %1524 = vmatpush1.msra.mxu0 0.0
    %1525 = vmatprep.subr.mxu0 0.0
    %1526 = vmatpush1.msra.mxu0 0.0
    %1527 = vmatprep.subr.mxu0 0.0
    %1528 = vmatpush1.msra.mxu0 0.0
    %1529 = vmatprep.subr.mxu0 0.0
    %1530 = vmatpush1.msra.mxu0 0.0
    %1531 = vmatprep.subr.mxu0 0.0
    %1532 = vmatpush1.msra.mxu0 0.0
    %1533 = vmatprep.subr.mxu0 0.0
    %1534 = vmatpush1.msra.mxu0 0.0
    %1535 = vmatprep.subr.mxu0 0.0
    %1536 = vmatpush1.msra.mxu0 0.0
    %1537 = vmatprep.subr.mxu0 0.0
    %1538 = vmatpush1.msra.mxu0 0.0
    %1539 = vmatprep.subr.mxu0 0.0
    %1540 = vmatpush1.msra.mxu0 0.0
    %1541 = vmatprep.subr.mxu0 0.0
    %1542 = vmatpush1.msra.mxu0 0.0
    %1543 = vmatprep.subr.mxu0 0.0
    %1544 = vmatpush1.msra.mxu0 0.0
    %1545 = vmatprep.subr.mxu0 0.0
    %1546 = vmatpush1.msra.mxu0 0.0
    %1547 = vmatprep.subr.mxu0 0.0
    %1548 = vmatpush1.msra.mxu0 0.0
    %1549 = vmatprep.subr.mxu0 0.0
    %1550 = vmatpush1.msra.mxu0 0.0
    %1551 = vmatprep.subr.mxu0 0.0
    %1552 = vmatpush1.msra.mxu0 0.0
    %1553 = vmatprep.subr.mxu0 0.0
    %1554 = vmatpush1.msra.mxu0 0.0
    %1555 = vmatprep.subr.mxu0 0.0
    %1556 = vmatpush1.msra.mxu0 0.0
    %1557 = vmatprep.subr.mxu0 0.0
    %1558 = vmatpush1.msra.mxu0 0.0
    %1559 = vmatprep.subr.mxu0 0.0
    %1560 = vmatpush1.msra.mxu0 0.0
    %1561 = vmatprep.subr.mxu0 0.0
    %1562 = vmatpush1.msra.mxu0 0.0
    %1563 = vmatprep.subr.mxu0 0.0
    %1564 = vmatpush1.msra.mxu0 0.0
    %1565 = vmatprep.subr.mxu0 0.0
    %1566 = vmatpush1.msra.mxu0 0.0
    %1567 = vmatprep.subr.mxu0 0.0
    %1568 = vmatpush1.msra.mxu0 0.0
    %1569 = vmatprep.subr.mxu0 0.0
    %1570 = vmatpush1.msra.mxu0 0.0
    %1571 = vmatprep.mubr.f32.mxu0 0.0
    %1572 = vmatmul.mubr.f32.gmra.mrb[0].mxu0 %v112
    %v1573 = vpop.f32.mrb[0].mxu0
    %v1574 = vadd.f32 0.0, %v1573
    %v1575 = vpop.f32.mrb[0].mxu0
    %1576 = vdwg.mxu0
    %1577 = vmatprep.subr.mxu0 0.0
    %1578 = vmatpush1.msra.mxu0 %v1500
    %1579 = vmatprep.subr.mxu0 0.0
    %1580 = vmatpush1.msra.mxu0 %v1501
    %1581 = vmatprep.subr.mxu0 0.0
    %1582 = vmatpush1.msra.mxu0 0.0
    %1583 = vmatprep.subr.mxu0 0.0
    %1584 = vmatpush1.msra.mxu0 0.0
    %1585 = vmatprep.subr.mxu0 0.0
    %1586 = vmatpush1.msra.mxu0 0.0
    %1587 = vmatprep.subr.mxu0 0.0
    %1588 = vmatpush1.msra.mxu0 0.0
    %1589 = vmatprep.subr.mxu0 0.0
    %1590 = vmatpush1.msra.mxu0 0.0
    %1591 = vmatprep.subr.mxu0 0.0
    %1592 = vmatpush1.msra.mxu0 0.0
    %1593 = vmatprep.subr.mxu0 0.0
    %1594 = vmatpush1.msra.mxu0 0.0
    %1595 = vmatprep.subr.mxu0 0.0
    %1596 = vmatpush1.msra.mxu0 0.0
    %1597 = vmatprep.subr.mxu0 0.0
    %1598 = vmatpush1.msra.mxu0 0.0
    %1599 = vmatprep.subr.mxu0 0.0
    %1600 = vmatpush1.msra.mxu0 0.0
    %1601 = vmatprep.subr.mxu0 0.0
    %1602 = vmatpush1.msra.mxu0 0.0
    %1603 = vmatprep.subr.mxu0 0.0
    %1604 = vmatpush1.msra.mxu0 0.0
    %1605 = vmatprep.subr.mxu0 0.0
    %1606 = vmatpush1.msra.mxu0 0.0
    %1607 = vmatprep.subr.mxu0 0.0
    %1608 = vmatpush1.msra.mxu0 0.0
    %1609 = vmatprep.subr.mxu0 0.0
    %1610 = vmatpush1.msra.mxu0 0.0
    %1611 = vmatprep.subr.mxu0 0.0
    %1612 = vmatpush1.msra.mxu0 0.0
    %1613 = vmatprep.subr.mxu0 0.0
    %1614 = vmatpush1.msra.mxu0 0.0
    %1615 = vmatprep.subr.mxu0 0.0
    %1616 = vmatpush1.msra.mxu0 0.0
    %1617 = vmatprep.subr.mxu0 0.0
    %1618 = vmatpush1.msra.mxu0 0.0
    %1619 = vmatprep.subr.mxu0 0.0
    %1620 = vmatpush1.msra.mxu0 0.0
    %1621 = vmatprep.subr.mxu0 0.0
    %1622 = vmatpush1.msra.mxu0 0.0
    %1623 = vmatprep.subr.mxu0 0.0
    %1624 = vmatpush1.msra.mxu0 0.0
    %1625 = vmatprep.subr.mxu0 0.0
    %1626 = vmatpush1.msra.mxu0 0.0
    %1627 = vmatprep.subr.mxu0 0.0
    %1628 = vmatpush1.msra.mxu0 0.0
    %1629 = vmatprep.subr.mxu0 0.0
    %1630 = vmatpush1.msra.mxu0 0.0
    %1631 = vmatprep.subr.mxu0 0.0
    %1632 = vmatpush1.msra.mxu0 0.0
    %1633 = vmatprep.subr.mxu0 0.0
    %1634 = vmatpush1.msra.mxu0 0.0
    %1635 = vmatprep.subr.mxu0 0.0
    %1636 = vmatpush1.msra.mxu0 0.0
    %1637 = vmatprep.subr.mxu0 0.0
    %1638 = vmatpush1.msra.mxu0 0.0
    %1639 = vmatprep.subr.mxu0 0.0
    %1640 = vmatpush1.msra.mxu0 0.0
    %1641 = vmatprep.mubr.f32.mxu0 0.0
    %1642 = vmatmul.mubr.f32.gmra.mrb[0].mxu0 %v1403
    %v1643 = vpop.f32.mrb[0].mxu0
    %v1644 = vadd.f32 %v1574, %v1643
    %v1645 = vpop.f32.mrb[0].mxu0
    %1646 = vdwg.mxu0
    %v1648 = vlaneseq
    %v1649 = vshrl.u32 %v1648, 7
    %v1650 = vsub.s32 0, %v1649
    %v1651 = vrot.slane %v1506, %v1650
    %v1653 = vadd.f32 %v1644, %v1651
    %v1654 = vxor.u32 %v1653, 2147483648
    %v1655 = vmul.f32 %v1654, 1.442695
    %v1656 = vpow.pop %v1655
    %v1657 = vadd.f32 %v1656, 1.0
    %v1658 = vrcp.pop %v1657
    %v1659 = vmul.f32 1.0, %v1658
    %v1660 = vtanh.pop %v1653
    %v1661 = vmul.f32 %v1659, 0.0
    %1663 = vrot.lane.b32.xlu0 %v1660, 64
    %v1664 = vpop.permute.xlu0 %1663
    %v1666 = vmul.f32 %v1659, %v1664
    %1668 = vrot.lane.b32.xlu0 %v1666, 32
    %v1669 = vpop.permute.xlu0 %1668
    %v1671 = vadd.f32 %v1661, %v1669
    %v1672 = vtanh.pop %v1671
    %1674 = vrot.lane.b32.xlu0 %v1672, 64
    %v1675 = vpop.permute.xlu0 %1674
    %v1677 = vmul.f32 %v1659, %v1675
    %1679 = vrot.lane.b32.xlu0 %v1677, 32
    %v1680 = vpop.permute.xlu0 %1679
    %v1681 = vsel %vm110, %v1680, 0
    %1683 = vmatprep.subr.mxu0 0.0
    %1684 = vmatpush1.msra.mxu0 %v1502
    %1685 = vmatprep.subr.mxu0 0.0
    %1686 = vmatpush1.msra.mxu0 %v1503
    %1687 = vmatprep.subr.mxu0 0.0
    %1688 = vmatpush1.msra.mxu0 %v1504
    %1689 = vmatprep.subr.mxu0 0.0
    %1690 = vmatpush1.msra.mxu0 %v1505
    %1691 = vmatprep.subr.mxu0 0.0
    %1692 = vmatpush1.msra.mxu0 0.0
    %1693 = vmatprep.subr.mxu0 0.0
    %1694 = vmatpush1.msra.mxu0 0.0
    %1695 = vmatprep.subr.mxu0 0.0
    %1696 = vmatpush1.msra.mxu0 0.0
    %1697 = vmatprep.subr.mxu0 0.0
    %1698 = vmatpush1.msra.mxu0 0.0
    %1699 = vmatprep.subr.mxu0 0.0
    %1700 = vmatpush1.msra.mxu0 0.0
    %1701 = vmatprep.subr.mxu0 0.0
    %1702 = vmatpush1.msra.mxu0 0.0
    %1703 = vmatprep.subr.mxu0 0.0
    %1704 = vmatpush1.msra.mxu0 0.0
    %1705 = vmatprep.subr.mxu0 0.0
    %1706 = vmatpush1.msra.mxu0 0.0
    %1707 = vmatprep.subr.mxu0 0.0
    %1708 = vmatpush1.msra.mxu0 0.0
    %1709 = vmatprep.subr.mxu0 0.0
    %1710 = vmatpush1.msra.mxu0 0.0
    %1711 = vmatprep.subr.mxu0 0.0
    %1712 = vmatpush1.msra.mxu0 0.0
    %1713 = vmatprep.subr.mxu0 0.0
    %1714 = vmatpush1.msra.mxu0 0.0
    %1715 = vmatprep.subr.mxu0 0.0
    %1716 = vmatpush1.msra.mxu0 0.0
    %1717 = vmatprep.subr.mxu0 0.0
    %1718 = vmatpush1.msra.mxu0 0.0
    %1719 = vmatprep.subr.mxu0 0.0
    %1720 = vmatpush1.msra.mxu0 0.0
    %1721 = vmatprep.subr.mxu0 0.0
    %1722 = vmatpush1.msra.mxu0 0.0
    %1723 = vmatprep.subr.mxu0 0.0
    %1724 = vmatpush1.msra.mxu0 0.0
    %1725 = vmatprep.subr.mxu0 0.0
    %1726 = vmatpush1.msra.mxu0 0.0
    %1727 = vmatprep.subr.mxu0 0.0
    %1728 = vmatpush1.msra.mxu0 0.0
    %1729 = vmatprep.subr.mxu0 0.0
    %1730 = vmatpush1.msra.mxu0 0.0
    %1731 = vmatprep.subr.mxu0 0.0
    %1732 = vmatpush1.msra.mxu0 0.0
    %1733 = vmatprep.subr.mxu0 0.0
    %1734 = vmatpush1.msra.mxu0 0.0
    %1735 = vmatprep.subr.mxu0 0.0
    %1736 = vmatpush1.msra.mxu0 0.0
    %1737 = vmatprep.subr.mxu0 0.0
    %1738 = vmatpush1.msra.mxu0 0.0
    %1739 = vmatprep.subr.mxu0 0.0
    %1740 = vmatpush1.msra.mxu0 0.0
    %1741 = vmatprep.subr.mxu0 0.0
    %1742 = vmatpush1.msra.mxu0 0.0
    %1743 = vmatprep.subr.mxu0 0.0
    %1744 = vmatpush1.msra.mxu0 0.0
    %1745 = vmatprep.subr.mxu0 0.0
    %1746 = vmatpush1.msra.mxu0 0.0
    %1747 = vmatprep.mubr.f32.mxu0 0.0
    %1748 = vmatmul.mubr.f32.gmra.mrb[0].mxu0 %v1681
    %v1749 = vpop.f32.mrb[0].mxu0
    %v1750 = vadd.f32 0.0, %v1749
    %v1751 = vpop.f32.mrb[0].mxu0
    %1752 = vdwg.mxu0
    %1753 = vmatprep.subr.mxu0 0.0
    %1754 = vmatpush1.msra.mxu0 %v1500
    %1755 = vmatprep.subr.mxu0 0.0
    %1756 = vmatpush1.msra.mxu0 %v1501
    %1757 = vmatprep.subr.mxu0 0.0
    %1758 = vmatpush1.msra.mxu0 0.0
    %1759 = vmatprep.subr.mxu0 0.0
    %1760 = vmatpush1.msra.mxu0 0.0
    %1761 = vmatprep.subr.mxu0 0.0
    %1762 = vmatpush1.msra.mxu0 0.0
    %1763 = vmatprep.subr.mxu0 0.0
    %1764 = vmatpush1.msra.mxu0 0.0
    %1765 = vmatprep.subr.mxu0 0.0
    %1766 = vmatpush1.msra.mxu0 0.0
    %1767 = vmatprep.subr.mxu0 0.0
    %1768 = vmatpush1.msra.mxu0 0.0
    %1769 = vmatprep.subr.mxu0 0.0
    %1770 = vmatpush1.msra.mxu0 0.0
    %1771 = vmatprep.subr.mxu0 0.0
    %1772 = vmatpush1.msra.mxu0 0.0
    %1773 = vmatprep.subr.mxu0 0.0
    %1774 = vmatpush1.msra.mxu0 0.0
    %1775 = vmatprep.subr.mxu0 0.0
    %1776 = vmatpush1.msra.mxu0 0.0
    %1777 = vmatprep.subr.mxu0 0.0
    %1778 = vmatpush1.msra.mxu0 0.0
    %1779 = vmatprep.subr.mxu0 0.0
    %1780 = vmatpush1.msra.mxu0 0.0
    %1781 = vmatprep.subr.mxu0 0.0
    %1782 = vmatpush1.msra.mxu0 0.0
    %1783 = vmatprep.subr.mxu0 0.0
    %1784 = vmatpush1.msra.mxu0 0.0
    %1785 = vmatprep.subr.mxu0 0.0
    %1786 = vmatpush1.msra.mxu0 0.0
    %1787 = vmatprep.subr.mxu0 0.0
    %1788 = vmatpush1.msra.mxu0 0.0
    %1789 = vmatprep.subr.mxu0 0.0
    %1790 = vmatpush1.msra.mxu0 0.0
    %1791 = vmatprep.subr.mxu0 0.0
    %1792 = vmatpush1.msra.mxu0 0.0
    %1793 = vmatprep.subr.mxu0 0.0
    %1794 = vmatpush1.msra.mxu0 0.0
    %1795 = vmatprep.subr.mxu0 0.0
    %1796 = vmatpush1.msra.mxu0 0.0
    %1797 = vmatprep.subr.mxu0 0.0
    %1798 = vmatpush1.msra.mxu0 0.0
    %1799 = vmatprep.subr.mxu0 0.0
    %1800 = vmatpush1.msra.mxu0 0.0
    %1801 = vmatprep.subr.mxu0 0.0
    %1802 = vmatpush1.msra.mxu0 0.0
    %1803 = vmatprep.subr.mxu0 0.0
    %1804 = vmatpush1.msra.mxu0 0.0
    %1805 = vmatprep.subr.mxu0 0.0
    %1806 = vmatpush1.msra.mxu0 0.0
    %1807 = vmatprep.subr.mxu0 0.0
    %1808 = vmatpush1.msra.mxu0 0.0
    %1809 = vmatprep.subr.mxu0 0.0
    %1810 = vmatpush1.msra.mxu0 0.0
    %1811 = vmatprep.subr.mxu0 0.0
    %1812 = vmatpush1.msra.mxu0 0.0
    %1813 = vmatprep.subr.mxu0 0.0
    %1814 = vmatpush1.msra.mxu0 0.0
    %1815 = vmatprep.subr.mxu0 0.0
    %1816 = vmatpush1.msra.mxu0 0.0
    %1817 = vmatprep.mubr.f32.mxu0 0.0
    %1818 = vmatmul.mubr.f32.gmra.mrb[0].mxu0 %v1230
    %v1819 = vpop.f32.mrb[0].mxu0
    %v1820 = vadd.f32 %v1750, %v1819
    %v1821 = vpop.f32.mrb[0].mxu0
    %1822 = vdwg.mxu0
    %v1823 = vadd.f32 %v1820, %v1651
    %v1824 = vxor.u32 %v1823, 2147483648
    %v1825 = vmul.f32 %v1824, 1.442695
    %v1826 = vpow.pop %v1825
    %v1827 = vadd.f32 %v1826, 1.0
    %v1828 = vrcp.pop %v1827
    %v1829 = vmul.f32 1.0, %v1828
    %v1830 = vtanh.pop %v1823
    %v1831 = vmul.f32 %v1829, %v1671
    %1833 = vrot.lane.b32.xlu0 %v1830, 64
    %v1834 = vpop.permute.xlu0 %1833
    %v1836 = vmul.f32 %v1829, %v1834
    %1838 = vrot.lane.b32.xlu0 %v1836, 32
    %v1839 = vpop.permute.xlu0 %1838
    %v1841 = vadd.f32 %v1831, %v1839
    %v1842 = vtanh.pop %v1841
    %1844 = vrot.lane.b32.xlu0 %v1842, 64
    %v1845 = vpop.permute.xlu0 %1844
    %v1847 = vmul.f32 %v1829, %v1845
    %1849 = vrot.lane.b32.xlu0 %v1847, 32
    %v1850 = vpop.permute.xlu0 %1849
    %v1851 = vsel %vm110, %v1850, 0
    %1853 = vmatprep.subr.mxu0 0.0
    %1854 = vmatpush1.msra.mxu0 %v1502
    %1855 = vmatprep.subr.mxu0 0.0
    %1856 = vmatpush1.msra.mxu0 %v1503
    %1857 = vmatprep.subr.mxu0 0.0
    %1858 = vmatpush1.msra.mxu0 %v1504
    %1859 = vmatprep.subr.mxu0 0.0
    %1860 = vmatpush1.msra.mxu0 %v1505
    %1861 = vmatprep.subr.mxu0 0.0
    %1862 = vmatpush1.msra.mxu0 0.0
    %1863 = vmatprep.subr.mxu0 0.0
    %1864 = vmatpush1.msra.mxu0 0.0
    %1865 = vmatprep.subr.mxu0 0.0
    %1866 = vmatpush1.msra.mxu0 0.0
    %1867 = vmatprep.subr.mxu0 0.0
    %1868 = vmatpush1.msra.mxu0 0.0
    %1869 = vmatprep.subr.mxu0 0.0
    %1870 = vmatpush1.msra.mxu0 0.0
    %1871 = vmatprep.subr.mxu0 0.0
    %1872 = vmatpush1.msra.mxu0 0.0
    %1873 = vmatprep.subr.mxu0 0.0
    %1874 = vmatpush1.msra.mxu0 0.0
    %1875 = vmatprep.subr.mxu0 0.0
    %1876 = vmatpush1.msra.mxu0 0.0
    %1877 = vmatprep.subr.mxu0 0.0
    %1878 = vmatpush1.msra.mxu0 0.0
    %1879 = vmatprep.subr.mxu0 0.0
    %1880 = vmatpush1.msra.mxu0 0.0
    %1881 = vmatprep.subr.mxu0 0.0
    %1882 = vmatpush1.msra.mxu0 0.0
    %1883 = vmatprep.subr.mxu0 0.0
    %1884 = vmatpush1.msra.mxu0 0.0
    %1885 = vmatprep.subr.mxu0 0.0
    %1886 = vmatpush1.msra.mxu0 0.0
    %1887 = vmatprep.subr.mxu0 0.0
    %1888 = vmatpush1.msra.mxu0 0.0
    %1889 = vmatprep.subr.mxu0 0.0
    %1890 = vmatpush1.msra.mxu0 0.0
    %1891 = vmatprep.subr.mxu0 0.0
    %1892 = vmatpush1.msra.mxu0 0.0
    %1893 = vmatprep.subr.mxu0 0.0
    %1894 = vmatpush1.msra.mxu0 0.0
    %1895 = vmatprep.subr.mxu0 0.0
    %1896 = vmatpush1.msra.mxu0 0.0
    %1897 = vmatprep.subr.mxu0 0.0
    %1898 = vmatpush1.msra.mxu0 0.0
    %1899 = vmatprep.subr.mxu0 0.0
    %1900 = vmatpush1.msra.mxu0 0.0
    %1901 = vmatprep.subr.mxu0 0.0
    %1902 = vmatpush1.msra.mxu0 0.0
    %1903 = vmatprep.subr.mxu0 0.0
    %1904 = vmatpush1.msra.mxu0 0.0
    %1905 = vmatprep.subr.mxu0 0.0
    %1906 = vmatpush1.msra.mxu0 0.0
    %1907 = vmatprep.subr.mxu0 0.0
    %1908 = vmatpush1.msra.mxu0 0.0
    %1909 = vmatprep.subr.mxu0 0.0
    %1910 = vmatpush1.msra.mxu0 0.0
    %1911 = vmatprep.subr.mxu0 0.0
    %1912 = vmatpush1.msra.mxu0 0.0
    %1913 = vmatprep.subr.mxu0 0.0
    %1914 = vmatpush1.msra.mxu0 0.0
    %1915 = vmatprep.subr.mxu0 0.0
    %1916 = vmatpush1.msra.mxu0 0.0
    %1917 = vmatprep.mubr.f32.mxu0 0.0
    %1918 = vmatmul.mubr.f32.gmra.mrb[0].mxu0 %v1851
    %v1919 = vpop.f32.mrb[0].mxu0
    %v1920 = vadd.f32 0.0, %v1919
    %v1921 = vpop.f32.mrb[0].mxu0
    %1922 = vdwg.mxu0
    %1923 = vmatprep.subr.mxu0 0.0
    %1924 = vmatpush1.msra.mxu0 %v1500
    %1925 = vmatprep.subr.mxu0 0.0
    %1926 = vmatpush1.msra.mxu0 %v1501
    %1927 = vmatprep.subr.mxu0 0.0
    %1928 = vmatpush1.msra.mxu0 0.0
    %1929 = vmatprep.subr.mxu0 0.0
    %1930 = vmatpush1.msra.mxu0 0.0
    %1931 = vmatprep.subr.mxu0 0.0
    %1932 = vmatpush1.msra.mxu0 0.0
    %1933 = vmatprep.subr.mxu0 0.0
    %1934 = vmatpush1.msra.mxu0 0.0
    %1935 = vmatprep.subr.mxu0 0.0
    %1936 = vmatpush1.msra.mxu0 0.0
    %1937 = vmatprep.subr.mxu0 0.0
    %1938 = vmatpush1.msra.mxu0 0.0
    %1939 = vmatprep.subr.mxu0 0.0
    %1940 = vmatpush1.msra.mxu0 0.0
    %1941 = vmatprep.subr.mxu0 0.0
    %1942 = vmatpush1.msra.mxu0 0.0
    %1943 = vmatprep.subr.mxu0 0.0
    %1944 = vmatpush1.msra.mxu0 0.0
    %1945 = vmatprep.subr.mxu0 0.0
    %1946 = vmatpush1.msra.mxu0 0.0
    %1947 = vmatprep.subr.mxu0 0.0
    %1948 = vmatpush1.msra.mxu0 0.0
    %1949 = vmatprep.subr.mxu0 0.0
    %1950 = vmatpush1.msra.mxu0 0.0
    %1951 = vmatprep.subr.mxu0 0.0
    %1952 = vmatpush1.msra.mxu0 0.0
    %1953 = vmatprep.subr.mxu0 0.0
    %1954 = vmatpush1.msra.mxu0 0.0
    %1955 = vmatprep.subr.mxu0 0.0
    %1956 = vmatpush1.msra.mxu0 0.0
    %1957 = vmatprep.subr.mxu0 0.0
    %1958 = vmatpush1.msra.mxu0 0.0
    %1959 = vmatprep.subr.mxu0 0.0
    %1960 = vmatpush1.msra.mxu0 0.0
    %1961 = vmatprep.subr.mxu0 0.0
    %1962 = vmatpush1.msra.mxu0 0.0
    %1963 = vmatprep.subr.mxu0 0.0
    %1964 = vmatpush1.msra.mxu0 0.0
    %1965 = vmatprep.subr.mxu0 0.0
    %1966 = vmatpush1.msra.mxu0 0.0
    %1967 = vmatprep.subr.mxu0 0.0
    %1968 = vmatpush1.msra.mxu0 0.0
    %1969 = vmatprep.subr.mxu0 0.0
    %1970 = vmatpush1.msra.mxu0 0.0
    %1971 = vmatprep.subr.mxu0 0.0
    %1972 = vmatpush1.msra.mxu0 0.0
    %1973 = vmatprep.subr.mxu0 0.0
    %1974 = vmatpush1.msra.mxu0 0.0
    %1975 = vmatprep.subr.mxu0 0.0
    %1976 = vmatpush1.msra.mxu0 0.0
    %1977 = vmatprep.subr.mxu0 0.0
    %1978 = vmatpush1.msra.mxu0 0.0
    %1979 = vmatprep.subr.mxu0 0.0
    %1980 = vmatpush1.msra.mxu0 0.0
    %1981 = vmatprep.subr.mxu0 0.0
    %1982 = vmatpush1.msra.mxu0 0.0
    %1983 = vmatprep.subr.mxu0 0.0
    %1984 = vmatpush1.msra.mxu0 0.0
    %1985 = vmatprep.subr.mxu0 0.0
    %1986 = vmatpush1.msra.mxu0 0.0
    %1987 = vmatprep.mubr.f32.mxu0 0.0
    %1988 = vmatmul.mubr.f32.gmra.mrb[0].mxu0 %v1057
    %v1989 = vpop.f32.mrb[0].mxu0
    %v1990 = vadd.f32 %v1920, %v1989
    %v1991 = vpop.f32.mrb[0].mxu0
    %1992 = vdwg.mxu0
    %v1993 = vadd.f32 %v1990, %v1651
    %v1994 = vxor.u32 %v1993, 2147483648
    %v1995 = vmul.f32 %v1994, 1.442695
    %v1996 = vpow.pop %v1995
    %v1997 = vadd.f32 %v1996, 1.0
    %v1998 = vrcp.pop %v1997
    %v1999 = vmul.f32 1.0, %v1998
    %v2000 = vtanh.pop %v1993
    %v2001 = vmul.f32 %v1999, %v1841
    %2003 = vrot.lane.b32.xlu0 %v2000, 64
    %v2004 = vpop.permute.xlu0 %2003
    %v2006 = vmul.f32 %v1999, %v2004
    %2008 = vrot.lane.b32.xlu0 %v2006, 32
    %v2009 = vpop.permute.xlu0 %2008
    %v2011 = vadd.f32 %v2001, %v2009
    %v2012 = vtanh.pop %v2011
    %2014 = vrot.lane.b32.xlu0 %v2012, 64
    %v2015 = vpop.permute.xlu0 %2014
    %v2017 = vmul.f32 %v1999, %v2015
    %2019 = vrot.lane.b32.xlu0 %v2017, 32
    %v2020 = vpop.permute.xlu0 %2019
    %v2021 = vsel %vm110, %v2020, 0
    %2023 = vmatprep.subr.mxu0 0.0
    %2024 = vmatpush1.msra.mxu0 %v1502
    %2025 = vmatprep.subr.mxu0 0.0
    %2026 = vmatpush1.msra.mxu0 %v1503
    %2027 = vmatprep.subr.mxu0 0.0
    %2028 = vmatpush1.msra.mxu0 %v1504
    %2029 = vmatprep.subr.mxu0 0.0
    %2030 = vmatpush1.msra.mxu0 %v1505
    %2031 = vmatprep.subr.mxu0 0.0
    %2032 = vmatpush1.msra.mxu0 0.0
    %2033 = vmatprep.subr.mxu0 0.0
    %2034 = vmatpush1.msra.mxu0 0.0
    %2035 = vmatprep.subr.mxu0 0.0
    %2036 = vmatpush1.msra.mxu0 0.0
    %2037 = vmatprep.subr.mxu0 0.0
    %2038 = vmatpush1.msra.mxu0 0.0
    %2039 = vmatprep.subr.mxu0 0.0
    %2040 = vmatpush1.msra.mxu0 0.0
    %2041 = vmatprep.subr.mxu0 0.0
    %2042 = vmatpush1.msra.mxu0 0.0
    %2043 = vmatprep.subr.mxu0 0.0
    %2044 = vmatpush1.msra.mxu0 0.0
    %2045 = vmatprep.subr.mxu0 0.0
    %2046 = vmatpush1.msra.mxu0 0.0
    %2047 = vmatprep.subr.mxu0 0.0
    %2048 = vmatpush1.msra.mxu0 0.0
    %2049 = vmatprep.subr.mxu0 0.0
    %2050 = vmatpush1.msra.mxu0 0.0
    %2051 = vmatprep.subr.mxu0 0.0
    %2052 = vmatpush1.msra.mxu0 0.0
    %2053 = vmatprep.subr.mxu0 0.0
    %2054 = vmatpush1.msra.mxu0 0.0
    %2055 = vmatprep.subr.mxu0 0.0
    %2056 = vmatpush1.msra.mxu0 0.0
    %2057 = vmatprep.subr.mxu0 0.0
    %2058 = vmatpush1.msra.mxu0 0.0
    %2059 = vmatprep.subr.mxu0 0.0
    %2060 = vmatpush1.msra.mxu0 0.0
    %2061 = vmatprep.subr.mxu0 0.0
    %2062 = vmatpush1.msra.mxu0 0.0
    %2063 = vmatprep.subr.mxu0 0.0
    %2064 = vmatpush1.msra.mxu0 0.0
    %2065 = vmatprep.subr.mxu0 0.0
    %2066 = vmatpush1.msra.mxu0 0.0
    %2067 = vmatprep.subr.mxu0 0.0
    %2068 = vmatpush1.msra.mxu0 0.0
    %2069 = vmatprep.subr.mxu0 0.0
    %2070 = vmatpush1.msra.mxu0 0.0
    %2071 = vmatprep.subr.mxu0 0.0
    %2072 = vmatpush1.msra.mxu0 0.0
    %2073 = vmatprep.subr.mxu0 0.0
    %2074 = vmatpush1.msra.mxu0 0.0
    %2075 = vmatprep.subr.mxu0 0.0
    %2076 = vmatpush1.msra.mxu0 0.0
    %2077 = vmatprep.subr.mxu0 0.0
    %2078 = vmatpush1.msra.mxu0 0.0
    %2079 = vmatprep.subr.mxu0 0.0
    %2080 = vmatpush1.msra.mxu0 0.0
    %2081 = vmatprep.subr.mxu0 0.0
    %2082 = vmatpush1.msra.mxu0 0.0
    %2083 = vmatprep.subr.mxu0 0.0
    %2084 = vmatpush1.msra.mxu0 0.0
    %2085 = vmatprep.subr.mxu0 0.0
    %2086 = vmatpush1.msra.mxu0 0.0
    %2087 = vmatprep.mubr.f32.mxu0 0.0
    %2088 = vmatmul.mubr.f32.gmra.mrb[0].mxu0 %v2021
    %v2089 = vpop.f32.mrb[0].mxu0
    %v2090 = vadd.f32 0.0, %v2089
    %v2091 = vpop.f32.mrb[0].mxu0
    %2092 = vdwg.mxu0
    %2093 = vmatprep.subr.mxu0 0.0
    %2094 = vmatpush1.msra.mxu0 %v1500
    %2095 = vmatprep.subr.mxu0 0.0
    %2096 = vmatpush1.msra.mxu0 %v1501
    %2097 = vmatprep.subr.mxu0 0.0
    %2098 = vmatpush1.msra.mxu0 0.0
    %2099 = vmatprep.subr.mxu0 0.0
    %2100 = vmatpush1.msra.mxu0 0.0
    %2101 = vmatprep.subr.mxu0 0.0
    %2102 = vmatpush1.msra.mxu0 0.0
    %2103 = vmatprep.subr.mxu0 0.0
    %2104 = vmatpush1.msra.mxu0 0.0
    %2105 = vmatprep.subr.mxu0 0.0
    %2106 = vmatpush1.msra.mxu0 0.0
    %2107 = vmatprep.subr.mxu0 0.0
    %2108 = vmatpush1.msra.mxu0 0.0
    %2109 = vmatprep.subr.mxu0 0.0
    %2110 = vmatpush1.msra.mxu0 0.0
    %2111 = vmatprep.subr.mxu0 0.0
    %2112 = vmatpush1.msra.mxu0 0.0
    %2113 = vmatprep.subr.mxu0 0.0
    %2114 = vmatpush1.msra.mxu0 0.0
    %2115 = vmatprep.subr.mxu0 0.0
    %2116 = vmatpush1.msra.mxu0 0.0
    %2117 = vmatprep.subr.mxu0 0.0
    %2118 = vmatpush1.msra.mxu0 0.0
    %2119 = vmatprep.subr.mxu0 0.0
    %2120 = vmatpush1.msra.mxu0 0.0
    %2121 = vmatprep.subr.mxu0 0.0
    %2122 = vmatpush1.msra.mxu0 0.0
    %2123 = vmatprep.subr.mxu0 0.0
    %2124 = vmatpush1.msra.mxu0 0.0
    %2125 = vmatprep.subr.mxu0 0.0
    %2126 = vmatpush1.msra.mxu0 0.0
    %2127 = vmatprep.subr.mxu0 0.0
    %2128 = vmatpush1.msra.mxu0 0.0
    %2129 = vmatprep.subr.mxu0 0.0
    %2130 = vmatpush1.msra.mxu0 0.0
    %2131 = vmatprep.subr.mxu0 0.0
    %2132 = vmatpush1.msra.mxu0 0.0
    %2133 = vmatprep.subr.mxu0 0.0
    %2134 = vmatpush1.msra.mxu0 0.0
    %2135 = vmatprep.subr.mxu0 0.0
    %2136 = vmatpush1.msra.mxu0 0.0
    %2137 = vmatprep.subr.mxu0 0.0
    %2138 = vmatpush1.msra.mxu0 0.0
    %2139 = vmatprep.subr.mxu0 0.0
    %2140 = vmatpush1.msra.mxu0 0.0
    %2141 = vmatprep.subr.mxu0 0.0
    %2142 = vmatpush1.msra.mxu0 0.0
    %2143 = vmatprep.subr.mxu0 0.0
    %2144 = vmatpush1.msra.mxu0 0.0
    %2145 = vmatprep.subr.mxu0 0.0
    %2146 = vmatpush1.msra.mxu0 0.0
    %2147 = vmatprep.subr.mxu0 0.0
    %2148 = vmatpush1.msra.mxu0 0.0
    %2149 = vmatprep.subr.mxu0 0.0
    %2150 = vmatpush1.msra.mxu0 0.0
    %2151 = vmatprep.subr.mxu0 0.0
    %2152 = vmatpush1.msra.mxu0 0.0
    %2153 = vmatprep.subr.mxu0 0.0
    %2154 = vmatpush1.msra.mxu0 0.0
    %2155 = vmatprep.subr.mxu0 0.0
    %2156 = vmatpush1.msra.mxu0 0.0
    %2157 = vmatprep.mubr.f32.mxu0 0.0
    %2158 = vmatmul.mubr.f32.gmra.mrb[0].mxu0 %v884
    %v2159 = vpop.f32.mrb[0].mxu0
    %v2160 = vadd.f32 %v2090, %v2159
    %v2161 = vpop.f32.mrb[0].mxu0
    %2162 = vdwg.mxu0
    %v2163 = vadd.f32 %v2160, %v1651
    %v2164 = vxor.u32 %v2163, 2147483648
    %v2165 = vmul.f32 %v2164, 1.442695
    %v2166 = vpow.pop %v2165
    %v2167 = vadd.f32 %v2166, 1.0
    %v2168 = vrcp.pop %v2167
    %v2169 = vmul.f32 1.0, %v2168
    %v2170 = vtanh.pop %v2163
    %v2171 = vmul.f32 %v2169, %v2011
    %2173 = vrot.lane.b32.xlu0 %v2170, 64
    %v2174 = vpop.permute.xlu0 %2173
    %v2176 = vmul.f32 %v2169, %v2174
    %2178 = vrot.lane.b32.xlu0 %v2176, 32
    %v2179 = vpop.permute.xlu0 %2178
    %v2181 = vadd.f32 %v2171, %v2179
    %v2182 = vtanh.pop %v2181
    %2184 = vrot.lane.b32.xlu0 %v2182, 64
    %v2185 = vpop.permute.xlu0 %2184
    %v2187 = vmul.f32 %v2169, %v2185
    %2189 = vrot.lane.b32.xlu0 %v2187, 32
    %v2190 = vpop.permute.xlu0 %2189
    %v2191 = vsel %vm110, %v2190, 0
    %2193 = vmatprep.subr.mxu0 0.0
    %2194 = vmatpush1.msra.mxu0 %v1502
    %2195 = vmatprep.subr.mxu0 0.0
    %2196 = vmatpush1.msra.mxu0 %v1503
    %2197 = vmatprep.subr.mxu0 0.0
    %2198 = vmatpush1.msra.mxu0 %v1504
    %2199 = vmatprep.subr.mxu0 0.0
    %2200 = vmatpush1.msra.mxu0 %v1505
    %2201 = vmatprep.subr.mxu0 0.0
    %2202 = vmatpush1.msra.mxu0 0.0
    %2203 = vmatprep.subr.mxu0 0.0
    %2204 = vmatpush1.msra.mxu0 0.0
    %2205 = vmatprep.subr.mxu0 0.0
    %2206 = vmatpush1.msra.mxu0 0.0
    %2207 = vmatprep.subr.mxu0 0.0
    %2208 = vmatpush1.msra.mxu0 0.0
    %2209 = vmatprep.subr.mxu0 0.0
    %2210 = vmatpush1.msra.mxu0 0.0
    %2211 = vmatprep.subr.mxu0 0.0
    %2212 = vmatpush1.msra.mxu0 0.0
    %2213 = vmatprep.subr.mxu0 0.0
    %2214 = vmatpush1.msra.mxu0 0.0
    %2215 = vmatprep.subr.mxu0 0.0
    %2216 = vmatpush1.msra.mxu0 0.0
    %2217 = vmatprep.subr.mxu0 0.0
    %2218 = vmatpush1.msra.mxu0 0.0
    %2219 = vmatprep.subr.mxu0 0.0
    %2220 = vmatpush1.msra.mxu0 0.0
    %2221 = vmatprep.subr.mxu0 0.0
    %2222 = vmatpush1.msra.mxu0 0.0
    %2223 = vmatprep.subr.mxu0 0.0
    %2224 = vmatpush1.msra.mxu0 0.0
    %2225 = vmatprep.subr.mxu0 0.0
    %2226 = vmatpush1.msra.mxu0 0.0
    %2227 = vmatprep.subr.mxu0 0.0
    %2228 = vmatpush1.msra.mxu0 0.0
    %2229 = vmatprep.subr.mxu0 0.0
    %2230 = vmatpush1.msra.mxu0 0.0
    %2231 = vmatprep.subr.mxu0 0.0
    %2232 = vmatpush1.msra.mxu0 0.0
    %2233 = vmatprep.subr.mxu0 0.0
    %2234 = vmatpush1.msra.mxu0 0.0
    %2235 = vmatprep.subr.mxu0 0.0
    %2236 = vmatpush1.msra.mxu0 0.0
    %2237 = vmatprep.subr.mxu0 0.0
    %2238 = vmatpush1.msra.mxu0 0.0
    %2239 = vmatprep.subr.mxu0 0.0
    %2240 = vmatpush1.msra.mxu0 0.0
    %2241 = vmatprep.subr.mxu0 0.0
    %2242 = vmatpush1.msra.mxu0 0.0
    %2243 = vmatprep.subr.mxu0 0.0
    %2244 = vmatpush1.msra.mxu0 0.0
    %2245 = vmatprep.subr.mxu0 0.0
    %2246 = vmatpush1.msra.mxu0 0.0
    %2247 = vmatprep.subr.mxu0 0.0
    %2248 = vmatpush1.msra.mxu0 0.0
    %2249 = vmatprep.subr.mxu0 0.0
    %2250 = vmatpush1.msra.mxu0 0.0
    %2251 = vmatprep.subr.mxu0 0.0
    %2252 = vmatpush1.msra.mxu0 0.0
    %2253 = vmatprep.subr.mxu0 0.0
    %2254 = vmatpush1.msra.mxu0 0.0
    %2255 = vmatprep.subr.mxu0 0.0
    %2256 = vmatpush1.msra.mxu0 0.0
    %2257 = vmatprep.mubr.f32.mxu0 0.0
    %2258 = vmatmul.mubr.f32.gmra.mrb[0].mxu0 %v2191
    %v2259 = vpop.f32.mrb[0].mxu0
    %v2260 = vadd.f32 0.0, %v2259
    %v2261 = vpop.f32.mrb[0].mxu0
    %2262 = vdwg.mxu0
    %2263 = vmatprep.subr.mxu0 0.0
    %2264 = vmatpush1.msra.mxu0 %v1500
    %2265 = vmatprep.subr.mxu0 0.0
    %2266 = vmatpush1.msra.mxu0 %v1501
    %2267 = vmatprep.subr.mxu0 0.0
    %2268 = vmatpush1.msra.mxu0 0.0
    %2269 = vmatprep.subr.mxu0 0.0
    %2270 = vmatpush1.msra.mxu0 0.0
    %2271 = vmatprep.subr.mxu0 0.0
    %2272 = vmatpush1.msra.mxu0 0.0
    %2273 = vmatprep.subr.mxu0 0.0
    %2274 = vmatpush1.msra.mxu0 0.0
    %2275 = vmatprep.subr.mxu0 0.0
    %2276 = vmatpush1.msra.mxu0 0.0
    %2277 = vmatprep.subr.mxu0 0.0
    %2278 = vmatpush1.msra.mxu0 0.0
    %2279 = vmatprep.subr.mxu0 0.0
    %2280 = vmatpush1.msra.mxu0 0.0
    %2281 = vmatprep.subr.mxu0 0.0
    %2282 = vmatpush1.msra.mxu0 0.0
    %2283 = vmatprep.subr.mxu0 0.0
    %2284 = vmatpush1.msra.mxu0 0.0
    %2285 = vmatprep.subr.mxu0 0.0
    %2286 = vmatpush1.msra.mxu0 0.0
    %2287 = vmatprep.subr.mxu0 0.0
    %2288 = vmatpush1.msra.mxu0 0.0
    %2289 = vmatprep.subr.mxu0 0.0
    %2290 = vmatpush1.msra.mxu0 0.0
    %2291 = vmatprep.subr.mxu0 0.0
    %2292 = vmatpush1.msra.mxu0 0.0
    %2293 = vmatprep.subr.mxu0 0.0
    %2294 = vmatpush1.msra.mxu0 0.0
    %2295 = vmatprep.subr.mxu0 0.0
    %2296 = vmatpush1.msra.mxu0 0.0
    %2297 = vmatprep.subr.mxu0 0.0
    %2298 = vmatpush1.msra.mxu0 0.0
    %2299 = vmatprep.subr.mxu0 0.0
    %2300 = vmatpush1.msra.mxu0 0.0
    %2301 = vmatprep.subr.mxu0 0.0
    %2302 = vmatpush1.msra.mxu0 0.0
    %2303 = vmatprep.subr.mxu0 0.0
    %2304 = vmatpush1.msra.mxu0 0.0
    %2305 = vmatprep.subr.mxu0 0.0
    %2306 = vmatpush1.msra.mxu0 0.0
    %2307 = vmatprep.subr.mxu0 0.0
    %2308 = vmatpush1.msra.mxu0 0.0
    %2309 = vmatprep.subr.mxu0 0.0
    %2310 = vmatpush1.msra.mxu0 0.0
    %2311 = vmatprep.subr.mxu0 0.0
    %2312 = vmatpush1.msra.mxu0 0.0
    %2313 = vmatprep.subr.mxu0 0.0
    %2314 = vmatpush1.msra.mxu0 0.0
    %2315 = vmatprep.subr.mxu0 0.0
    %2316 = vmatpush1.msra.mxu0 0.0
    %2317 = vmatprep.subr.mxu0 0.0
    %2318 = vmatpush1.msra.mxu0 0.0
    %2319 = vmatprep.subr.mxu0 0.0
    %2320 = vmatpush1.msra.mxu0 0.0
    %2321 = vmatprep.subr.mxu0 0.0
    %2322 = vmatpush1.msra.mxu0 0.0
    %2323 = vmatprep.subr.mxu0 0.0
    %2324 = vmatpush1.msra.mxu0 0.0
    %2325 = vmatprep.subr.mxu0 0.0
    %2326 = vmatpush1.msra.mxu0 0.0
    %2327 = vmatprep.mubr.f32.mxu0 0.0
    %2328 = vmatmul.mubr.f32.gmra.mrb[0].mxu0 %v711
    %v2329 = vpop.f32.mrb[0].mxu0
    %v2330 = vadd.f32 %v2260, %v2329
    %v2331 = vpop.f32.mrb[0].mxu0
    %2332 = vdwg.mxu0
    %v2333 = vadd.f32 %v2330, %v1651
    %v2334 = vxor.u32 %v2333, 2147483648
    %v2335 = vmul.f32 %v2334, 1.442695
    %v2336 = vpow.pop %v2335
    %v2337 = vadd.f32 %v2336, 1.0
    %v2338 = vrcp.pop %v2337
    %v2339 = vmul.f32 1.0, %v2338
    %v2340 = vtanh.pop %v2333
    %v2341 = vmul.f32 %v2339, %v2181
    %2343 = vrot.lane.b32.xlu0 %v2340, 64
    %v2344 = vpop.permute.xlu0 %2343
    %v2346 = vmul.f32 %v2339, %v2344
    %2348 = vrot.lane.b32.xlu0 %v2346, 32
    %v2349 = vpop.permute.xlu0 %2348
    %v2351 = vadd.f32 %v2341, %v2349
    %v2352 = vtanh.pop %v2351
    %2354 = vrot.lane.b32.xlu0 %v2352, 64
    %v2355 = vpop.permute.xlu0 %2354
    %v2357 = vmul.f32 %v2339, %v2355
    %2359 = vrot.lane.b32.xlu0 %v2357, 32
    %v2360 = vpop.permute.xlu0 %2359
    %v2361 = vsel %vm110, %v2360, 0
    %2363 = vmatprep.subr.mxu0 0.0
    %2364 = vmatpush1.msra.mxu0 %v1502
    %2365 = vmatprep.subr.mxu0 0.0
    %2366 = vmatpush1.msra.mxu0 %v1503
    %2367 = vmatprep.subr.mxu0 0.0
    %2368 = vmatpush1.msra.mxu0 %v1504
    %2369 = vmatprep.subr.mxu0 0.0
    %2370 = vmatpush1.msra.mxu0 %v1505
    %2371 = vmatprep.subr.mxu0 0.0
    %2372 = vmatpush1.msra.mxu0 0.0
    %2373 = vmatprep.subr.mxu0 0.0
    %2374 = vmatpush1.msra.mxu0 0.0
    %2375 = vmatprep.subr.mxu0 0.0
    %2376 = vmatpush1.msra.mxu0 0.0
    %2377 = vmatprep.subr.mxu0 0.0
    %2378 = vmatpush1.msra.mxu0 0.0
    %2379 = vmatprep.subr.mxu0 0.0
    %2380 = vmatpush1.msra.mxu0 0.0
    %2381 = vmatprep.subr.mxu0 0.0
    %2382 = vmatpush1.msra.mxu0 0.0
    %2383 = vmatprep.subr.mxu0 0.0
    %2384 = vmatpush1.msra.mxu0 0.0
    %2385 = vmatprep.subr.mxu0 0.0
    %2386 = vmatpush1.msra.mxu0 0.0
    %2387 = vmatprep.subr.mxu0 0.0
    %2388 = vmatpush1.msra.mxu0 0.0
    %2389 = vmatprep.subr.mxu0 0.0
    %2390 = vmatpush1.msra.mxu0 0.0
    %2391 = vmatprep.subr.mxu0 0.0
    %2392 = vmatpush1.msra.mxu0 0.0
    %2393 = vmatprep.subr.mxu0 0.0
    %2394 = vmatpush1.msra.mxu0 0.0
    %2395 = vmatprep.subr.mxu0 0.0
    %2396 = vmatpush1.msra.mxu0 0.0
    %2397 = vmatprep.subr.mxu0 0.0
    %2398 = vmatpush1.msra.mxu0 0.0
    %2399 = vmatprep.subr.mxu0 0.0
    %2400 = vmatpush1.msra.mxu0 0.0
    %2401 = vmatprep.subr.mxu0 0.0
    %2402 = vmatpush1.msra.mxu0 0.0
    %2403 = vmatprep.subr.mxu0 0.0
    %2404 = vmatpush1.msra.mxu0 0.0
    %2405 = vmatprep.subr.mxu0 0.0
    %2406 = vmatpush1.msra.mxu0 0.0
    %2407 = vmatprep.subr.mxu0 0.0
    %2408 = vmatpush1.msra.mxu0 0.0
    %2409 = vmatprep.subr.mxu0 0.0
    %2410 = vmatpush1.msra.mxu0 0.0
    %2411 = vmatprep.subr.mxu0 0.0
    %2412 = vmatpush1.msra.mxu0 0.0
    %2413 = vmatprep.subr.mxu0 0.0
    %2414 = vmatpush1.msra.mxu0 0.0
    %2415 = vmatprep.subr.mxu0 0.0
    %2416 = vmatpush1.msra.mxu0 0.0
    %2417 = vmatprep.subr.mxu0 0.0
    %2418 = vmatpush1.msra.mxu0 0.0
    %2419 = vmatprep.subr.mxu0 0.0
    %2420 = vmatpush1.msra.mxu0 0.0
    %2421 = vmatprep.subr.mxu0 0.0
    %2422 = vmatpush1.msra.mxu0 0.0
    %2423 = vmatprep.subr.mxu0 0.0
    %2424 = vmatpush1.msra.mxu0 0.0
    %2425 = vmatprep.subr.mxu0 0.0
    %2426 = vmatpush1.msra.mxu0 0.0
    %2427 = vmatprep.mubr.f32.mxu0 0.0
    %2428 = vmatmul.mubr.f32.gmra.mrb[0].mxu0 %v2361
    %v2429 = vpop.f32.mrb[0].mxu0
    %v2430 = vadd.f32 0.0, %v2429
    %v2431 = vpop.f32.mrb[0].mxu0
    %2432 = vdwg.mxu0
    %2433 = vmatprep.subr.mxu0 0.0
    %2434 = vmatpush1.msra.mxu0 %v1500
    %2435 = vmatprep.subr.mxu0 0.0
    %2436 = vmatpush1.msra.mxu0 %v1501
    %2437 = vmatprep.subr.mxu0 0.0
    %2438 = vmatpush1.msra.mxu0 0.0
    %2439 = vmatprep.subr.mxu0 0.0
    %2440 = vmatpush1.msra.mxu0 0.0
    %2441 = vmatprep.subr.mxu0 0.0
    %2442 = vmatpush1.msra.mxu0 0.0
    %2443 = vmatprep.subr.mxu0 0.0
    %2444 = vmatpush1.msra.mxu0 0.0
    %2445 = vmatprep.subr.mxu0 0.0
    %2446 = vmatpush1.msra.mxu0 0.0
    %2447 = vmatprep.subr.mxu0 0.0
    %2448 = vmatpush1.msra.mxu0 0.0
    %2449 = vmatprep.subr.mxu0 0.0
    %2450 = vmatpush1.msra.mxu0 0.0
    %2451 = vmatprep.subr.mxu0 0.0
    %2452 = vmatpush1.msra.mxu0 0.0
    %2453 = vmatprep.subr.mxu0 0.0
    %2454 = vmatpush1.msra.mxu0 0.0
    %2455 = vmatprep.subr.mxu0 0.0
    %2456 = vmatpush1.msra.mxu0 0.0
    %2457 = vmatprep.subr.mxu0 0.0
    %2458 = vmatpush1.msra.mxu0 0.0
    %2459 = vmatprep.subr.mxu0 0.0
    %2460 = vmatpush1.msra.mxu0 0.0
    %2461 = vmatprep.subr.mxu0 0.0
    %2462 = vmatpush1.msra.mxu0 0.0
    %2463 = vmatprep.subr.mxu0 0.0
    %2464 = vmatpush1.msra.mxu0 0.0
    %2465 = vmatprep.subr.mxu0 0.0
    %2466 = vmatpush1.msra.mxu0 0.0
    %2467 = vmatprep.subr.mxu0 0.0
    %2468 = vmatpush1.msra.mxu0 0.0
    %2469 = vmatprep.subr.mxu0 0.0
    %2470 = vmatpush1.msra.mxu0 0.0
    %2471 = vmatprep.subr.mxu0 0.0
    %2472 = vmatpush1.msra.mxu0 0.0
    %2473 = vmatprep.subr.mxu0 0.0
    %2474 = vmatpush1.msra.mxu0 0.0
    %2475 = vmatprep.subr.mxu0 0.0
    %2476 = vmatpush1.msra.mxu0 0.0
    %2477 = vmatprep.subr.mxu0 0.0
    %2478 = vmatpush1.msra.mxu0 0.0
    %2479 = vmatprep.subr.mxu0 0.0
    %2480 = vmatpush1.msra.mxu0 0.0
    %2481 = vmatprep.subr.mxu0 0.0
    %2482 = vmatpush1.msra.mxu0 0.0
    %2483 = vmatprep.subr.mxu0 0.0
    %2484 = vmatpush1.msra.mxu0 0.0
    %2485 = vmatprep.subr.mxu0 0.0
    %2486 = vmatpush1.msra.mxu0 0.0
    %2487 = vmatprep.subr.mxu0 0.0
    %2488 = vmatpush1.msra.mxu0 0.0
    %2489 = vmatprep.subr.mxu0 0.0
    %2490 = vmatpush1.msra.mxu0 0.0
    %2491 = vmatprep.subr.mxu0 0.0
    %2492 = vmatpush1.msra.mxu0 0.0
    %2493 = vmatprep.subr.mxu0 0.0
    %2494 = vmatpush1.msra.mxu0 0.0
    %2495 = vmatprep.subr.mxu0 0.0
    %2496 = vmatpush1.msra.mxu0 0.0
    %2497 = vmatprep.mubr.f32.mxu0 0.0
    %2498 = vmatmul.mubr.f32.gmra.mrb[0].mxu0 %v538
    %v2499 = vpop.f32.mrb[0].mxu0
    %v2500 = vadd.f32 %v2430, %v2499
    %v2501 = vpop.f32.mrb[0].mxu0
    %2502 = vdwg.mxu0
    %v2503 = vadd.f32 %v2500, %v1651
    %v2504 = vxor.u32 %v2503, 2147483648
    %v2505 = vmul.f32 %v2504, 1.442695
    %v2506 = vpow.pop %v2505
    %v2507 = vadd.f32 %v2506, 1.0
    %v2508 = vrcp.pop %v2507
    %v2509 = vmul.f32 1.0, %v2508
    %v2510 = vtanh.pop %v2503
    %v2511 = vmul.f32 %v2509, %v2351
    %2513 = vrot.lane.b32.xlu0 %v2510, 64
    %v2514 = vpop.permute.xlu0 %2513
    %v2516 = vmul.f32 %v2509, %v2514
    %2518 = vrot.lane.b32.xlu0 %v2516, 32
    %v2519 = vpop.permute.xlu0 %2518
    %v2521 = vadd.f32 %v2511, %v2519
    %v2522 = vtanh.pop %v2521
    %2524 = vrot.lane.b32.xlu0 %v2522, 64
    %v2525 = vpop.permute.xlu0 %2524
    %v2527 = vmul.f32 %v2509, %v2525
    %2529 = vrot.lane.b32.xlu0 %v2527, 32
    %v2530 = vpop.permute.xlu0 %2529
    %v2531 = vsel %vm110, %v2530, 0
    %2533 = vmatprep.subr.mxu0 0.0
    %2534 = vmatpush1.msra.mxu0 %v1502
    %2535 = vmatprep.subr.mxu0 0.0
    %2536 = vmatpush1.msra.mxu0 %v1503
    %2537 = vmatprep.subr.mxu0 0.0
    %2538 = vmatpush1.msra.mxu0 %v1504
    %2539 = vmatprep.subr.mxu0 0.0
    %2540 = vmatpush1.msra.mxu0 %v1505
    %2541 = vmatprep.subr.mxu0 0.0
    %2542 = vmatpush1.msra.mxu0 0.0
    %2543 = vmatprep.subr.mxu0 0.0
    %2544 = vmatpush1.msra.mxu0 0.0
    %2545 = vmatprep.subr.mxu0 0.0
    %2546 = vmatpush1.msra.mxu0 0.0
    %2547 = vmatprep.subr.mxu0 0.0
    %2548 = vmatpush1.msra.mxu0 0.0
    %2549 = vmatprep.subr.mxu0 0.0
    %2550 = vmatpush1.msra.mxu0 0.0
    %2551 = vmatprep.subr.mxu0 0.0
    %2552 = vmatpush1.msra.mxu0 0.0
    %2553 = vmatprep.subr.mxu0 0.0
    %2554 = vmatpush1.msra.mxu0 0.0
    %2555 = vmatprep.subr.mxu0 0.0
    %2556 = vmatpush1.msra.mxu0 0.0
    %2557 = vmatprep.subr.mxu0 0.0
    %2558 = vmatpush1.msra.mxu0 0.0
    %2559 = vmatprep.subr.mxu0 0.0
    %2560 = vmatpush1.msra.mxu0 0.0
    %2561 = vmatprep.subr.mxu0 0.0
    %2562 = vmatpush1.msra.mxu0 0.0
    %2563 = vmatprep.subr.mxu0 0.0
    %2564 = vmatpush1.msra.mxu0 0.0
    %2565 = vmatprep.subr.mxu0 0.0
    %2566 = vmatpush1.msra.mxu0 0.0
    %2567 = vmatprep.subr.mxu0 0.0
    %2568 = vmatpush1.msra.mxu0 0.0
    %2569 = vmatprep.subr.mxu0 0.0
    %2570 = vmatpush1.msra.mxu0 0.0
    %2571 = vmatprep.subr.mxu0 0.0
    %2572 = vmatpush1.msra.mxu0 0.0
    %2573 = vmatprep.subr.mxu0 0.0
    %2574 = vmatpush1.msra.mxu0 0.0
    %2575 = vmatprep.subr.mxu0 0.0
    %2576 = vmatpush1.msra.mxu0 0.0
    %2577 = vmatprep.subr.mxu0 0.0
    %2578 = vmatpush1.msra.mxu0 0.0
    %2579 = vmatprep.subr.mxu0 0.0
    %2580 = vmatpush1.msra.mxu0 0.0
    %2581 = vmatprep.subr.mxu0 0.0
    %2582 = vmatpush1.msra.mxu0 0.0
    %2583 = vmatprep.subr.mxu0 0.0
    %2584 = vmatpush1.msra.mxu0 0.0
    %2585 = vmatprep.subr.mxu0 0.0
    %2586 = vmatpush1.msra.mxu0 0.0
    %2587 = vmatprep.subr.mxu0 0.0
    %2588 = vmatpush1.msra.mxu0 0.0
    %2589 = vmatprep.subr.mxu0 0.0
    %2590 = vmatpush1.msra.mxu0 0.0
    %2591 = vmatprep.subr.mxu0 0.0
    %2592 = vmatpush1.msra.mxu0 0.0
    %2593 = vmatprep.subr.mxu0 0.0
    %2594 = vmatpush1.msra.mxu0 0.0
    %2595 = vmatprep.subr.mxu0 0.0
    %2596 = vmatpush1.msra.mxu0 0.0
    %2597 = vmatprep.mubr.f32.mxu0 0.0
    %2598 = vmatmul.mubr.f32.gmra.mrb[0].mxu0 %v2531
    %v2599 = vpop.f32.mrb[0].mxu0
    %v2600 = vadd.f32 0.0, %v2599
    %v2601 = vpop.f32.mrb[0].mxu0
    %2602 = vdwg.mxu0
    %2603 = vmatprep.subr.mxu0 0.0
    %2604 = vmatpush1.msra.mxu0 %v1500
    %2605 = vmatprep.subr.mxu0 0.0
    %2606 = vmatpush1.msra.mxu0 %v1501
    %2607 = vmatprep.subr.mxu0 0.0
    %2608 = vmatpush1.msra.mxu0 0.0
    %2609 = vmatprep.subr.mxu0 0.0
    %2610 = vmatpush1.msra.mxu0 0.0
    %2611 = vmatprep.subr.mxu0 0.0
    %2612 = vmatpush1.msra.mxu0 0.0
    %2613 = vmatprep.subr.mxu0 0.0
    %2614 = vmatpush1.msra.mxu0 0.0
    %2615 = vmatprep.subr.mxu0 0.0
    %2616 = vmatpush1.msra.mxu0 0.0
    %2617 = vmatprep.subr.mxu0 0.0
    %2618 = vmatpush1.msra.mxu0 0.0
    %2619 = vmatprep.subr.mxu0 0.0
    %2620 = vmatpush1.msra.mxu0 0.0
    %2621 = vmatprep.subr.mxu0 0.0
    %2622 = vmatpush1.msra.mxu0 0.0
    %2623 = vmatprep.subr.mxu0 0.0
    %2624 = vmatpush1.msra.mxu0 0.0
    %2625 = vmatprep.subr.mxu0 0.0
    %2626 = vmatpush1.msra.mxu0 0.0
    %2627 = vmatprep.subr.mxu0 0.0
    %2628 = vmatpush1.msra.mxu0 0.0
    %2629 = vmatprep.subr.mxu0 0.0
    %2630 = vmatpush1.msra.mxu0 0.0
    %2631 = vmatprep.subr.mxu0 0.0
    %2632 = vmatpush1.msra.mxu0 0.0
    %2633 = vmatprep.subr.mxu0 0.0
    %2634 = vmatpush1.msra.mxu0 0.0
    %2635 = vmatprep.subr.mxu0 0.0
    %2636 = vmatpush1.msra.mxu0 0.0
    %2637 = vmatprep.subr.mxu0 0.0
    %2638 = vmatpush1.msra.mxu0 0.0
    %2639 = vmatprep.subr.mxu0 0.0
    %2640 = vmatpush1.msra.mxu0 0.0
    %2641 = vmatprep.subr.mxu0 0.0
    %2642 = vmatpush1.msra.mxu0 0.0
    %2643 = vmatprep.subr.mxu0 0.0
    %2644 = vmatpush1.msra.mxu0 0.0
    %2645 = vmatprep.subr.mxu0 0.0
    %2646 = vmatpush1.msra.mxu0 0.0
    %2647 = vmatprep.subr.mxu0 0.0
    %2648 = vmatpush1.msra.mxu0 0.0
    %2649 = vmatprep.subr.mxu0 0.0
    %2650 = vmatpush1.msra.mxu0 0.0
    %2651 = vmatprep.subr.mxu0 0.0
    %2652 = vmatpush1.msra.mxu0 0.0
    %2653 = vmatprep.subr.mxu0 0.0
    %2654 = vmatpush1.msra.mxu0 0.0
    %2655 = vmatprep.subr.mxu0 0.0
    %2656 = vmatpush1.msra.mxu0 0.0
    %2657 = vmatprep.subr.mxu0 0.0
    %2658 = vmatpush1.msra.mxu0 0.0
    %2659 = vmatprep.subr.mxu0 0.0
    %2660 = vmatpush1.msra.mxu0 0.0
    %2661 = vmatprep.subr.mxu0 0.0
    %2662 = vmatpush1.msra.mxu0 0.0
    %2663 = vmatprep.subr.mxu0 0.0
    %2664 = vmatpush1.msra.mxu0 0.0
    %2665 = vmatprep.subr.mxu0 0.0
    %2666 = vmatpush1.msra.mxu0 0.0
    %2667 = vmatprep.mubr.f32.mxu0 0.0
    %2668 = vmatmul.mubr.f32.gmra.mrb[0].mxu0 %v365
    %v2669 = vpop.f32.mrb[0].mxu0
    %v2670 = vadd.f32 %v2600, %v2669
    %v2671 = vpop.f32.mrb[0].mxu0
    %2672 = vdwg.mxu0
    %v2673 = vadd.f32 %v2670, %v1651
    %v2674 = vxor.u32 %v2673, 2147483648
    %v2675 = vmul.f32 %v2674, 1.442695
    %v2676 = vpow.pop %v2675
    %v2677 = vadd.f32 %v2676, 1.0
    %v2678 = vrcp.pop %v2677
    %v2679 = vmul.f32 1.0, %v2678
    %v2680 = vtanh.pop %v2673
    %v2681 = vmul.f32 %v2679, %v2521
    %2683 = vrot.lane.b32.xlu0 %v2680, 64
    %v2684 = vpop.permute.xlu0 %2683
    %v2686 = vmul.f32 %v2679, %v2684
    %2688 = vrot.lane.b32.xlu0 %v2686, 32
    %v2689 = vpop.permute.xlu0 %2688
    %v2691 = vadd.f32 %v2681, %v2689
    %v2692 = vtanh.pop %v2691
    %2694 = vrot.lane.b32.xlu0 %v2692, 64
    %v2695 = vpop.permute.xlu0 %2694
    %v2697 = vmul.f32 %v2679, %v2695
    %2699 = vrot.lane.b32.xlu0 %v2697, 32
    %v2700 = vpop.permute.xlu0 %2699
    %v2701 = vsel %vm110, %v2700, 0
    %2703 = vmatprep.subr.mxu0 0.0
    %2704 = vmatpush1.msra.mxu0 %v1502
    %2705 = vmatprep.subr.mxu0 0.0
    %2706 = vmatpush1.msra.mxu0 %v1503
    %2707 = vmatprep.subr.mxu0 0.0
    %2708 = vmatpush1.msra.mxu0 %v1504
    %2709 = vmatprep.subr.mxu0 0.0
    %2710 = vmatpush1.msra.mxu0 %v1505
    %2711 = vmatprep.subr.mxu0 0.0
    %2712 = vmatpush1.msra.mxu0 0.0
    %2713 = vmatprep.subr.mxu0 0.0
    %2714 = vmatpush1.msra.mxu0 0.0
    %2715 = vmatprep.subr.mxu0 0.0
    %2716 = vmatpush1.msra.mxu0 0.0
    %2717 = vmatprep.subr.mxu0 0.0
    %2718 = vmatpush1.msra.mxu0 0.0
    %2719 = vmatprep.subr.mxu0 0.0
    %2720 = vmatpush1.msra.mxu0 0.0
    %2721 = vmatprep.subr.mxu0 0.0
    %2722 = vmatpush1.msra.mxu0 0.0
    %2723 = vmatprep.subr.mxu0 0.0
    %2724 = vmatpush1.msra.mxu0 0.0
    %2725 = vmatprep.subr.mxu0 0.0
    %2726 = vmatpush1.msra.mxu0 0.0
    %2727 = vmatprep.subr.mxu0 0.0
    %2728 = vmatpush1.msra.mxu0 0.0
    %2729 = vmatprep.subr.mxu0 0.0
    %2730 = vmatpush1.msra.mxu0 0.0
    %2731 = vmatprep.subr.mxu0 0.0
    %2732 = vmatpush1.msra.mxu0 0.0
    %2733 = vmatprep.subr.mxu0 0.0
    %2734 = vmatpush1.msra.mxu0 0.0
    %2735 = vmatprep.subr.mxu0 0.0
    %2736 = vmatpush1.msra.mxu0 0.0
    %2737 = vmatprep.subr.mxu0 0.0
    %2738 = vmatpush1.msra.mxu0 0.0
    %2739 = vmatprep.subr.mxu0 0.0
    %2740 = vmatpush1.msra.mxu0 0.0
    %2741 = vmatprep.subr.mxu0 0.0
    %2742 = vmatpush1.msra.mxu0 0.0
    %2743 = vmatprep.subr.mxu0 0.0
    %2744 = vmatpush1.msra.mxu0 0.0
    %2745 = vmatprep.subr.mxu0 0.0
    %2746 = vmatpush1.msra.mxu0 0.0
    %2747 = vmatprep.subr.mxu0 0.0
    %2748 = vmatpush1.msra.mxu0 0.0
    %2749 = vmatprep.subr.mxu0 0.0
    %2750 = vmatpush1.msra.mxu0 0.0
    %2751 = vmatprep.subr.mxu0 0.0
    %2752 = vmatpush1.msra.mxu0 0.0
    %2753 = vmatprep.subr.mxu0 0.0
    %2754 = vmatpush1.msra.mxu0 0.0
    %2755 = vmatprep.subr.mxu0 0.0
    %2756 = vmatpush1.msra.mxu0 0.0
    %2757 = vmatprep.subr.mxu0 0.0
    %2758 = vmatpush1.msra.mxu0 0.0
    %2759 = vmatprep.subr.mxu0 0.0
    %2760 = vmatpush1.msra.mxu0 0.0
    %2761 = vmatprep.subr.mxu0 0.0
    %2762 = vmatpush1.msra.mxu0 0.0
    %2763 = vmatprep.subr.mxu0 0.0
    %2764 = vmatpush1.msra.mxu0 0.0
    %2765 = vmatprep.subr.mxu0 0.0
    %2766 = vmatpush1.msra.mxu0 0.0
    %2767 = vmatprep.mubr.f32.mxu0 0.0
    %2768 = vmatmul.mubr.f32.gmra.mrb[0].mxu0 %v2701
    %v2769 = vpop.f32.mrb[0].mxu0
    %v2770 = vadd.f32 0.0, %v2769
    %v2771 = vpop.f32.mrb[0].mxu0
    %2772 = vdwg.mxu0
    %2773 = vmatprep.subr.mxu0 0.0
    %2774 = vmatpush1.msra.mxu0 %v1500
    %2775 = vmatprep.subr.mxu0 0.0
    %2776 = vmatpush1.msra.mxu0 %v1501
    %2777 = vmatprep.subr.mxu0 0.0
    %2778 = vmatpush1.msra.mxu0 0.0
    %2779 = vmatprep.subr.mxu0 0.0
    %2780 = vmatpush1.msra.mxu0 0.0
    %2781 = vmatprep.subr.mxu0 0.0
    %2782 = vmatpush1.msra.mxu0 0.0
    %2783 = vmatprep.subr.mxu0 0.0
    %2784 = vmatpush1.msra.mxu0 0.0
    %2785 = vmatprep.subr.mxu0 0.0
    %2786 = vmatpush1.msra.mxu0 0.0
    %2787 = vmatprep.subr.mxu0 0.0
    %2788 = vmatpush1.msra.mxu0 0.0
    %2789 = vmatprep.subr.mxu0 0.0
    %2790 = vmatpush1.msra.mxu0 0.0
    %2791 = vmatprep.subr.mxu0 0.0
    %2792 = vmatpush1.msra.mxu0 0.0
    %2793 = vmatprep.subr.mxu0 0.0
    %2794 = vmatpush1.msra.mxu0 0.0
    %2795 = vmatprep.subr.mxu0 0.0
    %2796 = vmatpush1.msra.mxu0 0.0
    %2797 = vmatprep.subr.mxu0 0.0
    %2798 = vmatpush1.msra.mxu0 0.0
    %2799 = vmatprep.subr.mxu0 0.0
    %2800 = vmatpush1.msra.mxu0 0.0
    %2801 = vmatprep.subr.mxu0 0.0
    %2802 = vmatpush1.msra.mxu0 0.0
    %2803 = vmatprep.subr.mxu0 0.0
    %2804 = vmatpush1.msra.mxu0 0.0
    %2805 = vmatprep.subr.mxu0 0.0
    %2806 = vmatpush1.msra.mxu0 0.0
    %2807 = vmatprep.subr.mxu0 0.0
    %2808 = vmatpush1.msra.mxu0 0.0
    %2809 = vmatprep.subr.mxu0 0.0
    %2810 = vmatpush1.msra.mxu0 0.0
    %2811 = vmatprep.subr.mxu0 0.0
    %2812 = vmatpush1.msra.mxu0 0.0
    %2813 = vmatprep.subr.mxu0 0.0
    %2814 = vmatpush1.msra.mxu0 0.0
    %2815 = vmatprep.subr.mxu0 0.0
    %2816 = vmatpush1.msra.mxu0 0.0
    %2817 = vmatprep.subr.mxu0 0.0
    %2818 = vmatpush1.msra.mxu0 0.0
    %2819 = vmatprep.subr.mxu0 0.0
    %2820 = vmatpush1.msra.mxu0 0.0
    %2821 = vmatprep.subr.mxu0 0.0
    %2822 = vmatpush1.msra.mxu0 0.0
    %2823 = vmatprep.subr.mxu0 0.0
    %2824 = vmatpush1.msra.mxu0 0.0
    %2825 = vmatprep.subr.mxu0 0.0
    %2826 = vmatpush1.msra.mxu0 0.0
    %2827 = vmatprep.subr.mxu0 0.0
    %2828 = vmatpush1.msra.mxu0 0.0
    %2829 = vmatprep.subr.mxu0 0.0
    %2830 = vmatpush1.msra.mxu0 0.0
    %2831 = vmatprep.subr.mxu0 0.0
    %2832 = vmatpush1.msra.mxu0 0.0
    %2833 = vmatprep.subr.mxu0 0.0
    %2834 = vmatpush1.msra.mxu0 0.0
    %2835 = vmatprep.subr.mxu0 0.0
    %2836 = vmatpush1.msra.mxu0 0.0
    %2837 = vmatprep.mubr.f32.mxu0 0.0
    %2838 = vmatmul.mubr.f32.gmra.mrb[0].mxu0 %v186
    %v2839 = vpop.f32.mrb[0].mxu0
    %v2840 = vadd.f32 %v2770, %v2839
    %v2841 = vpop.f32.mrb[0].mxu0
    %2842 = vdwg.mxu0
    %v2843 = vadd.f32 %v2840, %v1651
    %v2844 = vxor.u32 %v2843, 2147483648
    %v2845 = vmul.f32 %v2844, 1.442695
    %v2846 = vpow.pop %v2845
    %v2847 = vadd.f32 %v2846, 1.0
    %v2848 = vrcp.pop %v2847
    %v2849 = vmul.f32 1.0, %v2848
    %v2850 = vtanh.pop %v2843
    %v2851 = vmul.f32 %v2849, %v2691
    %2853 = vrot.lane.b32.xlu0 %v2850, 64
    %v2854 = vpop.permute.xlu0 %2853
    %v2856 = vmul.f32 %v2849, %v2854
    %2858 = vrot.lane.b32.xlu0 %v2856, 32
    %v2859 = vpop.permute.xlu0 %2858
    %v2861 = vadd.f32 %v2851, %v2859
    %v2862 = vtanh.pop %v2861
    %2864 = vrot.lane.b32.xlu0 %v2862, 64
    %v2865 = vpop.permute.xlu0 %2864
    %v2867 = vmul.f32 %v2849, %v2865
    %2870 = vrot.lane.b32.xlu0 %v2867, 64
    %v2871 = vpop.permute.xlu0 %2870
    %v2873 = vsel %vm110, %v291, %v2871
    %vm2874 = vcmask 517120
    %2875 = vst.msk [vmem:[#allocation11] sm:$0x3] %vm2874, %v2873
    %2877 = vrot.lane.b32.xlu0 %v2697, 64
    %v2878 = vpop.permute.xlu0 %2877
    %v2880 = vsel %vm110, %v464, %v2878
    %s2881 = scalar_lea.vmem [#allocation11], 2
    %2882 = vst.msk [vmem:[%s2881] sm:$0x3] %vm2874, %v2880
    %2884 = vrot.lane.b32.xlu0 %v2527, 64
    %v2885 = vpop.permute.xlu0 %2884
    %v2887 = vsel %vm110, %v637, %v2885
    %s2888 = scalar_lea.vmem [#allocation11], 4
    %2889 = vst.msk [vmem:[%s2888] sm:$0x3] %vm2874, %v2887
    %2891 = vrot.lane.b32.xlu0 %v2357, 64
    %v2892 = vpop.permute.xlu0 %2891
    %v2894 = vsel %vm110, %v810, %v2892
    %s2895 = scalar_lea.vmem [#allocation11], 6
    %2896 = vst.msk [vmem:[%s2895] sm:$0x3] %vm2874, %v2894
    %2898 = vrot.lane.b32.xlu0 %v2187, 64
    %v2899 = vpop.permute.xlu0 %2898
    %v2901 = vsel %vm110, %v983, %v2899
    %s2902 = scalar_lea.vmem [#allocation11], 8
    %2903 = vst.msk [vmem:[%s2902] sm:$0x3] %vm2874, %v2901
    %2905 = vrot.lane.b32.xlu0 %v2017, 64
    %v2906 = vpop.permute.xlu0 %2905
    %v2908 = vsel %vm110, %v1156, %v2906
    %s2909 = scalar_lea.vmem [#allocation11], 10
    %2910 = vst.msk [vmem:[%s2909] sm:$0x3] %vm2874, %v2908
    %2912 = vrot.lane.b32.xlu0 %v1847, 64
    %v2913 = vpop.permute.xlu0 %2912
    %v2915 = vsel %vm110, %v1329, %v2913
    %s2916 = scalar_lea.vmem [#allocation11], 12
    %2917 = vst.msk [vmem:[%s2916] sm:$0x3] %vm2874, %v2915
    %2919 = vrot.lane.b32.xlu0 %v1499, 32
    %v2920 = vpop.permute.xlu0 %2919
    %2922 = vrot.lane.b32.xlu0 %v1677, 64
    %v2923 = vpop.permute.xlu0 %2922
    %v2925 = vsel %vm110, %v2920, %v2923
    %s2926 = scalar_lea.vmem [#allocation11], 14
    %2927 = vst.msk [vmem:[%s2926] sm:$0x3] %vm2874, %v2925
    // Predicated region
    $region50: #{tpu_custom_call.1} parent=1 // pred_check
      _
    $region51: #{tpu_custom_call.1} parent=1 // pred_check_branch
      %2929 = sbr.rel (0) target = $region53
    $region52: #{tpu_custom_call.1} parent=1 // pred_region
      %s2931 = ssub.s32 256, 256
      %2932 = vsyncadd [#allocation4], %s2931
      %s2933 = sshll.u32 [#allocation11], 4
      %s2934 = int_to_ptr.vmem [resolvable:$true] %s2933
      %2939 = dma.vmem_to_hbm [thread:$0]  %s2934, 256, %s7, [#allocation4], 32, 32, 2
    $region53: #{tpu_custom_call.1} parent=1 // pred_fallthru
      _
    // Predicated region
    $region54: #{tpu_custom_call.1} parent=1 // pred_check
      _
    $region55: #{tpu_custom_call.1} parent=1 // pred_check_branch
      %2941 = sbr.rel (0) target = $region57
    $region56: #{tpu_custom_call.1} parent=1 // pred_region
      %2942 = dma.done [#allocation4], 256
    $region57: #{tpu_custom_call.1} parent=1 // pred_fallthru
      _
    %2943 = vsyncpa [#allocation3], 1
    %2944 = vsyncpa [#allocation6], 1
    %2945 = vsyncpa [#allocation9], 1
    %2946 = vsyncpa [#allocation4], 1

</llo_original>
